<compile_context>
chip_gen: v7x
topology: tpu7x:2x2x1
jax: 0.10.0
libtpu: 0.0.40
codegen_flags: <defaults>
</compile_context>

<pallas_src>
import math

import jax
import jax.numpy as jnp
from jax import lax
from jax.experimental import pallas as pl
from jax.experimental.pallas import tpu as pltpu


_COMPUTE_DTYPE = jnp.bfloat16   # MXU input dtype; accumulation stays f32


def _round_up(n, m):
    return (n + m - 1) // m * m


def _sigmoid_eup(v):
    # Single-EUP sigmoid: 0.5*tanh(0.5*x) + 0.5 == logistic(x).
    return 0.5 * jnp.tanh(0.5 * v) + 0.5


# ---------------------------------------------------------------------------
# Fused kernel factory: num_layers x LSTM (wavefront) + (fc1 -> ReLU -> fc2)
# ---------------------------------------------------------------------------
def _make_model_kernel(num_layers, T, B_pad, H, compute_dtype):
    """Kernel args:
       x_ref                        : (T*B_pad, Din0) compute_dtype (time-major)
       per layer l:
         wih_ref (Din_l, 4H) cdt, whh_ref (H, 4H) cdt, b_ref (1, 4H) f32
       w1_ref (H,H) cdt, b1_ref (1,H) f32, w2_ref (H,O) cdt, b2_ref (1,O) f32
       out_ref : (B_pad, O) f32
       scratch : xg_ref (T*B_pad, 4H) f32  (layer-0 hoisted input projection)
    """
    total_waves = T + num_layers - 1
    # Cap static unroll so large H does not blow vreg pressure / compile time.
    unroll_cap = max(8, min(64, 8192 // max(H, 1)))
    full_unroll = total_waves <= unroll_cap

    def kernel(x_ref, *args):
        lstm_args = args[:3 * num_layers]
        w1_ref, b1_ref, w2_ref, b2_ref, out_ref = (
            args[3 * num_layers:3 * num_layers + 5])
        xg_ref = args[3 * num_layers + 5]

        wih = [lstm_args[3 * l + 0] for l in range(num_layers)]
        whh = [lstm_args[3 * l + 1] for l in range(num_layers)]
        bias = [lstm_args[3 * l + 2] for l in range(num_layers)]

        # (1) Hoisted layer-0 input projection over the whole sequence.
        xg_ref[...] = (jnp.dot(x_ref[...], wih[0][...],
                               preferred_element_type=jnp.float32)
                       + bias[0][...])

        def cell(gates, c_prev):
            i = _sigmoid_eup(gates[:, 0 * H:1 * H])
            f = _sigmoid_eup(gates[:, 1 * H:2 * H])
            g = jnp.tanh(gates[:, 2 * H:3 * H])
            o = _sigmoid_eup(gates[:, 3 * H:4 * H])
            c_new = f * c_prev + i * g
            # h is only ever consumed in compute_dtype (matmuls / fc head).
            h_new = (o * jnp.tanh(c_new)).astype(compute_dtype)
            return h_new, c_new

        def layer_step(l, t, h_below, h_prev, c_prev):
            if l == 0:
                start = t * B_pad
                if not isinstance(t, int):
                    start = pl.multiple_of(start, B_pad)
                gates = xg_ref[pl.ds(start, B_pad), :] + jnp.dot(
                    h_prev, whh[0][...], preferred_element_type=jnp.float32)
            else:
                gates = (jnp.dot(h_below, wih[l][...],
                                 preferred_element_type=jnp.float32)
                         + jnp.dot(h_prev, whh[l][...],
                                   preferred_element_type=jnp.float32)
                         + bias[l][...])
            return cell(gates, c_prev)

        def wave(w, h, c):
            # One diagonal wavefront: layer l runs step t = w - l, consuming the
            # previous-wave snapshot of layer l-1's hidden state, so the per-layer
            # steps inside a wave are mutually independent (co-issuable).
            h_old = list(h)
            h_new = list(h)
            c_new = list(c)
            for l in range(num_layers):
                t = w - l
                if isinstance(w, int) and not (0 <= t < T):
                    continue
                h_below = None if l == 0 else h_old[l - 1]
                h_new[l], c_new[l] = layer_step(l, t, h_below, h_old[l], c[l])
            return h_new, c_new

        h = [jnp.zeros((B_pad, H), compute_dtype) for _ in range(num_layers)]
        c = [jnp.zeros((B_pad, H), jnp.float32) for _ in range(num_layers)]

        if full_unroll:
            for w in range(total_waves):
                h, c = wave(w, h, c)
        else:
            steady_lo, steady_hi = num_layers - 1, T
            for w in range(0, min(steady_lo, total_waves)):            # ramp-up
                h, c = wave(w, h, c)
            if steady_hi > steady_lo:                                  # steady state
                def body(w, carry):
                    hh, cc = wave(w, list(carry[0]), list(carry[1]))
                    return (tuple(hh), tuple(cc))
                h, c = lax.fori_loop(steady_lo, steady_hi, body,
                                     (tuple(h), tuple(c)), unroll=4)
                h, c = list(h), list(c)
            for w in range(max(steady_lo, steady_hi), total_waves):    # ramp-down
                h, c = wave(w, h, c)

        # (2) Fused head on the last hidden state of the last layer.
        h_last = h[num_layers - 1]                      # already compute_dtype
        z = (jnp.dot(h_last, w1_ref[...], preferred_element_type=jnp.float32)
             + b1_ref[...])
        z = jnp.maximum(z, 0.0)
        # TODO(synk): nn.Dropout is identity at inference; no dropout mask applied.
        out_ref[...] = (jnp.dot(z.astype(compute_dtype), w2_ref[...],
                                preferred_element_type=jnp.float32) + b2_ref[...])

    return kernel


# ---------------------------------------------------------------------------
# Wrapper
# ---------------------------------------------------------------------------
_VMEM_SPEC = pl.BlockSpec(memory_space=pltpu.MemorySpace.VMEM)


def _vmem_limit_bytes(T, B_pad, Din, H, O, num_layers):
    total = T * B_pad * Din * 2            # x2d (bf16)
    total += T * B_pad * 4 * H * 4         # xg scratch (f32)
    din = Din
    for _ in range(num_layers):
        total += (din + H) * 4 * H * 2 + 4 * H * 4
        din = H
    total += (H * H + H * O) * 2 + (H + O) * 4
    total += B_pad * O * 4
    # Headroom for compiler temporaries; clamp to sane bounds.
    return int(min(128 * 1024 * 1024, max(32 * 1024 * 1024, 2 * total + (4 << 20))))


def lstm_model_forward(x, params, compute_dtype=_COMPUTE_DTYPE):
    """x: (B, T, input_dim) f32  ->  logits (B, output_dim) f32."""
    B, T, Din = x.shape
    H = params["lstm"][0][1].shape[0]
    O = params["w2_t"].shape[1]
    num_layers = len(params["lstm"])

    # Pad batch to the packed-sublane count of the compute dtype so row-sliced
    # buffers in the kernel stay tile-aligned.  Padded rows are sliced away.
    sub = 16 if compute_dtype == jnp.bfloat16 else 8
    B_pad = _round_up(B, sub)
    if B_pad != B:
        x = jnp.pad(x, ((0, B_pad - B), (0, 0), (0, 0)))

    # Time-major, flattened to 2-D once; matmul operands go to bf16, accumulation f32.
    # TODO(synk): for production shapes fold this transpose/cast into a streaming
    # T-chunk BlockSpec instead of a separate wrapper-side pass over x.
    x2d = jnp.swapaxes(x, 0, 1).reshape(T * B_pad, Din).astype(compute_dtype)

    lstm_flat = []
    for (w_ih_t, w_hh_t, b) in params["lstm"]:
        lstm_flat += [w_ih_t.astype(compute_dtype),
                      w_hh_t.astype(compute_dtype),
                      b.astype(jnp.float32)]
    head = [params["w1_t"].astype(compute_dtype), params["b1"].astype(jnp.float32),
            params["w2_t"].astype(compute_dtype), params["b2"].astype(jnp.float32)]

    kernel = _make_model_kernel(num_layers, T, B_pad, H, compute_dtype)
    n_in = 1 + len(lstm_flat) + len(head)
    out = pl.pallas_call(
        kernel,
        out_shape=jax.ShapeDtypeStruct((B_pad, O), jnp.float32),
        in_specs=[_VMEM_SPEC] * n_in,
        out_specs=_VMEM_SPEC,
        scratch_shapes=[pltpu.VMEM((T * B_pad, 4 * H), jnp.float32)],
        compiler_params=pltpu.CompilerParams(
            vmem_limit_bytes=_vmem_limit_bytes(T, B_pad, Din, H, O, num_layers)),
    )(x2d, *lstm_flat, *head)
    return out[:B]


# ---------------------------------------------------------------------------
# Deterministic parameter init (PyTorch-style uniform(-1/sqrt(H), 1/sqrt(H)))
# ---------------------------------------------------------------------------
def init_params(key, input_dim, hidden_dim, output_dim, num_layers):
    params = {"lstm": []}
    k = 1.0 / math.sqrt(hidden_dim)
    for layer in range(num_layers):
        din = input_dim if layer == 0 else hidden_dim
        key, k1, k2, k3, k4 = jax.random.split(key, 5)
        w_ih_t = jax.random.uniform(k1, (din, 4 * hidden_dim), jnp.float32, -k, k)
        w_hh_t = jax.random.uniform(k2, (hidden_dim, 4 * hidden_dim), jnp.float32, -k, k)
        b_ih = jax.random.uniform(k3, (1, 4 * hidden_dim), jnp.float32, -k, k)
        b_hh = jax.random.uniform(k4, (1, 4 * hidden_dim), jnp.float32, -k, k)
        params["lstm"].append((w_ih_t, w_hh_t, b_ih + b_hh))
    key, k1, k2, k3, k4 = jax.random.split(key, 5)
    params["w1_t"] = jax.random.uniform(k1, (hidden_dim, hidden_dim), jnp.float32, -k, k)
    params["b1"] = jax.random.uniform(k2, (1, hidden_dim), jnp.float32, -k, k)
    params["w2_t"] = jax.random.uniform(k3, (hidden_dim, output_dim), jnp.float32, -k, k)
    params["b2"] = jax.random.uniform(k4, (1, output_dim), jnp.float32, -k, k)
    return params


# ---------------------------------------------------------------------------
# Pure-JAX references.
#   match_kernel=True mirrors the kernel numerics (bf16 matmul inputs, bf16 h
#   carry, tanh-form sigmoid) for a tight structural check; match_kernel=False
#   is the faithful f32 / standard-sigmoid PyTorch-semantics reference.
# ---------------------------------------------------------------------------
def reference_forward(x, params, compute_dtype=jnp.float32, match_kernel=False):
    cdt = compute_dtype

    def sig(v):
        return _sigmoid_eup(v) if match_kernel else jax.nn.sigmoid(v)

    h_seq = x
    for (w_ih_t, w_hh_t, b) in params["lstm"]:
        B, H = x.shape[0], w_hh_t.shape[0]
        wih_c, whh_c = w_ih_t.astype(cdt), w_hh_t.astype(cdt)

        def cell(carry, x_t, wih_c=wih_c, whh_c=whh_c, b=b):
            hh, cc = carry
            gates = (jnp.dot(x_t.astype(cdt), wih_c, preferred_element_type=jnp.float32)
                     + jnp.dot(hh.astype(cdt), whh_c, preferred_element_type=jnp.float32)
                     + b[0])
            i, f, g, o = jnp.split(gates, 4, axis=-1)
            i, f, o = sig(i), sig(f), sig(o)
            g = jnp.tanh(g)
            cc = f * cc + i * g
            hh = o * jnp.tanh(cc)
            if match_kernel:
                hh = hh.astype(cdt)
            return (hh, cc), hh

        init = (jnp.zeros((B, H), cdt if match_kernel else jnp.float32),
                jnp.zeros((B, H), jnp.float32))
        _, outs = lax.scan(cell, init, jnp.swapaxes(h_seq, 0, 1))
        h_seq = jnp.swapaxes(outs, 0, 1)
    last = h_seq[:, -1, :]
    z = jax.nn.relu(jnp.dot(last.astype(cdt), params["w1_t"].astype(cdt),
                            preferred_element_type=jnp.float32) + params["b1"][0])
    return (jnp.dot(z.astype(cdt), params["w2_t"].astype(cdt),
                    preferred_element_type=jnp.float32) + params["b2"][0])


# ---------------------------------------------------------------------------
if __name__ == "__main__":
    input_dim, hidden_dim, output_dim, num_layers = 16, 32, 8, 2
    B, T = 2, 8

    key = jax.random.PRNGKey(0)
    key, xk = jax.random.split(key)
    x = jax.random.normal(xk, (B, T, input_dim), jnp.float32)
    params = init_params(key, input_dim, hidden_dim, output_dim, num_layers)

    fwd = jax.jit(lstm_model_forward)
    logits = jax.block_until_ready(fwd(x, params))

    # Tight check: reference mirroring the kernel's numerics.
    ref_bf16 = jax.block_until_ready(
        reference_forward(x, params, _COMPUTE_DTYPE, match_kernel=True))
    # Loose check: full-f32, standard-sigmoid PyTorch-semantics reference.
    ref_f32 = jax.block_until_ready(reference_forward(x, params, jnp.float32))

    assert logits.shape == (B, output_dim)
    assert jnp.allclose(logits, ref_bf16, atol=5e-3, rtol=5e-3), (
        f"mismatch vs matched ref: max abs err = {jnp.max(jnp.abs(logits - ref_bf16))}")
    assert jnp.allclose(logits, ref_f32, atol=1e-1, rtol=1e-1), (
        f"mismatch vs f32 ref: max abs err = {jnp.max(jnp.abs(logits - ref_f32))}")

    print("KERNEL_OK")
</pallas_src>

<mosaic_0001>
module attributes {stable_mosaic.version = 11 : i64} {
  func.func @kernel(%arg0: memref<128x16xbf16, #tpu.memory_space<vmem>>, %arg1: memref<16x128xbf16, #tpu.memory_space<vmem>>, %arg2: memref<32x128xbf16, #tpu.memory_space<vmem>>, %arg3: memref<1x128xf32, #tpu.memory_space<vmem>>, %arg4: memref<32x128xbf16, #tpu.memory_space<vmem>>, %arg5: memref<32x128xbf16, #tpu.memory_space<vmem>>, %arg6: memref<1x128xf32, #tpu.memory_space<vmem>>, %arg7: memref<32x32xbf16, #tpu.memory_space<vmem>>, %arg8: memref<1x32xf32, #tpu.memory_space<vmem>>, %arg9: memref<32x8xbf16, #tpu.memory_space<vmem>>, %arg10: memref<1x8xf32, #tpu.memory_space<vmem>>, %arg11: memref<16x8xf32, #tpu.memory_space<vmem>>, %arg12: memref<128x128xf32, #tpu.memory_space<vmem>>) attributes {dimension_semantics = [], scalar_prefetch = 0 : i64, scratch_operands = 1 : i64, tpu.core_type = #tpu.core_type<tc>} {
    %c0 = arith.constant 0 : index
    %c0_0 = arith.constant 0 : index
    %0 = vector.load %arg0[%c0, %c0_0] : memref<128x16xbf16, #tpu.memory_space<vmem>>, vector<128x16xbf16>
    %c0_1 = arith.constant 0 : index
    %c0_2 = arith.constant 0 : index
    %1 = vector.load %arg1[%c0_1, %c0_2] : memref<16x128xbf16, #tpu.memory_space<vmem>>, vector<16x128xbf16>
    %cst = arith.constant dense<0.000000e+00> : vector<128x128xf32>
    %2 = tpu.matmul %0, %1, %cst {dimension_numbers = #tpu.dot_dimension_numbers<[1], [0], [0], [1], [0, 0, 1, 1], [], []>} : vector<128x16xbf16>, vector<16x128xbf16>, vector<128x128xf32> -> vector<128x128xf32>
    %c0_3 = arith.constant 0 : index
    %c0_4 = arith.constant 0 : index
    %3 = vector.load %arg3[%c0_3, %c0_4] : memref<1x128xf32, #tpu.memory_space<vmem>>, vector<1x128xf32>
    %4 = vector.broadcast %3 : vector<1x128xf32> to vector<128x128xf32>
    %5 = arith.addf %2, %4 : vector<128x128xf32>
    %c0_5 = arith.constant 0 : index
    %c0_6 = arith.constant 0 : index
    %6 = vector.load %arg12[%c0_5, %c0_6] : memref<128x128xf32, #tpu.memory_space<vmem>>, vector<128x128xf32>
    tpu.vector_store %arg12[%c0_5, %c0_6], %5 {strides = array<i32>} : memref<128x128xf32, #tpu.memory_space<vmem>>, vector<128x128xf32>,
    %cst_7 = arith.constant 0.000000e+00 : bf16
    %7 = vector.broadcast %cst_7 : bf16 to vector<16x32xbf16>
    %cst_8 = arith.constant 0.000000e+00 : bf16
    %8 = vector.broadcast %cst_8 : bf16 to vector<16x32xbf16>
    %cst_9 = arith.constant 0.000000e+00 : f32
    %9 = vector.broadcast %cst_9 : f32 to vector<16x32xf32>
    %cst_10 = arith.constant 0.000000e+00 : f32
    %10 = vector.broadcast %cst_10 : f32 to vector<16x32xf32>
    %c0_11 = arith.constant 0 : index
    %c0_12 = arith.constant 0 : index
    %11 = vector.load %arg12[%c0_11, %c0_12] : memref<128x128xf32, #tpu.memory_space<vmem>>, vector<16x128xf32>
    %c0_13 = arith.constant 0 : index
    %c0_14 = arith.constant 0 : index
    %12 = vector.load %arg2[%c0_13, %c0_14] : memref<32x128xbf16, #tpu.memory_space<vmem>>, vector<32x128xbf16>
    %cst_15 = arith.constant dense<0.000000e+00> : vector<16x128xf32>
    %13 = tpu.matmul %7, %12, %cst_15 {dimension_numbers = #tpu.dot_dimension_numbers<[1], [0], [0], [1], [0, 0, 1, 1], [], []>} : vector<16x32xbf16>, vector<32x128xbf16>, vector<16x128xf32> -> vector<16x128xf32>
    %14 = arith.addf %11, %13 : vector<16x128xf32>
    %15 = vector.extract_strided_slice %14 {offsets = [0, 0], sizes = [16, 32], strides = [1, 1]} : vector<16x128xf32> to vector<16x32xf32>
    %cst_16 = arith.constant 5.000000e-01 : f32
    %16 = vector.broadcast %cst_16 : f32 to vector<16x32xf32>
    %17 = arith.mulf %16, %15 : vector<16x32xf32>
    %18 = math.tanh %17 : vector<16x32xf32>
    %cst_17 = arith.constant 5.000000e-01 : f32
    %19 = vector.broadcast %cst_17 : f32 to vector<16x32xf32>
    %20 = arith.mulf %19, %18 : vector<16x32xf32>
    %cst_18 = arith.constant 5.000000e-01 : f32
    %21 = vector.broadcast %cst_18 : f32 to vector<16x32xf32>
    %22 = arith.addf %20, %21 : vector<16x32xf32>
    %23 = vector.extract_strided_slice %14 {offsets = [0, 32], sizes = [16, 32], strides = [1, 1]} : vector<16x128xf32> to vector<16x32xf32>
    %cst_19 = arith.constant 5.000000e-01 : f32
    %24 = vector.broadcast %cst_19 : f32 to vector<16x32xf32>
    %25 = arith.mulf %24, %23 : vector<16x32xf32>
    %26 = math.tanh %25 : vector<16x32xf32>
    %cst_20 = arith.constant 5.000000e-01 : f32
    %27 = vector.broadcast %cst_20 : f32 to vector<16x32xf32>
    %28 = arith.mulf %27, %26 : vector<16x32xf32>
    %cst_21 = arith.constant 5.000000e-01 : f32
    %29 = vector.broadcast %cst_21 : f32 to vector<16x32xf32>
    %30 = arith.addf %28, %29 : vector<16x32xf32>
    %31 = vector.extract_strided_slice %14 {offsets = [0, 64], sizes = [16, 32], strides = [1, 1]} : vector<16x128xf32> to vector<16x32xf32>
    %32 = math.tanh %31 : vector<16x32xf32>
    %33 = vector.extract_strided_slice %14 {offsets = [0, 96], sizes = [16, 32], strides = [1, 1]} : vector<16x128xf32> to vector<16x32xf32>
    %cst_22 = arith.constant 5.000000e-01 : f32
    %34 = vector.broadcast %cst_22 : f32 to vector<16x32xf32>
    %35 = arith.mulf %34, %33 : vector<16x32xf32>
    %36 = math.tanh %35 : vector<16x32xf32>
    %cst_23 = arith.constant 5.000000e-01 : f32
    %37 = vector.broadcast %cst_23 : f32 to vector<16x32xf32>
    %38 = arith.mulf %37, %36 : vector<16x32xf32>
    %cst_24 = arith.constant 5.000000e-01 : f32
    %39 = vector.broadcast %cst_24 : f32 to vector<16x32xf32>
    %40 = arith.addf %38, %39 : vector<16x32xf32>
    %41 = arith.mulf %30, %9 : vector<16x32xf32>
    %42 = arith.mulf %22, %32 : vector<16x32xf32>
    %43 = arith.addf %41, %42 : vector<16x32xf32>
    %44 = math.tanh %43 : vector<16x32xf32>
    %45 = arith.mulf %40, %44 : vector<16x32xf32>
    %46 = arith.truncf %45 : vector<16x32xf32> to vector<16x32xbf16>
    %c16 = arith.constant 16 : index
    %c0_25 = arith.constant 0 : index
    %47 = vector.load %arg12[%c16, %c0_25] : memref<128x128xf32, #tpu.memory_space<vmem>>, vector<16x128xf32>
    %c0_26 = arith.constant 0 : index
    %c0_27 = arith.constant 0 : index
    %48 = vector.load %arg2[%c0_26, %c0_27] : memref<32x128xbf16, #tpu.memory_space<vmem>>, vector<32x128xbf16>
    %cst_28 = arith.constant dense<0.000000e+00> : vector<16x128xf32>
    %49 = tpu.matmul %46, %48, %cst_28 {dimension_numbers = #tpu.dot_dimension_numbers<[1], [0], [0], [1], [0, 0, 1, 1], [], []>} : vector<16x32xbf16>, vector<32x128xbf16>, vector<16x128xf32> -> vector<16x128xf32>
    %50 = arith.addf %47, %49 : vector<16x128xf32>
    %51 = vector.extract_strided_slice %50 {offsets = [0, 0], sizes = [16, 32], strides = [1, 1]} : vector<16x128xf32> to vector<16x32xf32>
    %cst_29 = arith.constant 5.000000e-01 : f32
    %52 = vector.broadcast %cst_29 : f32 to vector<16x32xf32>
    %53 = arith.mulf %52, %51 : vector<16x32xf32>
    %54 = math.tanh %53 : vector<16x32xf32>
    %cst_30 = arith.constant 5.000000e-01 : f32
    %55 = vector.broadcast %cst_30 : f32 to vector<16x32xf32>
    %56 = arith.mulf %55, %54 : vector<16x32xf32>
    %cst_31 = arith.constant 5.000000e-01 : f32
    %57 = vector.broadcast %cst_31 : f32 to vector<16x32xf32>
    %58 = arith.addf %56, %57 : vector<16x32xf32>
    %59 = vector.extract_strided_slice %50 {offsets = [0, 32], sizes = [16, 32], strides = [1, 1]} : vector<16x128xf32> to vector<16x32xf32>
    %cst_32 = arith.constant 5.000000e-01 : f32
    %60 = vector.broadcast %cst_32 : f32 to vector<16x32xf32>
    %61 = arith.mulf %60, %59 : vector<16x32xf32>
    %62 = math.tanh %61 : vector<16x32xf32>
    %cst_33 = arith.constant 5.000000e-01 : f32
    %63 = vector.broadcast %cst_33 : f32 to vector<16x32xf32>
    %64 = arith.mulf %63, %62 : vector<16x32xf32>
    %cst_34 = arith.constant 5.000000e-01 : f32
    %65 = vector.broadcast %cst_34 : f32 to vector<16x32xf32>
    %66 = arith.addf %64, %65 : vector<16x32xf32>
    %67 = vector.extract_strided_slice %50 {offsets = [0, 64], sizes = [16, 32], strides = [1, 1]} : vector<16x128xf32> to vector<16x32xf32>
    %68 = math.tanh %67 : vector<16x32xf32>
    %69 = vector.extract_strided_slice %50 {offsets = [0, 96], sizes = [16, 32], strides = [1, 1]} : vector<16x128xf32> to vector<16x32xf32>
    %cst_35 = arith.constant 5.000000e-01 : f32
    %70 = vector.broadcast %cst_35 : f32 to vector<16x32xf32>
    %71 = arith.mulf %70, %69 : vector<16x32xf32>
    %72 = math.tanh %71 : vector<16x32xf32>
    %cst_36 = arith.constant 5.000000e-01 : f32
    %73 = vector.broadcast %cst_36 : f32 to vector<16x32xf32>
    %74 = arith.mulf %73, %72 : vector<16x32xf32>
    %cst_37 = arith.constant 5.000000e-01 : f32
    %75 = vector.broadcast %cst_37 : f32 to vector<16x32xf32>
    %76 = arith.addf %74, %75 : vector<16x32xf32>
    %77 = arith.mulf %66, %43 : vector<16x32xf32>
    %78 = arith.mulf %58, %68 : vector<16x32xf32>
    %79 = arith.addf %77, %78 : vector<16x32xf32>
    %80 = math.tanh %79 : vector<16x32xf32>
    %81 = arith.mulf %76, %80 : vector<16x32xf32>
    %82 = arith.truncf %81 : vector<16x32xf32> to vector<16x32xbf16>
    %c0_38 = arith.constant 0 : index
    %c0_39 = arith.constant 0 : index
    %83 = vector.load %arg4[%c0_38, %c0_39] : memref<32x128xbf16, #tpu.memory_space<vmem>>, vector<32x128xbf16>
    %cst_40 = arith.constant dense<0.000000e+00> : vector<16x128xf32>
    %84 = tpu.matmul %46, %83, %cst_40 {dimension_numbers = #tpu.dot_dimension_numbers<[1], [0], [0], [1], [0, 0, 1, 1], [], []>} : vector<16x32xbf16>, vector<32x128xbf16>, vector<16x128xf32> -> vector<16x128xf32>
    %c0_41 = arith.constant 0 : index
    %c0_42 = arith.constant 0 : index
    %85 = vector.load %arg5[%c0_41, %c0_42] : memref<32x128xbf16, #tpu.memory_space<vmem>>, vector<32x128xbf16>
    %cst_43 = arith.constant dense<0.000000e+00> : vector<16x128xf32>
    %86 = tpu.matmul %8, %85, %cst_43 {dimension_numbers = #tpu.dot_dimension_numbers<[1], [0], [0], [1], [0, 0, 1, 1], [], []>} : vector<16x32xbf16>, vector<32x128xbf16>, vector<16x128xf32> -> vector<16x128xf32>
    %87 = arith.addf %84, %86 : vector<16x128xf32>
    %c0_44 = arith.constant 0 : index
    %c0_45 = arith.constant 0 : index
    %88 = vector.load %arg6[%c0_44, %c0_45] : memref<1x128xf32, #tpu.memory_space<vmem>>, vector<1x128xf32>
    %89 = vector.broadcast %88 : vector<1x128xf32> to vector<16x128xf32>
    %90 = arith.addf %87, %89 : vector<16x128xf32>
    %91 = vector.extract_strided_slice %90 {offsets = [0, 0], sizes = [16, 32], strides = [1, 1]} : vector<16x128xf32> to vector<16x32xf32>
    %cst_46 = arith.constant 5.000000e-01 : f32
    %92 = vector.broadcast %cst_46 : f32 to vector<16x32xf32>
    %93 = arith.mulf %92, %91 : vector<16x32xf32>
    %94 = math.tanh %93 : vector<16x32xf32>
    %cst_47 = arith.constant 5.000000e-01 : f32
    %95 = vector.broadcast %cst_47 : f32 to vector<16x32xf32>
    %96 = arith.mulf %95, %94 : vector<16x32xf32>
    %cst_48 = arith.constant 5.000000e-01 : f32
    %97 = vector.broadcast %cst_48 : f32 to vector<16x32xf32>
    %98 = arith.addf %96, %97 : vector<16x32xf32>
    %99 = vector.extract_strided_slice %90 {offsets = [0, 32], sizes = [16, 32], strides = [1, 1]} : vector<16x128xf32> to vector<16x32xf32>
    %cst_49 = arith.constant 5.000000e-01 : f32
    %100 = vector.broadcast %cst_49 : f32 to vector<16x32xf32>
    %101 = arith.mulf %100, %99 : vector<16x32xf32>
    %102 = math.tanh %101 : vector<16x32xf32>
    %cst_50 = arith.constant 5.000000e-01 : f32
    %103 = vector.broadcast %cst_50 : f32 to vector<16x32xf32>
    %104 = arith.mulf %103, %102 : vector<16x32xf32>
    %cst_51 = arith.constant 5.000000e-01 : f32
    %105 = vector.broadcast %cst_51 : f32 to vector<16x32xf32>
    %106 = arith.addf %104, %105 : vector<16x32xf32>
    %107 = vector.extract_strided_slice %90 {offsets = [0, 64], sizes = [16, 32], strides = [1, 1]} : vector<16x128xf32> to vector<16x32xf32>
    %108 = math.tanh %107 : vector<16x32xf32>
    %109 = vector.extract_strided_slice %90 {offsets = [0, 96], sizes = [16, 32], strides = [1, 1]} : vector<16x128xf32> to vector<16x32xf32>
    %cst_52 = arith.constant 5.000000e-01 : f32
    %110 = vector.broadcast %cst_52 : f32 to vector<16x32xf32>
    %111 = arith.mulf %110, %109 : vector<16x32xf32>
    %112 = math.tanh %111 : vector<16x32xf32>
    %cst_53 = arith.constant 5.000000e-01 : f32
    %113 = vector.broadcast %cst_53 : f32 to vector<16x32xf32>
    %114 = arith.mulf %113, %112 : vector<16x32xf32>
    %cst_54 = arith.constant 5.000000e-01 : f32
    %115 = vector.broadcast %cst_54 : f32 to vector<16x32xf32>
    %116 = arith.addf %114, %115 : vector<16x32xf32>
    %117 = arith.mulf %106, %10 : vector<16x32xf32>
    %118 = arith.mulf %98, %108 : vector<16x32xf32>
    %119 = arith.addf %117, %118 : vector<16x32xf32>
    %120 = math.tanh %119 : vector<16x32xf32>
    %121 = arith.mulf %116, %120 : vector<16x32xf32>
    %122 = arith.truncf %121 : vector<16x32xf32> to vector<16x32xbf16>
    %c32 = arith.constant 32 : index
    %c0_55 = arith.constant 0 : index
    %123 = vector.load %arg12[%c32, %c0_55] : memref<128x128xf32, #tpu.memory_space<vmem>>, vector<16x128xf32>
    %c0_56 = arith.constant 0 : index
    %c0_57 = arith.constant 0 : index
    %124 = vector.load %arg2[%c0_56, %c0_57] : memref<32x128xbf16, #tpu.memory_space<vmem>>, vector<32x128xbf16>
    %cst_58 = arith.constant dense<0.000000e+00> : vector<16x128xf32>
    %125 = tpu.matmul %82, %124, %cst_58 {dimension_numbers = #tpu.dot_dimension_numbers<[1], [0], [0], [1], [0, 0, 1, 1], [], []>} : vector<16x32xbf16>, vector<32x128xbf16>, vector<16x128xf32> -> vector<16x128xf32>
    %126 = arith.addf %123, %125 : vector<16x128xf32>
    %127 = vector.extract_strided_slice %126 {offsets = [0, 0], sizes = [16, 32], strides = [1, 1]} : vector<16x128xf32> to vector<16x32xf32>
    %cst_59 = arith.constant 5.000000e-01 : f32
    %128 = vector.broadcast %cst_59 : f32 to vector<16x32xf32>
    %129 = arith.mulf %128, %127 : vector<16x32xf32>
    %130 = math.tanh %129 : vector<16x32xf32>
    %cst_60 = arith.constant 5.000000e-01 : f32
    %131 = vector.broadcast %cst_60 : f32 to vector<16x32xf32>
    %132 = arith.mulf %131, %130 : vector<16x32xf32>
    %cst_61 = arith.constant 5.000000e-01 : f32
    %133 = vector.broadcast %cst_61 : f32 to vector<16x32xf32>
    %134 = arith.addf %132, %133 : vector<16x32xf32>
    %135 = vector.extract_strided_slice %126 {offsets = [0, 32], sizes = [16, 32], strides = [1, 1]} : vector<16x128xf32> to vector<16x32xf32>
    %cst_62 = arith.constant 5.000000e-01 : f32
    %136 = vector.broadcast %cst_62 : f32 to vector<16x32xf32>
    %137 = arith.mulf %136, %135 : vector<16x32xf32>
    %138 = math.tanh %137 : vector<16x32xf32>
    %cst_63 = arith.constant 5.000000e-01 : f32
    %139 = vector.broadcast %cst_63 : f32 to vector<16x32xf32>
    %140 = arith.mulf %139, %138 : vector<16x32xf32>
    %cst_64 = arith.constant 5.000000e-01 : f32
    %141 = vector.broadcast %cst_64 : f32 to vector<16x32xf32>
    %142 = arith.addf %140, %141 : vector<16x32xf32>
    %143 = vector.extract_strided_slice %126 {offsets = [0, 64], sizes = [16, 32], strides = [1, 1]} : vector<16x128xf32> to vector<16x32xf32>
    %144 = math.tanh %143 : vector<16x32xf32>
    %145 = vector.extract_strided_slice %126 {offsets = [0, 96], sizes = [16, 32], strides = [1, 1]} : vector<16x128xf32> to vector<16x32xf32>
    %cst_65 = arith.constant 5.000000e-01 : f32
    %146 = vector.broadcast %cst_65 : f32 to vector<16x32xf32>
    %147 = arith.mulf %146, %145 : vector<16x32xf32>
    %148 = math.tanh %147 : vector<16x32xf32>
    %cst_66 = arith.constant 5.000000e-01 : f32
    %149 = vector.broadcast %cst_66 : f32 to vector<16x32xf32>
    %150 = arith.mulf %149, %148 : vector<16x32xf32>
    %cst_67 = arith.constant 5.000000e-01 : f32
    %151 = vector.broadcast %cst_67 : f32 to vector<16x32xf32>
    %152 = arith.addf %150, %151 : vector<16x32xf32>
    %153 = arith.mulf %142, %79 : vector<16x32xf32>
    %154 = arith.mulf %134, %144 : vector<16x32xf32>
    %155 = arith.addf %153, %154 : vector<16x32xf32>
    %156 = math.tanh %155 : vector<16x32xf32>
    %157 = arith.mulf %152, %156 : vector<16x32xf32>
    %158 = arith.truncf %157 : vector<16x32xf32> to vector<16x32xbf16>
    %c0_68 = arith.constant 0 : index
    %c0_69 = arith.constant 0 : index
    %159 = vector.load %arg4[%c0_68, %c0_69] : memref<32x128xbf16, #tpu.memory_space<vmem>>, vector<32x128xbf16>
    %cst_70 = arith.constant dense<0.000000e+00> : vector<16x128xf32>
    %160 = tpu.matmul %82, %159, %cst_70 {dimension_numbers = #tpu.dot_dimension_numbers<[1], [0], [0], [1], [0, 0, 1, 1], [], []>} : vector<16x32xbf16>, vector<32x128xbf16>, vector<16x128xf32> -> vector<16x128xf32>
    %c0_71 = arith.constant 0 : index
    %c0_72 = arith.constant 0 : index
    %161 = vector.load %arg5[%c0_71, %c0_72] : memref<32x128xbf16, #tpu.memory_space<vmem>>, vector<32x128xbf16>
    %cst_73 = arith.constant dense<0.000000e+00> : vector<16x128xf32>
    %162 = tpu.matmul %122, %161, %cst_73 {dimension_numbers = #tpu.dot_dimension_numbers<[1], [0], [0], [1], [0, 0, 1, 1], [], []>} : vector<16x32xbf16>, vector<32x128xbf16>, vector<16x128xf32> -> vector<16x128xf32>
    %163 = arith.addf %160, %162 : vector<16x128xf32>
    %c0_74 = arith.constant 0 : index
    %c0_75 = arith.constant 0 : index
    %164 = vector.load %arg6[%c0_74, %c0_75] : memref<1x128xf32, #tpu.memory_space<vmem>>, vector<1x128xf32>
    %165 = vector.broadcast %164 : vector<1x128xf32> to vector<16x128xf32>
    %166 = arith.addf %163, %165 : vector<16x128xf32>
    %167 = vector.extract_strided_slice %166 {offsets = [0, 0], sizes = [16, 32], strides = [1, 1]} : vector<16x128xf32> to vector<16x32xf32>
    %cst_76 = arith.constant 5.000000e-01 : f32
    %168 = vector.broadcast %cst_76 : f32 to vector<16x32xf32>
    %169 = arith.mulf %168, %167 : vector<16x32xf32>
    %170 = math.tanh %169 : vector<16x32xf32>
    %cst_77 = arith.constant 5.000000e-01 : f32
    %171 = vector.broadcast %cst_77 : f32 to vector<16x32xf32>
    %172 = arith.mulf %171, %170 : vector<16x32xf32>
    %cst_78 = arith.constant 5.000000e-01 : f32
    %173 = vector.broadcast %cst_78 : f32 to vector<16x32xf32>
    %174 = arith.addf %172, %173 : vector<16x32xf32>
    %175 = vector.extract_strided_slice %166 {offsets = [0, 32], sizes = [16, 32], strides = [1, 1]} : vector<16x128xf32> to vector<16x32xf32>
    %cst_79 = arith.constant 5.000000e-01 : f32
    %176 = vector.broadcast %cst_79 : f32 to vector<16x32xf32>
    %177 = arith.mulf %176, %175 : vector<16x32xf32>
    %178 = math.tanh %177 : vector<16x32xf32>
    %cst_80 = arith.constant 5.000000e-01 : f32
    %179 = vector.broadcast %cst_80 : f32 to vector<16x32xf32>
    %180 = arith.mulf %179, %178 : vector<16x32xf32>
    %cst_81 = arith.constant 5.000000e-01 : f32
    %181 = vector.broadcast %cst_81 : f32 to vector<16x32xf32>
    %182 = arith.addf %180, %181 : vector<16x32xf32>
    %183 = vector.extract_strided_slice %166 {offsets = [0, 64], sizes = [16, 32], strides = [1, 1]} : vector<16x128xf32> to vector<16x32xf32>
    %184 = math.tanh %183 : vector<16x32xf32>
    %185 = vector.extract_strided_slice %166 {offsets = [0, 96], sizes = [16, 32], strides = [1, 1]} : vector<16x128xf32> to vector<16x32xf32>
    %cst_82 = arith.constant 5.000000e-01 : f32
    %186 = vector.broadcast %cst_82 : f32 to vector<16x32xf32>
    %187 = arith.mulf %186, %185 : vector<16x32xf32>
    %188 = math.tanh %187 : vector<16x32xf32>
    %cst_83 = arith.constant 5.000000e-01 : f32
    %189 = vector.broadcast %cst_83 : f32 to vector<16x32xf32>
    %190 = arith.mulf %189, %188 : vector<16x32xf32>
    %cst_84 = arith.constant 5.000000e-01 : f32
    %191 = vector.broadcast %cst_84 : f32 to vector<16x32xf32>
    %192 = arith.addf %190, %191 : vector<16x32xf32>
    %193 = arith.mulf %182, %119 : vector<16x32xf32>
    %194 = arith.mulf %174, %184 : vector<16x32xf32>
    %195 = arith.addf %193, %194 : vector<16x32xf32>
    %196 = math.tanh %195 : vector<16x32xf32>
    %197 = arith.mulf %192, %196 : vector<16x32xf32>
    %198 = arith.truncf %197 : vector<16x32xf32> to vector<16x32xbf16>
    %c48 = arith.constant 48 : index
    %c0_85 = arith.constant 0 : index
    %199 = vector.load %arg12[%c48, %c0_85] : memref<128x128xf32, #tpu.memory_space<vmem>>, vector<16x128xf32>
    %c0_86 = arith.constant 0 : index
    %c0_87 = arith.constant 0 : index
    %200 = vector.load %arg2[%c0_86, %c0_87] : memref<32x128xbf16, #tpu.memory_space<vmem>>, vector<32x128xbf16>
    %cst_88 = arith.constant dense<0.000000e+00> : vector<16x128xf32>
    %201 = tpu.matmul %158, %200, %cst_88 {dimension_numbers = #tpu.dot_dimension_numbers<[1], [0], [0], [1], [0, 0, 1, 1], [], []>} : vector<16x32xbf16>, vector<32x128xbf16>, vector<16x128xf32> -> vector<16x128xf32>
    %202 = arith.addf %199, %201 : vector<16x128xf32>
    %203 = vector.extract_strided_slice %202 {offsets = [0, 0], sizes = [16, 32], strides = [1, 1]} : vector<16x128xf32> to vector<16x32xf32>
    %cst_89 = arith.constant 5.000000e-01 : f32
    %204 = vector.broadcast %cst_89 : f32 to vector<16x32xf32>
    %205 = arith.mulf %204, %203 : vector<16x32xf32>
    %206 = math.tanh %205 : vector<16x32xf32>
    %cst_90 = arith.constant 5.000000e-01 : f32
    %207 = vector.broadcast %cst_90 : f32 to vector<16x32xf32>
    %208 = arith.mulf %207, %206 : vector<16x32xf32>
    %cst_91 = arith.constant 5.000000e-01 : f32
    %209 = vector.broadcast %cst_91 : f32 to vector<16x32xf32>
    %210 = arith.addf %208, %209 : vector<16x32xf32>
    %211 = vector.extract_strided_slice %202 {offsets = [0, 32], sizes = [16, 32], strides = [1, 1]} : vector<16x128xf32> to vector<16x32xf32>
    %cst_92 = arith.constant 5.000000e-01 : f32
    %212 = vector.broadcast %cst_92 : f32 to vector<16x32xf32>
    %213 = arith.mulf %212, %211 : vector<16x32xf32>
    %214 = math.tanh %213 : vector<16x32xf32>
    %cst_93 = arith.constant 5.000000e-01 : f32
    %215 = vector.broadcast %cst_93 : f32 to vector<16x32xf32>
    %216 = arith.mulf %215, %214 : vector<16x32xf32>
    %cst_94 = arith.constant 5.000000e-01 : f32
    %217 = vector.broadcast %cst_94 : f32 to vector<16x32xf32>
    %218 = arith.addf %216, %217 : vector<16x32xf32>
    %219 = vector.extract_strided_slice %202 {offsets = [0, 64], sizes = [16, 32], strides = [1, 1]} : vector<16x128xf32> to vector<16x32xf32>
    %220 = math.tanh %219 : vector<16x32xf32>
    %221 = vector.extract_strided_slice %202 {offsets = [0, 96], sizes = [16, 32], strides = [1, 1]} : vector<16x128xf32> to vector<16x32xf32>
    %cst_95 = arith.constant 5.000000e-01 : f32
    %222 = vector.broadcast %cst_95 : f32 to vector<16x32xf32>
    %223 = arith.mulf %222, %221 : vector<16x32xf32>
    %224 = math.tanh %223 : vector<16x32xf32>
    %cst_96 = arith.constant 5.000000e-01 : f32
    %225 = vector.broadcast %cst_96 : f32 to vector<16x32xf32>
    %226 = arith.mulf %225, %224 : vector<16x32xf32>
    %cst_97 = arith.constant 5.000000e-01 : f32
    %227 = vector.broadcast %cst_97 : f32 to vector<16x32xf32>
    %228 = arith.addf %226, %227 : vector<16x32xf32>
    %229 = arith.mulf %218, %155 : vector<16x32xf32>
    %230 = arith.mulf %210, %220 : vector<16x32xf32>
    %231 = arith.addf %229, %230 : vector<16x32xf32>
    %232 = math.tanh %231 : vector<16x32xf32>
    %233 = arith.mulf %228, %232 : vector<16x32xf32>
    %234 = arith.truncf %233 : vector<16x32xf32> to vector<16x32xbf16>
    %c0_98 = arith.constant 0 : index
    %c0_99 = arith.constant 0 : index
    %235 = vector.load %arg4[%c0_98, %c0_99] : memref<32x128xbf16, #tpu.memory_space<vmem>>, vector<32x128xbf16>
    %cst_100 = arith.constant dense<0.000000e+00> : vector<16x128xf32>
    %236 = tpu.matmul %158, %235, %cst_100 {dimension_numbers = #tpu.dot_dimension_numbers<[1], [0], [0], [1], [0, 0, 1, 1], [], []>} : vector<16x32xbf16>, vector<32x128xbf16>, vector<16x128xf32> -> vector<16x128xf32>
    %c0_101 = arith.constant 0 : index
    %c0_102 = arith.constant 0 : index
    %237 = vector.load %arg5[%c0_101, %c0_102] : memref<32x128xbf16, #tpu.memory_space<vmem>>, vector<32x128xbf16>
    %cst_103 = arith.constant dense<0.000000e+00> : vector<16x128xf32>
    %238 = tpu.matmul %198, %237, %cst_103 {dimension_numbers = #tpu.dot_dimension_numbers<[1], [0], [0], [1], [0, 0, 1, 1], [], []>} : vector<16x32xbf16>, vector<32x128xbf16>, vector<16x128xf32> -> vector<16x128xf32>
    %239 = arith.addf %236, %238 : vector<16x128xf32>
    %c0_104 = arith.constant 0 : index
    %c0_105 = arith.constant 0 : index
    %240 = vector.load %arg6[%c0_104, %c0_105] : memref<1x128xf32, #tpu.memory_space<vmem>>, vector<1x128xf32>
    %241 = vector.broadcast %240 : vector<1x128xf32> to vector<16x128xf32>
    %242 = arith.addf %239, %241 : vector<16x128xf32>
    %243 = vector.extract_strided_slice %242 {offsets = [0, 0], sizes = [16, 32], strides = [1, 1]} : vector<16x128xf32> to vector<16x32xf32>
    %cst_106 = arith.constant 5.000000e-01 : f32
    %244 = vector.broadcast %cst_106 : f32 to vector<16x32xf32>
    %245 = arith.mulf %244, %243 : vector<16x32xf32>
    %246 = math.tanh %245 : vector<16x32xf32>
    %cst_107 = arith.constant 5.000000e-01 : f32
    %247 = vector.broadcast %cst_107 : f32 to vector<16x32xf32>
    %248 = arith.mulf %247, %246 : vector<16x32xf32>
    %cst_108 = arith.constant 5.000000e-01 : f32
    %249 = vector.broadcast %cst_108 : f32 to vector<16x32xf32>
    %250 = arith.addf %248, %249 : vector<16x32xf32>
    %251 = vector.extract_strided_slice %242 {offsets = [0, 32], sizes = [16, 32], strides = [1, 1]} : vector<16x128xf32> to vector<16x32xf32>
    %cst_109 = arith.constant 5.000000e-01 : f32
    %252 = vector.broadcast %cst_109 : f32 to vector<16x32xf32>
    %253 = arith.mulf %252, %251 : vector<16x32xf32>
    %254 = math.tanh %253 : vector<16x32xf32>
    %cst_110 = arith.constant 5.000000e-01 : f32
    %255 = vector.broadcast %cst_110 : f32 to vector<16x32xf32>
    %256 = arith.mulf %255, %254 : vector<16x32xf32>
    %cst_111 = arith.constant 5.000000e-01 : f32
    %257 = vector.broadcast %cst_111 : f32 to vector<16x32xf32>
    %258 = arith.addf %256, %257 : vector<16x32xf32>
    %259 = vector.extract_strided_slice %242 {offsets = [0, 64], sizes = [16, 32], strides = [1, 1]} : vector<16x128xf32> to vector<16x32xf32>
    %260 = math.tanh %259 : vector<16x32xf32>
    %261 = vector.extract_strided_slice %242 {offsets = [0, 96], sizes = [16, 32], strides = [1, 1]} : vector<16x128xf32> to vector<16x32xf32>
    %cst_112 = arith.constant 5.000000e-01 : f32
    %262 = vector.broadcast %cst_112 : f32 to vector<16x32xf32>
    %263 = arith.mulf %262, %261 : vector<16x32xf32>
    %264 = math.tanh %263 : vector<16x32xf32>
    %cst_113 = arith.constant 5.000000e-01 : f32
    %265 = vector.broadcast %cst_113 : f32 to vector<16x32xf32>
    %266 = arith.mulf %265, %264 : vector<16x32xf32>
    %cst_114 = arith.constant 5.000000e-01 : f32
    %267 = vector.broadcast %cst_114 : f32 to vector<16x32xf32>
    %268 = arith.addf %266, %267 : vector<16x32xf32>
    %269 = arith.mulf %258, %195 : vector<16x32xf32>
    %270 = arith.mulf %250, %260 : vector<16x32xf32>
    %271 = arith.addf %269, %270 : vector<16x32xf32>
    %272 = math.tanh %271 : vector<16x32xf32>
    %273 = arith.mulf %268, %272 : vector<16x32xf32>
    %274 = arith.truncf %273 : vector<16x32xf32> to vector<16x32xbf16>
    %c64 = arith.constant 64 : index
    %c0_115 = arith.constant 0 : index
    %275 = vector.load %arg12[%c64, %c0_115] : memref<128x128xf32, #tpu.memory_space<vmem>>, vector<16x128xf32>
    %c0_116 = arith.constant 0 : index
    %c0_117 = arith.constant 0 : index
    %276 = vector.load %arg2[%c0_116, %c0_117] : memref<32x128xbf16, #tpu.memory_space<vmem>>, vector<32x128xbf16>
    %cst_118 = arith.constant dense<0.000000e+00> : vector<16x128xf32>
    %277 = tpu.matmul %234, %276, %cst_118 {dimension_numbers = #tpu.dot_dimension_numbers<[1], [0], [0], [1], [0, 0, 1, 1], [], []>} : vector<16x32xbf16>, vector<32x128xbf16>, vector<16x128xf32> -> vector<16x128xf32>
    %278 = arith.addf %275, %277 : vector<16x128xf32>
    %279 = vector.extract_strided_slice %278 {offsets = [0, 0], sizes = [16, 32], strides = [1, 1]} : vector<16x128xf32> to vector<16x32xf32>
    %cst_119 = arith.constant 5.000000e-01 : f32
    %280 = vector.broadcast %cst_119 : f32 to vector<16x32xf32>
    %281 = arith.mulf %280, %279 : vector<16x32xf32>
    %282 = math.tanh %281 : vector<16x32xf32>
    %cst_120 = arith.constant 5.000000e-01 : f32
    %283 = vector.broadcast %cst_120 : f32 to vector<16x32xf32>
    %284 = arith.mulf %283, %282 : vector<16x32xf32>
    %cst_121 = arith.constant 5.000000e-01 : f32
    %285 = vector.broadcast %cst_121 : f32 to vector<16x32xf32>
    %286 = arith.addf %284, %285 : vector<16x32xf32>
    %287 = vector.extract_strided_slice %278 {offsets = [0, 32], sizes = [16, 32], strides = [1, 1]} : vector<16x128xf32> to vector<16x32xf32>
    %cst_122 = arith.constant 5.000000e-01 : f32
    %288 = vector.broadcast %cst_122 : f32 to vector<16x32xf32>
    %289 = arith.mulf %288, %287 : vector<16x32xf32>
    %290 = math.tanh %289 : vector<16x32xf32>
    %cst_123 = arith.constant 5.000000e-01 : f32
    %291 = vector.broadcast %cst_123 : f32 to vector<16x32xf32>
    %292 = arith.mulf %291, %290 : vector<16x32xf32>
    %cst_124 = arith.constant 5.000000e-01 : f32
    %293 = vector.broadcast %cst_124 : f32 to vector<16x32xf32>
    %294 = arith.addf %292, %293 : vector<16x32xf32>
    %295 = vector.extract_strided_slice %278 {offsets = [0, 64], sizes = [16, 32], strides = [1, 1]} : vector<16x128xf32> to vector<16x32xf32>
    %296 = math.tanh %295 : vector<16x32xf32>
    %297 = vector.extract_strided_slice %278 {offsets = [0, 96], sizes = [16, 32], strides = [1, 1]} : vector<16x128xf32> to vector<16x32xf32>
    %cst_125 = arith.constant 5.000000e-01 : f32
    %298 = vector.broadcast %cst_125 : f32 to vector<16x32xf32>
    %299 = arith.mulf %298, %297 : vector<16x32xf32>
    %300 = math.tanh %299 : vector<16x32xf32>
    %cst_126 = arith.constant 5.000000e-01 : f32
    %301 = vector.broadcast %cst_126 : f32 to vector<16x32xf32>
    %302 = arith.mulf %301, %300 : vector<16x32xf32>
    %cst_127 = arith.constant 5.000000e-01 : f32
    %303 = vector.broadcast %cst_127 : f32 to vector<16x32xf32>
    %304 = arith.addf %302, %303 : vector<16x32xf32>
    %305 = arith.mulf %294, %231 : vector<16x32xf32>
    %306 = arith.mulf %286, %296 : vector<16x32xf32>
    %307 = arith.addf %305, %306 : vector<16x32xf32>
    %308 = math.tanh %307 : vector<16x32xf32>
    %309 = arith.mulf %304, %308 : vector<16x32xf32>
    %310 = arith.truncf %309 : vector<16x32xf32> to vector<16x32xbf16>
    %c0_128 = arith.constant 0 : index
    %c0_129 = arith.constant 0 : index
    %311 = vector.load %arg4[%c0_128, %c0_129] : memref<32x128xbf16, #tpu.memory_space<vmem>>, vector<32x128xbf16>
    %cst_130 = arith.constant dense<0.000000e+00> : vector<16x128xf32>
    %312 = tpu.matmul %234, %311, %cst_130 {dimension_numbers = #tpu.dot_dimension_numbers<[1], [0], [0], [1], [0, 0, 1, 1], [], []>} : vector<16x32xbf16>, vector<32x128xbf16>, vector<16x128xf32> -> vector<16x128xf32>
    %c0_131 = arith.constant 0 : index
    %c0_132 = arith.constant 0 : index
    %313 = vector.load %arg5[%c0_131, %c0_132] : memref<32x128xbf16, #tpu.memory_space<vmem>>, vector<32x128xbf16>
    %cst_133 = arith.constant dense<0.000000e+00> : vector<16x128xf32>
    %314 = tpu.matmul %274, %313, %cst_133 {dimension_numbers = #tpu.dot_dimension_numbers<[1], [0], [0], [1], [0, 0, 1, 1], [], []>} : vector<16x32xbf16>, vector<32x128xbf16>, vector<16x128xf32> -> vector<16x128xf32>
    %315 = arith.addf %312, %314 : vector<16x128xf32>
    %c0_134 = arith.constant 0 : index
    %c0_135 = arith.constant 0 : index
    %316 = vector.load %arg6[%c0_134, %c0_135] : memref<1x128xf32, #tpu.memory_space<vmem>>, vector<1x128xf32>
    %317 = vector.broadcast %316 : vector<1x128xf32> to vector<16x128xf32>
    %318 = arith.addf %315, %317 : vector<16x128xf32>
    %319 = vector.extract_strided_slice %318 {offsets = [0, 0], sizes = [16, 32], strides = [1, 1]} : vector<16x128xf32> to vector<16x32xf32>
    %cst_136 = arith.constant 5.000000e-01 : f32
    %320 = vector.broadcast %cst_136 : f32 to vector<16x32xf32>
    %321 = arith.mulf %320, %319 : vector<16x32xf32>
    %322 = math.tanh %321 : vector<16x32xf32>
    %cst_137 = arith.constant 5.000000e-01 : f32
    %323 = vector.broadcast %cst_137 : f32 to vector<16x32xf32>
    %324 = arith.mulf %323, %322 : vector<16x32xf32>
    %cst_138 = arith.constant 5.000000e-01 : f32
    %325 = vector.broadcast %cst_138 : f32 to vector<16x32xf32>
    %326 = arith.addf %324, %325 : vector<16x32xf32>
    %327 = vector.extract_strided_slice %318 {offsets = [0, 32], sizes = [16, 32], strides = [1, 1]} : vector<16x128xf32> to vector<16x32xf32>
    %cst_139 = arith.constant 5.000000e-01 : f32
    %328 = vector.broadcast %cst_139 : f32 to vector<16x32xf32>
    %329 = arith.mulf %328, %327 : vector<16x32xf32>
    %330 = math.tanh %329 : vector<16x32xf32>
    %cst_140 = arith.constant 5.000000e-01 : f32
    %331 = vector.broadcast %cst_140 : f32 to vector<16x32xf32>
    %332 = arith.mulf %331, %330 : vector<16x32xf32>
    %cst_141 = arith.constant 5.000000e-01 : f32
    %333 = vector.broadcast %cst_141 : f32 to vector<16x32xf32>
    %334 = arith.addf %332, %333 : vector<16x32xf32>
    %335 = vector.extract_strided_slice %318 {offsets = [0, 64], sizes = [16, 32], strides = [1, 1]} : vector<16x128xf32> to vector<16x32xf32>
    %336 = math.tanh %335 : vector<16x32xf32>
    %337 = vector.extract_strided_slice %318 {offsets = [0, 96], sizes = [16, 32], strides = [1, 1]} : vector<16x128xf32> to vector<16x32xf32>
    %cst_142 = arith.constant 5.000000e-01 : f32
    %338 = vector.broadcast %cst_142 : f32 to vector<16x32xf32>
    %339 = arith.mulf %338, %337 : vector<16x32xf32>
    %340 = math.tanh %339 : vector<16x32xf32>
    %cst_143 = arith.constant 5.000000e-01 : f32
    %341 = vector.broadcast %cst_143 : f32 to vector<16x32xf32>
    %342 = arith.mulf %341, %340 : vector<16x32xf32>
    %cst_144 = arith.constant 5.000000e-01 : f32
    %343 = vector.broadcast %cst_144 : f32 to vector<16x32xf32>
    %344 = arith.addf %342, %343 : vector<16x32xf32>
    %345 = arith.mulf %334, %271 : vector<16x32xf32>
    %346 = arith.mulf %326, %336 : vector<16x32xf32>
    %347 = arith.addf %345, %346 : vector<16x32xf32>
    %348 = math.tanh %347 : vector<16x32xf32>
    %349 = arith.mulf %344, %348 : vector<16x32xf32>
    %350 = arith.truncf %349 : vector<16x32xf32> to vector<16x32xbf16>
    %c80 = arith.constant 80 : index
    %c0_145 = arith.constant 0 : index
    %351 = vector.load %arg12[%c80, %c0_145] : memref<128x128xf32, #tpu.memory_space<vmem>>, vector<16x128xf32>
    %c0_146 = arith.constant 0 : index
    %c0_147 = arith.constant 0 : index
    %352 = vector.load %arg2[%c0_146, %c0_147] : memref<32x128xbf16, #tpu.memory_space<vmem>>, vector<32x128xbf16>
    %cst_148 = arith.constant dense<0.000000e+00> : vector<16x128xf32>
    %353 = tpu.matmul %310, %352, %cst_148 {dimension_numbers = #tpu.dot_dimension_numbers<[1], [0], [0], [1], [0, 0, 1, 1], [], []>} : vector<16x32xbf16>, vector<32x128xbf16>, vector<16x128xf32> -> vector<16x128xf32>
    %354 = arith.addf %351, %353 : vector<16x128xf32>
    %355 = vector.extract_strided_slice %354 {offsets = [0, 0], sizes = [16, 32], strides = [1, 1]} : vector<16x128xf32> to vector<16x32xf32>
    %cst_149 = arith.constant 5.000000e-01 : f32
    %356 = vector.broadcast %cst_149 : f32 to vector<16x32xf32>
    %357 = arith.mulf %356, %355 : vector<16x32xf32>
    %358 = math.tanh %357 : vector<16x32xf32>
    %cst_150 = arith.constant 5.000000e-01 : f32
    %359 = vector.broadcast %cst_150 : f32 to vector<16x32xf32>
    %360 = arith.mulf %359, %358 : vector<16x32xf32>
    %cst_151 = arith.constant 5.000000e-01 : f32
    %361 = vector.broadcast %cst_151 : f32 to vector<16x32xf32>
    %362 = arith.addf %360, %361 : vector<16x32xf32>
    %363 = vector.extract_strided_slice %354 {offsets = [0, 32], sizes = [16, 32], strides = [1, 1]} : vector<16x128xf32> to vector<16x32xf32>
    %cst_152 = arith.constant 5.000000e-01 : f32
    %364 = vector.broadcast %cst_152 : f32 to vector<16x32xf32>
    %365 = arith.mulf %364, %363 : vector<16x32xf32>
    %366 = math.tanh %365 : vector<16x32xf32>
    %cst_153 = arith.constant 5.000000e-01 : f32
    %367 = vector.broadcast %cst_153 : f32 to vector<16x32xf32>
    %368 = arith.mulf %367, %366 : vector<16x32xf32>
    %cst_154 = arith.constant 5.000000e-01 : f32
    %369 = vector.broadcast %cst_154 : f32 to vector<16x32xf32>
    %370 = arith.addf %368, %369 : vector<16x32xf32>
    %371 = vector.extract_strided_slice %354 {offsets = [0, 64], sizes = [16, 32], strides = [1, 1]} : vector<16x128xf32> to vector<16x32xf32>
    %372 = math.tanh %371 : vector<16x32xf32>
    %373 = vector.extract_strided_slice %354 {offsets = [0, 96], sizes = [16, 32], strides = [1, 1]} : vector<16x128xf32> to vector<16x32xf32>
    %cst_155 = arith.constant 5.000000e-01 : f32
    %374 = vector.broadcast %cst_155 : f32 to vector<16x32xf32>
    %375 = arith.mulf %374, %373 : vector<16x32xf32>
    %376 = math.tanh %375 : vector<16x32xf32>
    %cst_156 = arith.constant 5.000000e-01 : f32
    %377 = vector.broadcast %cst_156 : f32 to vector<16x32xf32>
    %378 = arith.mulf %377, %376 : vector<16x32xf32>
    %cst_157 = arith.constant 5.000000e-01 : f32
    %379 = vector.broadcast %cst_157 : f32 to vector<16x32xf32>
    %380 = arith.addf %378, %379 : vector<16x32xf32>
    %381 = arith.mulf %370, %307 : vector<16x32xf32>
    %382 = arith.mulf %362, %372 : vector<16x32xf32>
    %383 = arith.addf %381, %382 : vector<16x32xf32>
    %384 = math.tanh %383 : vector<16x32xf32>
    %385 = arith.mulf %380, %384 : vector<16x32xf32>
    %386 = arith.truncf %385 : vector<16x32xf32> to vector<16x32xbf16>
    %c0_158 = arith.constant 0 : index
    %c0_159 = arith.constant 0 : index
    %387 = vector.load %arg4[%c0_158, %c0_159] : memref<32x128xbf16, #tpu.memory_space<vmem>>, vector<32x128xbf16>
    %cst_160 = arith.constant dense<0.000000e+00> : vector<16x128xf32>
    %388 = tpu.matmul %310, %387, %cst_160 {dimension_numbers = #tpu.dot_dimension_numbers<[1], [0], [0], [1], [0, 0, 1, 1], [], []>} : vector<16x32xbf16>, vector<32x128xbf16>, vector<16x128xf32> -> vector<16x128xf32>
    %c0_161 = arith.constant 0 : index
    %c0_162 = arith.constant 0 : index
    %389 = vector.load %arg5[%c0_161, %c0_162] : memref<32x128xbf16, #tpu.memory_space<vmem>>, vector<32x128xbf16>
    %cst_163 = arith.constant dense<0.000000e+00> : vector<16x128xf32>
    %390 = tpu.matmul %350, %389, %cst_163 {dimension_numbers = #tpu.dot_dimension_numbers<[1], [0], [0], [1], [0, 0, 1, 1], [], []>} : vector<16x32xbf16>, vector<32x128xbf16>, vector<16x128xf32> -> vector<16x128xf32>
    %391 = arith.addf %388, %390 : vector<16x128xf32>
    %c0_164 = arith.constant 0 : index
    %c0_165 = arith.constant 0 : index
    %392 = vector.load %arg6[%c0_164, %c0_165] : memref<1x128xf32, #tpu.memory_space<vmem>>, vector<1x128xf32>
    %393 = vector.broadcast %392 : vector<1x128xf32> to vector<16x128xf32>
    %394 = arith.addf %391, %393 : vector<16x128xf32>
    %395 = vector.extract_strided_slice %394 {offsets = [0, 0], sizes = [16, 32], strides = [1, 1]} : vector<16x128xf32> to vector<16x32xf32>
    %cst_166 = arith.constant 5.000000e-01 : f32
    %396 = vector.broadcast %cst_166 : f32 to vector<16x32xf32>
    %397 = arith.mulf %396, %395 : vector<16x32xf32>
    %398 = math.tanh %397 : vector<16x32xf32>
    %cst_167 = arith.constant 5.000000e-01 : f32
    %399 = vector.broadcast %cst_167 : f32 to vector<16x32xf32>
    %400 = arith.mulf %399, %398 : vector<16x32xf32>
    %cst_168 = arith.constant 5.000000e-01 : f32
    %401 = vector.broadcast %cst_168 : f32 to vector<16x32xf32>
    %402 = arith.addf %400, %401 : vector<16x32xf32>
    %403 = vector.extract_strided_slice %394 {offsets = [0, 32], sizes = [16, 32], strides = [1, 1]} : vector<16x128xf32> to vector<16x32xf32>
    %cst_169 = arith.constant 5.000000e-01 : f32
    %404 = vector.broadcast %cst_169 : f32 to vector<16x32xf32>
    %405 = arith.mulf %404, %403 : vector<16x32xf32>
    %406 = math.tanh %405 : vector<16x32xf32>
    %cst_170 = arith.constant 5.000000e-01 : f32
    %407 = vector.broadcast %cst_170 : f32 to vector<16x32xf32>
    %408 = arith.mulf %407, %406 : vector<16x32xf32>
    %cst_171 = arith.constant 5.000000e-01 : f32
    %409 = vector.broadcast %cst_171 : f32 to vector<16x32xf32>
    %410 = arith.addf %408, %409 : vector<16x32xf32>
    %411 = vector.extract_strided_slice %394 {offsets = [0, 64], sizes = [16, 32], strides = [1, 1]} : vector<16x128xf32> to vector<16x32xf32>
    %412 = math.tanh %411 : vector<16x32xf32>
    %413 = vector.extract_strided_slice %394 {offsets = [0, 96], sizes = [16, 32], strides = [1, 1]} : vector<16x128xf32> to vector<16x32xf32>
    %cst_172 = arith.constant 5.000000e-01 : f32
    %414 = vector.broadcast %cst_172 : f32 to vector<16x32xf32>
    %415 = arith.mulf %414, %413 : vector<16x32xf32>
    %416 = math.tanh %415 : vector<16x32xf32>
    %cst_173 = arith.constant 5.000000e-01 : f32
    %417 = vector.broadcast %cst_173 : f32 to vector<16x32xf32>
    %418 = arith.mulf %417, %416 : vector<16x32xf32>
    %cst_174 = arith.constant 5.000000e-01 : f32
    %419 = vector.broadcast %cst_174 : f32 to vector<16x32xf32>
    %420 = arith.addf %418, %419 : vector<16x32xf32>
    %421 = arith.mulf %410, %347 : vector<16x32xf32>
    %422 = arith.mulf %402, %412 : vector<16x32xf32>
    %423 = arith.addf %421, %422 : vector<16x32xf32>
    %424 = math.tanh %423 : vector<16x32xf32>
    %425 = arith.mulf %420, %424 : vector<16x32xf32>
    %426 = arith.truncf %425 : vector<16x32xf32> to vector<16x32xbf16>
    %c96 = arith.constant 96 : index
    %c0_175 = arith.constant 0 : index
    %427 = vector.load %arg12[%c96, %c0_175] : memref<128x128xf32, #tpu.memory_space<vmem>>, vector<16x128xf32>
    %c0_176 = arith.constant 0 : index
    %c0_177 = arith.constant 0 : index
    %428 = vector.load %arg2[%c0_176, %c0_177] : memref<32x128xbf16, #tpu.memory_space<vmem>>, vector<32x128xbf16>
    %cst_178 = arith.constant dense<0.000000e+00> : vector<16x128xf32>
    %429 = tpu.matmul %386, %428, %cst_178 {dimension_numbers = #tpu.dot_dimension_numbers<[1], [0], [0], [1], [0, 0, 1, 1], [], []>} : vector<16x32xbf16>, vector<32x128xbf16>, vector<16x128xf32> -> vector<16x128xf32>
    %430 = arith.addf %427, %429 : vector<16x128xf32>
    %431 = vector.extract_strided_slice %430 {offsets = [0, 0], sizes = [16, 32], strides = [1, 1]} : vector<16x128xf32> to vector<16x32xf32>
    %cst_179 = arith.constant 5.000000e-01 : f32
    %432 = vector.broadcast %cst_179 : f32 to vector<16x32xf32>
    %433 = arith.mulf %432, %431 : vector<16x32xf32>
    %434 = math.tanh %433 : vector<16x32xf32>
    %cst_180 = arith.constant 5.000000e-01 : f32
    %435 = vector.broadcast %cst_180 : f32 to vector<16x32xf32>
    %436 = arith.mulf %435, %434 : vector<16x32xf32>
    %cst_181 = arith.constant 5.000000e-01 : f32
    %437 = vector.broadcast %cst_181 : f32 to vector<16x32xf32>
    %438 = arith.addf %436, %437 : vector<16x32xf32>
    %439 = vector.extract_strided_slice %430 {offsets = [0, 32], sizes = [16, 32], strides = [1, 1]} : vector<16x128xf32> to vector<16x32xf32>
    %cst_182 = arith.constant 5.000000e-01 : f32
    %440 = vector.broadcast %cst_182 : f32 to vector<16x32xf32>
    %441 = arith.mulf %440, %439 : vector<16x32xf32>
    %442 = math.tanh %441 : vector<16x32xf32>
    %cst_183 = arith.constant 5.000000e-01 : f32
    %443 = vector.broadcast %cst_183 : f32 to vector<16x32xf32>
    %444 = arith.mulf %443, %442 : vector<16x32xf32>
    %cst_184 = arith.constant 5.000000e-01 : f32
    %445 = vector.broadcast %cst_184 : f32 to vector<16x32xf32>
    %446 = arith.addf %444, %445 : vector<16x32xf32>
    %447 = vector.extract_strided_slice %430 {offsets = [0, 64], sizes = [16, 32], strides = [1, 1]} : vector<16x128xf32> to vector<16x32xf32>
    %448 = math.tanh %447 : vector<16x32xf32>
    %449 = vector.extract_strided_slice %430 {offsets = [0, 96], sizes = [16, 32], strides = [1, 1]} : vector<16x128xf32> to vector<16x32xf32>
    %cst_185 = arith.constant 5.000000e-01 : f32
    %450 = vector.broadcast %cst_185 : f32 to vector<16x32xf32>
    %451 = arith.mulf %450, %449 : vector<16x32xf32>
    %452 = math.tanh %451 : vector<16x32xf32>
    %cst_186 = arith.constant 5.000000e-01 : f32
    %453 = vector.broadcast %cst_186 : f32 to vector<16x32xf32>
    %454 = arith.mulf %453, %452 : vector<16x32xf32>
    %cst_187 = arith.constant 5.000000e-01 : f32
    %455 = vector.broadcast %cst_187 : f32 to vector<16x32xf32>
    %456 = arith.addf %454, %455 : vector<16x32xf32>
    %457 = arith.mulf %446, %383 : vector<16x32xf32>
    %458 = arith.mulf %438, %448 : vector<16x32xf32>
    %459 = arith.addf %457, %458 : vector<16x32xf32>
    %460 = math.tanh %459 : vector<16x32xf32>
    %461 = arith.mulf %456, %460 : vector<16x32xf32>
    %462 = arith.truncf %461 : vector<16x32xf32> to vector<16x32xbf16>
    %c0_188 = arith.constant 0 : index
    %c0_189 = arith.constant 0 : index
    %463 = vector.load %arg4[%c0_188, %c0_189] : memref<32x128xbf16, #tpu.memory_space<vmem>>, vector<32x128xbf16>
    %cst_190 = arith.constant dense<0.000000e+00> : vector<16x128xf32>
    %464 = tpu.matmul %386, %463, %cst_190 {dimension_numbers = #tpu.dot_dimension_numbers<[1], [0], [0], [1], [0, 0, 1, 1], [], []>} : vector<16x32xbf16>, vector<32x128xbf16>, vector<16x128xf32> -> vector<16x128xf32>
    %c0_191 = arith.constant 0 : index
    %c0_192 = arith.constant 0 : index
    %465 = vector.load %arg5[%c0_191, %c0_192] : memref<32x128xbf16, #tpu.memory_space<vmem>>, vector<32x128xbf16>
    %cst_193 = arith.constant dense<0.000000e+00> : vector<16x128xf32>
    %466 = tpu.matmul %426, %465, %cst_193 {dimension_numbers = #tpu.dot_dimension_numbers<[1], [0], [0], [1], [0, 0, 1, 1], [], []>} : vector<16x32xbf16>, vector<32x128xbf16>, vector<16x128xf32> -> vector<16x128xf32>
    %467 = arith.addf %464, %466 : vector<16x128xf32>
    %c0_194 = arith.constant 0 : index
    %c0_195 = arith.constant 0 : index
    %468 = vector.load %arg6[%c0_194, %c0_195] : memref<1x128xf32, #tpu.memory_space<vmem>>, vector<1x128xf32>
    %469 = vector.broadcast %468 : vector<1x128xf32> to vector<16x128xf32>
    %470 = arith.addf %467, %469 : vector<16x128xf32>
    %471 = vector.extract_strided_slice %470 {offsets = [0, 0], sizes = [16, 32], strides = [1, 1]} : vector<16x128xf32> to vector<16x32xf32>
    %cst_196 = arith.constant 5.000000e-01 : f32
    %472 = vector.broadcast %cst_196 : f32 to vector<16x32xf32>
    %473 = arith.mulf %472, %471 : vector<16x32xf32>
    %474 = math.tanh %473 : vector<16x32xf32>
    %cst_197 = arith.constant 5.000000e-01 : f32
    %475 = vector.broadcast %cst_197 : f32 to vector<16x32xf32>
    %476 = arith.mulf %475, %474 : vector<16x32xf32>
    %cst_198 = arith.constant 5.000000e-01 : f32
    %477 = vector.broadcast %cst_198 : f32 to vector<16x32xf32>
    %478 = arith.addf %476, %477 : vector<16x32xf32>
    %479 = vector.extract_strided_slice %470 {offsets = [0, 32], sizes = [16, 32], strides = [1, 1]} : vector<16x128xf32> to vector<16x32xf32>
    %cst_199 = arith.constant 5.000000e-01 : f32
    %480 = vector.broadcast %cst_199 : f32 to vector<16x32xf32>
    %481 = arith.mulf %480, %479 : vector<16x32xf32>
    %482 = math.tanh %481 : vector<16x32xf32>
    %cst_200 = arith.constant 5.000000e-01 : f32
    %483 = vector.broadcast %cst_200 : f32 to vector<16x32xf32>
    %484 = arith.mulf %483, %482 : vector<16x32xf32>
    %cst_201 = arith.constant 5.000000e-01 : f32
    %485 = vector.broadcast %cst_201 : f32 to vector<16x32xf32>
    %486 = arith.addf %484, %485 : vector<16x32xf32>
    %487 = vector.extract_strided_slice %470 {offsets = [0, 64], sizes = [16, 32], strides = [1, 1]} : vector<16x128xf32> to vector<16x32xf32>
    %488 = math.tanh %487 : vector<16x32xf32>
    %489 = vector.extract_strided_slice %470 {offsets = [0, 96], sizes = [16, 32], strides = [1, 1]} : vector<16x128xf32> to vector<16x32xf32>
    %cst_202 = arith.constant 5.000000e-01 : f32
    %490 = vector.broadcast %cst_202 : f32 to vector<16x32xf32>
    %491 = arith.mulf %490, %489 : vector<16x32xf32>
    %492 = math.tanh %491 : vector<16x32xf32>
    %cst_203 = arith.constant 5.000000e-01 : f32
    %493 = vector.broadcast %cst_203 : f32 to vector<16x32xf32>
    %494 = arith.mulf %493, %492 : vector<16x32xf32>
    %cst_204 = arith.constant 5.000000e-01 : f32
    %495 = vector.broadcast %cst_204 : f32 to vector<16x32xf32>
    %496 = arith.addf %494, %495 : vector<16x32xf32>
    %497 = arith.mulf %486, %423 : vector<16x32xf32>
    %498 = arith.mulf %478, %488 : vector<16x32xf32>
    %499 = arith.addf %497, %498 : vector<16x32xf32>
    %500 = math.tanh %499 : vector<16x32xf32>
    %501 = arith.mulf %496, %500 : vector<16x32xf32>
    %502 = arith.truncf %501 : vector<16x32xf32> to vector<16x32xbf16>
    %c112 = arith.constant 112 : index
    %c0_205 = arith.constant 0 : index
    %503 = vector.load %arg12[%c112, %c0_205] : memref<128x128xf32, #tpu.memory_space<vmem>>, vector<16x128xf32>
    %c0_206 = arith.constant 0 : index
    %c0_207 = arith.constant 0 : index
    %504 = vector.load %arg2[%c0_206, %c0_207] : memref<32x128xbf16, #tpu.memory_space<vmem>>, vector<32x128xbf16>
    %cst_208 = arith.constant dense<0.000000e+00> : vector<16x128xf32>
    %505 = tpu.matmul %462, %504, %cst_208 {dimension_numbers = #tpu.dot_dimension_numbers<[1], [0], [0], [1], [0, 0, 1, 1], [], []>} : vector<16x32xbf16>, vector<32x128xbf16>, vector<16x128xf32> -> vector<16x128xf32>
    %506 = arith.addf %503, %505 : vector<16x128xf32>
    %507 = vector.extract_strided_slice %506 {offsets = [0, 0], sizes = [16, 32], strides = [1, 1]} : vector<16x128xf32> to vector<16x32xf32>
    %cst_209 = arith.constant 5.000000e-01 : f32
    %508 = vector.broadcast %cst_209 : f32 to vector<16x32xf32>
    %509 = arith.mulf %508, %507 : vector<16x32xf32>
    %510 = math.tanh %509 : vector<16x32xf32>
    %cst_210 = arith.constant 5.000000e-01 : f32
    %511 = vector.broadcast %cst_210 : f32 to vector<16x32xf32>
    %512 = arith.mulf %511, %510 : vector<16x32xf32>
    %cst_211 = arith.constant 5.000000e-01 : f32
    %513 = vector.broadcast %cst_211 : f32 to vector<16x32xf32>
    %514 = arith.addf %512, %513 : vector<16x32xf32>
    %515 = vector.extract_strided_slice %506 {offsets = [0, 32], sizes = [16, 32], strides = [1, 1]} : vector<16x128xf32> to vector<16x32xf32>
    %cst_212 = arith.constant 5.000000e-01 : f32
    %516 = vector.broadcast %cst_212 : f32 to vector<16x32xf32>
    %517 = arith.mulf %516, %515 : vector<16x32xf32>
    %518 = math.tanh %517 : vector<16x32xf32>
    %cst_213 = arith.constant 5.000000e-01 : f32
    %519 = vector.broadcast %cst_213 : f32 to vector<16x32xf32>
    %520 = arith.mulf %519, %518 : vector<16x32xf32>
    %cst_214 = arith.constant 5.000000e-01 : f32
    %521 = vector.broadcast %cst_214 : f32 to vector<16x32xf32>
    %522 = arith.addf %520, %521 : vector<16x32xf32>
    %523 = vector.extract_strided_slice %506 {offsets = [0, 64], sizes = [16, 32], strides = [1, 1]} : vector<16x128xf32> to vector<16x32xf32>
    %524 = math.tanh %523 : vector<16x32xf32>
    %525 = vector.extract_strided_slice %506 {offsets = [0, 96], sizes = [16, 32], strides = [1, 1]} : vector<16x128xf32> to vector<16x32xf32>
    %cst_215 = arith.constant 5.000000e-01 : f32
    %526 = vector.broadcast %cst_215 : f32 to vector<16x32xf32>
    %527 = arith.mulf %526, %525 : vector<16x32xf32>
    %528 = math.tanh %527 : vector<16x32xf32>
    %cst_216 = arith.constant 5.000000e-01 : f32
    %529 = vector.broadcast %cst_216 : f32 to vector<16x32xf32>
    %530 = arith.mulf %529, %528 : vector<16x32xf32>
    %cst_217 = arith.constant 5.000000e-01 : f32
    %531 = vector.broadcast %cst_217 : f32 to vector<16x32xf32>
    %532 = arith.addf %530, %531 : vector<16x32xf32>
    %533 = arith.mulf %522, %459 : vector<16x32xf32>
    %534 = arith.mulf %514, %524 : vector<16x32xf32>
    %535 = arith.addf %533, %534 : vector<16x32xf32>
    %536 = math.tanh %535 : vector<16x32xf32>
    %537 = arith.mulf %532, %536 : vector<16x32xf32>
    %538 = arith.truncf %537 : vector<16x32xf32> to vector<16x32xbf16>
    %c0_218 = arith.constant 0 : index
    %c0_219 = arith.constant 0 : index
    %539 = vector.load %arg4[%c0_218, %c0_219] : memref<32x128xbf16, #tpu.memory_space<vmem>>, vector<32x128xbf16>
    %cst_220 = arith.constant dense<0.000000e+00> : vector<16x128xf32>
    %540 = tpu.matmul %462, %539, %cst_220 {dimension_numbers = #tpu.dot_dimension_numbers<[1], [0], [0], [1], [0, 0, 1, 1], [], []>} : vector<16x32xbf16>, vector<32x128xbf16>, vector<16x128xf32> -> vector<16x128xf32>
    %c0_221 = arith.constant 0 : index
    %c0_222 = arith.constant 0 : index
    %541 = vector.load %arg5[%c0_221, %c0_222] : memref<32x128xbf16, #tpu.memory_space<vmem>>, vector<32x128xbf16>
    %cst_223 = arith.constant dense<0.000000e+00> : vector<16x128xf32>
    %542 = tpu.matmul %502, %541, %cst_223 {dimension_numbers = #tpu.dot_dimension_numbers<[1], [0], [0], [1], [0, 0, 1, 1], [], []>} : vector<16x32xbf16>, vector<32x128xbf16>, vector<16x128xf32> -> vector<16x128xf32>
    %543 = arith.addf %540, %542 : vector<16x128xf32>
    %c0_224 = arith.constant 0 : index
    %c0_225 = arith.constant 0 : index
    %544 = vector.load %arg6[%c0_224, %c0_225] : memref<1x128xf32, #tpu.memory_space<vmem>>, vector<1x128xf32>
    %545 = vector.broadcast %544 : vector<1x128xf32> to vector<16x128xf32>
    %546 = arith.addf %543, %545 : vector<16x128xf32>
    %547 = vector.extract_strided_slice %546 {offsets = [0, 0], sizes = [16, 32], strides = [1, 1]} : vector<16x128xf32> to vector<16x32xf32>
    %cst_226 = arith.constant 5.000000e-01 : f32
    %548 = vector.broadcast %cst_226 : f32 to vector<16x32xf32>
    %549 = arith.mulf %548, %547 : vector<16x32xf32>
    %550 = math.tanh %549 : vector<16x32xf32>
    %cst_227 = arith.constant 5.000000e-01 : f32
    %551 = vector.broadcast %cst_227 : f32 to vector<16x32xf32>
    %552 = arith.mulf %551, %550 : vector<16x32xf32>
    %cst_228 = arith.constant 5.000000e-01 : f32
    %553 = vector.broadcast %cst_228 : f32 to vector<16x32xf32>
    %554 = arith.addf %552, %553 : vector<16x32xf32>
    %555 = vector.extract_strided_slice %546 {offsets = [0, 32], sizes = [16, 32], strides = [1, 1]} : vector<16x128xf32> to vector<16x32xf32>
    %cst_229 = arith.constant 5.000000e-01 : f32
    %556 = vector.broadcast %cst_229 : f32 to vector<16x32xf32>
    %557 = arith.mulf %556, %555 : vector<16x32xf32>
    %558 = math.tanh %557 : vector<16x32xf32>
    %cst_230 = arith.constant 5.000000e-01 : f32
    %559 = vector.broadcast %cst_230 : f32 to vector<16x32xf32>
    %560 = arith.mulf %559, %558 : vector<16x32xf32>
    %cst_231 = arith.constant 5.000000e-01 : f32
    %561 = vector.broadcast %cst_231 : f32 to vector<16x32xf32>
    %562 = arith.addf %560, %561 : vector<16x32xf32>
    %563 = vector.extract_strided_slice %546 {offsets = [0, 64], sizes = [16, 32], strides = [1, 1]} : vector<16x128xf32> to vector<16x32xf32>
    %564 = math.tanh %563 : vector<16x32xf32>
    %565 = vector.extract_strided_slice %546 {offsets = [0, 96], sizes = [16, 32], strides = [1, 1]} : vector<16x128xf32> to vector<16x32xf32>
    %cst_232 = arith.constant 5.000000e-01 : f32
    %566 = vector.broadcast %cst_232 : f32 to vector<16x32xf32>
    %567 = arith.mulf %566, %565 : vector<16x32xf32>
    %568 = math.tanh %567 : vector<16x32xf32>
    %cst_233 = arith.constant 5.000000e-01 : f32
    %569 = vector.broadcast %cst_233 : f32 to vector<16x32xf32>
    %570 = arith.mulf %569, %568 : vector<16x32xf32>
    %cst_234 = arith.constant 5.000000e-01 : f32
    %571 = vector.broadcast %cst_234 : f32 to vector<16x32xf32>
    %572 = arith.addf %570, %571 : vector<16x32xf32>
    %573 = arith.mulf %562, %499 : vector<16x32xf32>
    %574 = arith.mulf %554, %564 : vector<16x32xf32>
    %575 = arith.addf %573, %574 : vector<16x32xf32>
    %576 = math.tanh %575 : vector<16x32xf32>
    %577 = arith.mulf %572, %576 : vector<16x32xf32>
    %578 = arith.truncf %577 : vector<16x32xf32> to vector<16x32xbf16>
    %c0_235 = arith.constant 0 : index
    %c0_236 = arith.constant 0 : index
    %579 = vector.load %arg4[%c0_235, %c0_236] : memref<32x128xbf16, #tpu.memory_space<vmem>>, vector<32x128xbf16>
    %cst_237 = arith.constant dense<0.000000e+00> : vector<16x128xf32>
    %580 = tpu.matmul %538, %579, %cst_237 {dimension_numbers = #tpu.dot_dimension_numbers<[1], [0], [0], [1], [0, 0, 1, 1], [], []>} : vector<16x32xbf16>, vector<32x128xbf16>, vector<16x128xf32> -> vector<16x128xf32>
    %c0_238 = arith.constant 0 : index
    %c0_239 = arith.constant 0 : index
    %581 = vector.load %arg5[%c0_238, %c0_239] : memref<32x128xbf16, #tpu.memory_space<vmem>>, vector<32x128xbf16>
    %cst_240 = arith.constant dense<0.000000e+00> : vector<16x128xf32>
    %582 = tpu.matmul %578, %581, %cst_240 {dimension_numbers = #tpu.dot_dimension_numbers<[1], [0], [0], [1], [0, 0, 1, 1], [], []>} : vector<16x32xbf16>, vector<32x128xbf16>, vector<16x128xf32> -> vector<16x128xf32>
    %583 = arith.addf %580, %582 : vector<16x128xf32>
    %c0_241 = arith.constant 0 : index
    %c0_242 = arith.constant 0 : index
    %584 = vector.load %arg6[%c0_241, %c0_242] : memref<1x128xf32, #tpu.memory_space<vmem>>, vector<1x128xf32>
    %585 = vector.broadcast %584 : vector<1x128xf32> to vector<16x128xf32>
    %586 = arith.addf %583, %585 : vector<16x128xf32>
    %587 = vector.extract_strided_slice %586 {offsets = [0, 0], sizes = [16, 32], strides = [1, 1]} : vector<16x128xf32> to vector<16x32xf32>
    %cst_243 = arith.constant 5.000000e-01 : f32
    %588 = vector.broadcast %cst_243 : f32 to vector<16x32xf32>
    %589 = arith.mulf %588, %587 : vector<16x32xf32>
    %590 = math.tanh %589 : vector<16x32xf32>
    %cst_244 = arith.constant 5.000000e-01 : f32
    %591 = vector.broadcast %cst_244 : f32 to vector<16x32xf32>
    %592 = arith.mulf %591, %590 : vector<16x32xf32>
    %cst_245 = arith.constant 5.000000e-01 : f32
    %593 = vector.broadcast %cst_245 : f32 to vector<16x32xf32>
    %594 = arith.addf %592, %593 : vector<16x32xf32>
    %595 = vector.extract_strided_slice %586 {offsets = [0, 32], sizes = [16, 32], strides = [1, 1]} : vector<16x128xf32> to vector<16x32xf32>
    %cst_246 = arith.constant 5.000000e-01 : f32
    %596 = vector.broadcast %cst_246 : f32 to vector<16x32xf32>
    %597 = arith.mulf %596, %595 : vector<16x32xf32>
    %598 = math.tanh %597 : vector<16x32xf32>
    %cst_247 = arith.constant 5.000000e-01 : f32
    %599 = vector.broadcast %cst_247 : f32 to vector<16x32xf32>
    %600 = arith.mulf %599, %598 : vector<16x32xf32>
    %cst_248 = arith.constant 5.000000e-01 : f32
    %601 = vector.broadcast %cst_248 : f32 to vector<16x32xf32>
    %602 = arith.addf %600, %601 : vector<16x32xf32>
    %603 = vector.extract_strided_slice %586 {offsets = [0, 64], sizes = [16, 32], strides = [1, 1]} : vector<16x128xf32> to vector<16x32xf32>
    %604 = math.tanh %603 : vector<16x32xf32>
    %605 = vector.extract_strided_slice %586 {offsets = [0, 96], sizes = [16, 32], strides = [1, 1]} : vector<16x128xf32> to vector<16x32xf32>
    %cst_249 = arith.constant 5.000000e-01 : f32
    %606 = vector.broadcast %cst_249 : f32 to vector<16x32xf32>
    %607 = arith.mulf %606, %605 : vector<16x32xf32>
    %608 = math.tanh %607 : vector<16x32xf32>
    %cst_250 = arith.constant 5.000000e-01 : f32
    %609 = vector.broadcast %cst_250 : f32 to vector<16x32xf32>
    %610 = arith.mulf %609, %608 : vector<16x32xf32>
    %cst_251 = arith.constant 5.000000e-01 : f32
    %611 = vector.broadcast %cst_251 : f32 to vector<16x32xf32>
    %612 = arith.addf %610, %611 : vector<16x32xf32>
    %613 = arith.mulf %602, %575 : vector<16x32xf32>
    %614 = arith.mulf %594, %604 : vector<16x32xf32>
    %615 = arith.addf %613, %614 : vector<16x32xf32>
    %616 = math.tanh %615 : vector<16x32xf32>
    %617 = arith.mulf %612, %616 : vector<16x32xf32>
    %618 = arith.truncf %617 : vector<16x32xf32> to vector<16x32xbf16>
    %c0_252 = arith.constant 0 : index
    %c0_253 = arith.constant 0 : index
    %619 = vector.load %arg7[%c0_252, %c0_253] : memref<32x32xbf16, #tpu.memory_space<vmem>>, vector<32x32xbf16>
    %cst_254 = arith.constant dense<0.000000e+00> : vector<16x32xf32>
    %620 = tpu.matmul %618, %619, %cst_254 {dimension_numbers = #tpu.dot_dimension_numbers<[1], [0], [0], [1], [0, 0, 1, 1], [], []>} : vector<16x32xbf16>, vector<32x32xbf16>, vector<16x32xf32> -> vector<16x32xf32>
    %c0_255 = arith.constant 0 : index
    %c0_256 = arith.constant 0 : index
    %621 = vector.load %arg8[%c0_255, %c0_256] : memref<1x32xf32, #tpu.memory_space<vmem>>, vector<1x32xf32>
    %622 = vector.broadcast %621 : vector<1x32xf32> to vector<16x32xf32>
    %623 = arith.addf %620, %622 : vector<16x32xf32>
    %cst_257 = arith.constant 0.000000e+00 : f32
    %624 = vector.broadcast %cst_257 : f32 to vector<16x32xf32>
    %625 = arith.maximumf %623, %624 : vector<16x32xf32>
    %626 = arith.truncf %625 : vector<16x32xf32> to vector<16x32xbf16>
    %c0_258 = arith.constant 0 : index
    %c0_259 = arith.constant 0 : index
    %627 = vector.load %arg9[%c0_258, %c0_259] : memref<32x8xbf16, #tpu.memory_space<vmem>>, vector<32x8xbf16>
    %cst_260 = arith.constant dense<0.000000e+00> : vector<16x8xf32>
    %628 = tpu.matmul %626, %627, %cst_260 {dimension_numbers = #tpu.dot_dimension_numbers<[1], [0], [0], [1], [0, 0, 1, 1], [], []>} : vector<16x32xbf16>, vector<32x8xbf16>, vector<16x8xf32> -> vector<16x8xf32>
    %c0_261 = arith.constant 0 : index
    %c0_262 = arith.constant 0 : index
    %629 = vector.load %arg10[%c0_261, %c0_262] : memref<1x8xf32, #tpu.memory_space<vmem>>, vector<1x8xf32>
    %630 = vector.broadcast %629 : vector<1x8xf32> to vector<16x8xf32>
    %631 = arith.addf %628, %630 : vector<16x8xf32>
    %c0_263 = arith.constant 0 : index
    %c0_264 = arith.constant 0 : index
    %632 = vector.load %arg11[%c0_263, %c0_264] : memref<16x8xf32, #tpu.memory_space<vmem>>, vector<16x8xf32>
    tpu.vector_store %arg11[%c0_263, %c0_264], %631 {strides = array<i32>} : memref<16x8xf32, #tpu.memory_space<vmem>>, vector<16x8xf32>,
    return
  }
}

</mosaic_0001>

<llo_original>
// kernel: lstm_model_forward.1
$region0: #{lstm_model_forward.1}
  #allocation0 [shape = 'u32[]', space=smem, size = 0x4, offset = 0x4, fixed_abs, tag = 'smem constant byte address 0x4 - core index']
  #allocation1 [shape = 'u32[144,128]{1,0:T(1,128)}', space=vmem, size = 0x12000, scoped, tag = 'internal scratch']
  #allocation2 [shape = 'f32[128,128]{1,0:T(8,128)}', space=vmem, size = 0x10000, scoped, tag = 'scratch operand']
  %s0 = inlined_call_operand.vmem [shape: bf16[128,16], index: 0, kind: input, shape index: {}]
  %s1 = inlined_call_operand.vmem [shape: bf16[16,128], index: 1, kind: input, shape index: {}]
  %s2 = inlined_call_operand.vmem [shape: bf16[32,128], index: 2, kind: input, shape index: {}]
  %s3 = inlined_call_operand.vmem [shape: f32[1,128], index: 3, kind: input, shape index: {}]
  %s4 = inlined_call_operand.vmem [shape: bf16[32,128], index: 4, kind: input, shape index: {}]
  %s5 = inlined_call_operand.vmem [shape: bf16[32,128], index: 5, kind: input, shape index: {}]
  %s6 = inlined_call_operand.vmem [shape: f32[1,128], index: 6, kind: input, shape index: {}]
  %s7 = inlined_call_operand.vmem [shape: bf16[32,32], index: 7, kind: input, shape index: {}]
  %s8 = inlined_call_operand.vmem [shape: f32[1,32], index: 8, kind: input, shape index: {}]
  %s9 = inlined_call_operand.vmem [shape: bf16[32,8], index: 9, kind: input, shape index: {}]
  %s10 = inlined_call_operand.vmem [shape: f32[1,8], index: 10, kind: input, shape index: {}]
  %s11 = inlined_call_operand.vmem [shape: f32[16,8], index: 11, kind: output, shape index: {}]
  %s12 = sld [smem:[#allocation0]]
  $region54: #{lstm_model_forward.1} parent=0
    _
  %s14 = ssub.s32 1, %s12
  %s15 = scalar_select 0, %s14, %s12
  // Predicated region
  $region2: #{lstm_model_forward.1} parent=0 // pred_check
    _
  $region3: #{lstm_model_forward.1} parent=0 // pred_check_branch
    %17 = sbr.rel (0) target = $region5
  $region4: #{lstm_model_forward.1} parent=0 // pred_region
    _
  $region5: #{lstm_model_forward.1} parent=0 // pred_fallthru
    _
  // Predicated region
  $region6: #{lstm_model_forward.1} parent=0 // pred_check
    _
  $region7: #{lstm_model_forward.1} parent=0 // pred_check_branch
    %19 = sbr.rel (0) target = $region9
  $region8: #{lstm_model_forward.1} parent=0 // pred_region
    _
  $region9: #{lstm_model_forward.1} parent=0 // pred_fallthru
    _
  // Predicated region
  $region10: #{lstm_model_forward.1} parent=0 // pred_check
    _
  $region11: #{lstm_model_forward.1} parent=0 // pred_check_branch
    %21 = sbr.rel (0) target = $region13
  $region12: #{lstm_model_forward.1} parent=0 // pred_region
    _
  $region13: #{lstm_model_forward.1} parent=0 // pred_fallthru
    _
  // Predicated region
  $region14: #{lstm_model_forward.1} parent=0 // pred_check
    _
  $region15: #{lstm_model_forward.1} parent=0 // pred_check_branch
    %23 = sbr.rel (0) target = $region17
  $region16: #{lstm_model_forward.1} parent=0 // pred_region
    _
  $region17: #{lstm_model_forward.1} parent=0 // pred_fallthru
    _
  // Predicated region
  $region18: #{lstm_model_forward.1} parent=0 // pred_check
    _
  $region19: #{lstm_model_forward.1} parent=0 // pred_check_branch
    %25 = sbr.rel (0) target = $region21
  $region20: #{lstm_model_forward.1} parent=0 // pred_region
    _
  $region21: #{lstm_model_forward.1} parent=0 // pred_fallthru
    _
  // Predicated region
  $region22: #{lstm_model_forward.1} parent=0 // pred_check
    _
  $region23: #{lstm_model_forward.1} parent=0 // pred_check_branch
    %27 = sbr.rel (0) target = $region25
  $region24: #{lstm_model_forward.1} parent=0 // pred_region
    _
  $region25: #{lstm_model_forward.1} parent=0 // pred_fallthru
    _
  // Predicated region
  $region26: #{lstm_model_forward.1} parent=0 // pred_check
    _
  $region27: #{lstm_model_forward.1} parent=0 // pred_check_branch
    %29 = sbr.rel (0) target = $region29
  $region28: #{lstm_model_forward.1} parent=0 // pred_region
    _
  $region29: #{lstm_model_forward.1} parent=0 // pred_fallthru
    _
  // Predicated region
  $region30: #{lstm_model_forward.1} parent=0 // pred_check
    _
  $region31: #{lstm_model_forward.1} parent=0 // pred_check_branch
    %31 = sbr.rel (0) target = $region33
  $region32: #{lstm_model_forward.1} parent=0 // pred_region
    _
  $region33: #{lstm_model_forward.1} parent=0 // pred_fallthru
    _
  // Predicated region
  $region34: #{lstm_model_forward.1} parent=0 // pred_check
    _
  $region35: #{lstm_model_forward.1} parent=0 // pred_check_branch
    %33 = sbr.rel (0) target = $region37
  $region36: #{lstm_model_forward.1} parent=0 // pred_region
    _
  $region37: #{lstm_model_forward.1} parent=0 // pred_fallthru
    _
  // Predicated region
  $region38: #{lstm_model_forward.1} parent=0 // pred_check
    _
  $region39: #{lstm_model_forward.1} parent=0 // pred_check_branch
    %35 = sbr.rel (0) target = $region41
  $region40: #{lstm_model_forward.1} parent=0 // pred_region
    _
  $region41: #{lstm_model_forward.1} parent=0 // pred_fallthru
    _
  // Predicated region
  $region42: #{lstm_model_forward.1} parent=0 // pred_check
    _
  $region43: #{lstm_model_forward.1} parent=0 // pred_check_branch
    %37 = sbr.rel (0) target = $region45
  $region44: #{lstm_model_forward.1} parent=0 // pred_region
    _
  $region45: #{lstm_model_forward.1} parent=0 // pred_fallthru
    _
  %v39 = vld [vmem:[%s0] sm:$0xf]
  %v40 = vld [vmem:[%s0 + $0x4] sm:$0xf]
  %v41 = vld [vmem:[%s0 + $0x8] sm:$0xf]
  %v42 = vld [vmem:[%s0 + $0xc] sm:$0xf]
  %v43 = vld [vmem:[%s0 + $0x10] sm:$0xf]
  %v44 = vld [vmem:[%s0 + $0x14] sm:$0xf]
  %v45 = vld [vmem:[%s0 + $0x18] sm:$0xf]
  %v46 = vld [vmem:[%s0 + $0x1c] sm:$0xf]
  %v47 = vld [vmem:[%s0 + $0x20] sm:$0xf]
  %v48 = vld [vmem:[%s0 + $0x24] sm:$0xf]
  %v49 = vld [vmem:[%s0 + $0x28] sm:$0xf]
  %v50 = vld [vmem:[%s0 + $0x2c] sm:$0xf]
  %v51 = vld [vmem:[%s0 + $0x30] sm:$0xf]
  %v52 = vld [vmem:[%s0 + $0x34] sm:$0xf]
  %v53 = vld [vmem:[%s0 + $0x38] sm:$0xf]
  %v54 = vld [vmem:[%s0 + $0x3c] sm:$0xf]
  %v55 = vld [vmem:[%s1] sm:$0xf]
  %v56 = vld [vmem:[%s1 + $0x4] sm:$0xf]
  %v57 = vld [vmem:[%s3] sm:$0x1]
  %v59 = vlaneseq
  %v60 = vshrl.u32 %v59, 7
  %v61 = vsub.s32 0, %v60
  %v62 = vrot.slane %v57, %v61
  %v80 = vunpack.c.l.b16 %v39
  %v81 = vunpack.c.l.b16 %v40
  %v82 = vunpack.c.l.b16 %v41
  %v83 = vunpack.c.l.b16 %v42
  %v84 = vunpack.c.l.b16 %v43
  %v85 = vunpack.c.l.b16 %v44
  %v86 = vunpack.c.l.b16 %v45
  %v87 = vunpack.c.l.b16 %v46
  %v88 = vunpack.c.l.b16 %v47
  %v89 = vunpack.c.l.b16 %v48
  %v90 = vunpack.c.l.b16 %v49
  %v91 = vunpack.c.l.b16 %v50
  %v92 = vunpack.c.l.b16 %v51
  %v93 = vunpack.c.l.b16 %v52
  %v94 = vunpack.c.l.b16 %v53
  %v95 = vunpack.c.l.b16 %v54
  %v96 = vpack.c.b16 %v81, %v80
  %v97 = vpack.c.b16 %v83, %v82
  %v98 = vpack.c.b16 %v85, %v84
  %v99 = vpack.c.b16 %v87, %v86
  %v100 = vpack.c.b16 %v89, %v88
  %v101 = vpack.c.b16 %v91, %v90
  %v102 = vpack.c.b16 %v93, %v92
  %v103 = vpack.c.b16 %v95, %v94
  %v106 = vunpack.c.l.b16 %v55
  %v107 = vunpack.c.l.b16 %v56
  %v108 = vpack.c.b16 %v107, %v106
  %vm110 = vcmask 130048
  %v112 = vsel %vm110, %v96, 0
  %v115 = vsel %vm110, %v97, 0
  %v118 = vsel %vm110, %v98, 0
  %v121 = vsel %vm110, %v99, 0
  %v124 = vsel %vm110, %v100, 0
  %v127 = vsel %vm110, %v101, 0
  %v130 = vsel %vm110, %v102, 0
  %v133 = vsel %vm110, %v103, 0
  %135 = vmatprep.subr.bf16.mxu0 0
  %136 = vmatpush1.bf16.msra.mxu0 %v108
  %137 = vmatprep.subr.bf16.mxu0 0
  %138 = vmatpush1.bf16.msra.mxu0 0
  %139 = vmatprep.subr.bf16.mxu0 0
  %140 = vmatpush1.bf16.msra.mxu0 0
  %141 = vmatprep.subr.bf16.mxu0 0
  %142 = vmatpush1.bf16.msra.mxu0 0
  %143 = vmatprep.subr.bf16.mxu0 0
  %144 = vmatpush1.bf16.msra.mxu0 0
  %145 = vmatprep.subr.bf16.mxu0 0
  %146 = vmatpush1.bf16.msra.mxu0 0
  %147 = vmatprep.subr.bf16.mxu0 0
  %148 = vmatpush1.bf16.msra.mxu0 0
  %149 = vmatprep.subr.bf16.mxu0 0
  %150 = vmatpush1.bf16.msra.mxu0 0
  %151 = vmatprep.subr.bf16.mxu0 0
  %152 = vmatpush1.bf16.msra.mxu0 0
  %153 = vmatprep.subr.bf16.mxu0 0
  %154 = vmatpush1.bf16.msra.mxu0 0
  %155 = vmatprep.subr.bf16.mxu0 0
  %156 = vmatpush1.bf16.msra.mxu0 0
  %157 = vmatprep.subr.bf16.mxu0 0
  %158 = vmatpush1.bf16.msra.mxu0 0
  %159 = vmatprep.subr.bf16.mxu0 0
  %160 = vmatpush1.bf16.msra.mxu0 0
  %161 = vmatprep.subr.bf16.mxu0 0
  %162 = vmatpush1.bf16.msra.mxu0 0
  %163 = vmatprep.subr.bf16.mxu0 0
  %164 = vmatpush1.bf16.msra.mxu0 0
  %165 = vmatprep.subr.bf16.mxu0 0
  %166 = vmatpush1.bf16.msra.mxu0 0
  %167 = vmatprep.mubr.bf16.mxu0 0
  %168 = vmatmul.mubr.bf16.gmra.mrb[0].mxu0 %v112
  %v169 = vpop.f32.mrb[0].mxu0
  %v170 = vadd.f32 %v62, %v169
  %v171 = vpop.f32.mrb[0].mxu0
  %v172 = vpop.f32.mrb[0].mxu0
  %v173 = vadd.f32 %v62, %v172
  %v174 = vpop.f32.mrb[0].mxu0
  %175 = vmatprep.mubr.bf16.mxu0 0
  %176 = vmatmul.mubr.bf16.gmra.mrb[0].mxu0 %v115
  %v177 = vpop.f32.mrb[0].mxu0
  %v178 = vadd.f32 %v62, %v177
  %v179 = vpop.f32.mrb[0].mxu0
  %v180 = vpop.f32.mrb[0].mxu0
  %v181 = vadd.f32 %v62, %v180
  %v182 = vpop.f32.mrb[0].mxu0
  %183 = vmatprep.mubr.bf16.mxu0 0
  %184 = vmatmul.mubr.bf16.gmra.mrb[0].mxu0 %v118
  %v185 = vpop.f32.mrb[0].mxu0
  %v186 = vadd.f32 %v62, %v185
  %v187 = vpop.f32.mrb[0].mxu0
  %v188 = vpop.f32.mrb[0].mxu0
  %v189 = vadd.f32 %v62, %v188
  %v190 = vpop.f32.mrb[0].mxu0
  %191 = vmatprep.mubr.bf16.mxu0 0
  %192 = vmatmul.mubr.bf16.gmra.mrb[0].mxu0 %v121
  %v193 = vpop.f32.mrb[0].mxu0
  %v194 = vadd.f32 %v62, %v193
  %v195 = vpop.f32.mrb[0].mxu0
  %v196 = vpop.f32.mrb[0].mxu0
  %v197 = vadd.f32 %v62, %v196
  %v198 = vpop.f32.mrb[0].mxu0
  %199 = vmatprep.mubr.bf16.mxu0 0
  %200 = vmatmul.mubr.bf16.gmra.mrb[0].mxu0 %v124
  %v201 = vpop.f32.mrb[0].mxu0
  %v202 = vadd.f32 %v62, %v201
  %v203 = vpop.f32.mrb[0].mxu0
  %v204 = vpop.f32.mrb[0].mxu0
  %v205 = vadd.f32 %v62, %v204
  %v206 = vpop.f32.mrb[0].mxu0
  %207 = vmatprep.mubr.bf16.mxu0 0
  %208 = vmatmul.mubr.bf16.gmra.mrb[0].mxu0 %v127
  %v209 = vpop.f32.mrb[0].mxu0
  %v210 = vadd.f32 %v62, %v209
  %v211 = vpop.f32.mrb[0].mxu0
  %v212 = vpop.f32.mrb[0].mxu0
  %v213 = vadd.f32 %v62, %v212
  %v214 = vpop.f32.mrb[0].mxu0
  %215 = vmatprep.mubr.bf16.mxu0 0
  %216 = vmatmul.mubr.bf16.gmra.mrb[0].mxu0 %v130
  %v217 = vpop.f32.mrb[0].mxu0
  %v218 = vadd.f32 %v62, %v217
  %v219 = vpop.f32.mrb[0].mxu0
  %v220 = vpop.f32.mrb[0].mxu0
  %v221 = vadd.f32 %v62, %v220
  %v222 = vpop.f32.mrb[0].mxu0
  %223 = vmatprep.mubr.bf16.mxu0 0
  %224 = vmatmul.mubr.bf16.gmra.mrb[0].mxu0 %v133
  %v225 = vpop.f32.mrb[0].mxu0
  %v226 = vadd.f32 %v62, %v225
  %v227 = vpop.f32.mrb[0].mxu0
  %v228 = vpop.f32.mrb[0].mxu0
  %v229 = vadd.f32 %v62, %v228
  %v230 = vpop.f32.mrb[0].mxu0
  %231 = vdwg.mxu0
  %232 = vst [vmem:[#allocation2] sm:$0xff] %v170
  %233 = vst [vmem:[#allocation2 + $0x8] sm:$0xff] %v173
  %234 = vst [vmem:[#allocation2 + $0x10] sm:$0xff] %v178
  %235 = vst [vmem:[#allocation2 + $0x18] sm:$0xff] %v181
  %236 = vst [vmem:[#allocation2 + $0x20] sm:$0xff] %v186
  %237 = vst [vmem:[#allocation2 + $0x28] sm:$0xff] %v189
  %238 = vst [vmem:[#allocation2 + $0x30] sm:$0xff] %v194
  %239 = vst [vmem:[#allocation2 + $0x38] sm:$0xff] %v197
  %240 = vst [vmem:[#allocation2 + $0x40] sm:$0xff] %v202
  %241 = vst [vmem:[#allocation2 + $0x48] sm:$0xff] %v205
  %242 = vst [vmem:[#allocation2 + $0x50] sm:$0xff] %v210
  %243 = vst [vmem:[#allocation2 + $0x58] sm:$0xff] %v213
  %244 = vst [vmem:[#allocation2 + $0x60] sm:$0xff] %v218
  %245 = vst [vmem:[#allocation2 + $0x68] sm:$0xff] %v221
  %246 = vst [vmem:[#allocation2 + $0x70] sm:$0xff] %v226
  %247 = vst [vmem:[#allocation2 + $0x78] sm:$0xff] %v229
  %v248 = vld [vmem:[#allocation2] sm:$0xff]
  %v249 = vld [vmem:[#allocation2 + $0x8] sm:$0xff]
  %v250 = vld [vmem:[%s2] sm:$0xf]
  %v251 = vld [vmem:[%s2 + $0x4] sm:$0xf]
  %v252 = vld [vmem:[%s2 + $0x8] sm:$0xf]
  %v253 = vld [vmem:[%s2 + $0xc] sm:$0xf]
  %v258 = vunpack.c.l.b16 %v250
  %v259 = vunpack.c.l.b16 %v251
  %v260 = vunpack.c.l.b16 %v252
  %v261 = vunpack.c.l.b16 %v253
  %v262 = vpack.c.b16 %v259, %v258
  %v263 = vpack.c.b16 %v261, %v260
  %vm266 = vcmask 261120
  %v268 = vsel %vm266, 0, 0
  %270 = vmatprep.subr.bf16.mxu0 0
  %271 = vmatpush1.bf16.msra.mxu0 %v262
  %272 = vmatprep.subr.bf16.mxu0 0
  %273 = vmatpush1.bf16.msra.mxu0 %v263
  %274 = vmatprep.subr.bf16.mxu0 0
  %275 = vmatpush1.bf16.msra.mxu0 0
  %276 = vmatprep.subr.bf16.mxu0 0
  %277 = vmatpush1.bf16.msra.mxu0 0
  %278 = vmatprep.subr.bf16.mxu0 0
  %279 = vmatpush1.bf16.msra.mxu0 0
  %280 = vmatprep.subr.bf16.mxu0 0
  %281 = vmatpush1.bf16.msra.mxu0 0
  %282 = vmatprep.subr.bf16.mxu0 0
  %283 = vmatpush1.bf16.msra.mxu0 0
  %284 = vmatprep.subr.bf16.mxu0 0
  %285 = vmatpush1.bf16.msra.mxu0 0
  %286 = vmatprep.subr.bf16.mxu0 0
  %287 = vmatpush1.bf16.msra.mxu0 0
  %288 = vmatprep.subr.bf16.mxu0 0
  %289 = vmatpush1.bf16.msra.mxu0 0
  %290 = vmatprep.subr.bf16.mxu0 0
  %291 = vmatpush1.bf16.msra.mxu0 0
  %292 = vmatprep.subr.bf16.mxu0 0
  %293 = vmatpush1.bf16.msra.mxu0 0
  %294 = vmatprep.subr.bf16.mxu0 0
  %295 = vmatpush1.bf16.msra.mxu0 0
  %296 = vmatprep.subr.bf16.mxu0 0
  %297 = vmatpush1.bf16.msra.mxu0 0
  %298 = vmatprep.subr.bf16.mxu0 0
  %299 = vmatpush1.bf16.msra.mxu0 0
  %300 = vmatprep.subr.bf16.mxu0 0
  %301 = vmatpush1.bf16.msra.mxu0 0
  %302 = vmatprep.mubr.bf16.mxu0 0
  %303 = vmatmul.mubr.bf16.gmra.mrb[0].mxu0 %v268
  %v304 = vpop.f32.mrb[0].mxu0
  %v305 = vadd.f32 0.0, %v304
  %v306 = vpop.f32.mrb[0].mxu0
  %v307 = vpop.f32.mrb[0].mxu0
  %v308 = vadd.f32 0.0, %v307
  %v309 = vpop.f32.mrb[0].mxu0
  %310 = vdwg.mxu0
  %v311 = vadd.f32 %v248, %v305
  %v312 = vadd.f32 %v249, %v308
  %v313 = vmul.f32 %v311, 0.5
  %v314 = vmul.f32 %v312, 0.5
  %v315 = vtanh.pop %v313
  %v316 = vtanh.pop %v314
  %v317 = vmul.f32 %v315, 0.5
  %v318 = vmul.f32 %v316, 0.5
  %v319 = vadd.f32 %v317, 0.5
  %v320 = vadd.f32 %v318, 0.5
  %v321 = vtanh.pop %v311
  %v322 = vtanh.pop %v312
  %v323 = vmul.f32 %v319, 0.0
  %v324 = vmul.f32 %v320, 0.0
  %327 = vrot.lane.b32.xlu0 %v321, 64
  %v328 = vpop.permute.xlu0 %327
  %329 = vrot.lane.b32.xlu0 %v322, 64
  %v330 = vpop.permute.xlu0 %329
  %v333 = vmul.f32 %v319, %v328
  %v334 = vmul.f32 %v320, %v330
  %337 = vrot.lane.b32.xlu0 %v333, 32
  %v338 = vpop.permute.xlu0 %337
  %339 = vrot.lane.b32.xlu0 %v334, 32
  %v340 = vpop.permute.xlu0 %339
  %v343 = vadd.f32 %v323, %v338
  %v344 = vadd.f32 %v324, %v340
  %v345 = vtanh.pop %v343
  %v346 = vtanh.pop %v344
  %349 = vrot.lane.b32.xlu0 %v345, 64
  %v350 = vpop.permute.xlu0 %349
  %351 = vrot.lane.b32.xlu0 %v346, 64
  %v352 = vpop.permute.xlu0 %351
  %v355 = vmul.f32 %v319, %v350
  %v356 = vmul.f32 %v320, %v352
  %v357 = vpack.c.bf16 %v356, %v355
  %v358 = vld [vmem:[#allocation2 + $0x10] sm:$0xff]
  %v359 = vld [vmem:[#allocation2 + $0x18] sm:$0xff]
  %361 = vrot.lane.b32.xlu0 %v357, 32
  %v362 = vpop.permute.xlu0 %361
  %v364 = vsel %vm266, %v362, 0
  %366 = vmatprep.subr.bf16.mxu0 0
  %367 = vmatpush1.bf16.msra.mxu0 %v262
  %368 = vmatprep.subr.bf16.mxu0 0
  %369 = vmatpush1.bf16.msra.mxu0 %v263
  %370 = vmatprep.subr.bf16.mxu0 0
  %371 = vmatpush1.bf16.msra.mxu0 0
  %372 = vmatprep.subr.bf16.mxu0 0
  %373 = vmatpush1.bf16.msra.mxu0 0
  %374 = vmatprep.subr.bf16.mxu0 0
  %375 = vmatpush1.bf16.msra.mxu0 0
  %376 = vmatprep.subr.bf16.mxu0 0
  %377 = vmatpush1.bf16.msra.mxu0 0
  %378 = vmatprep.subr.bf16.mxu0 0
  %379 = vmatpush1.bf16.msra.mxu0 0
  %380 = vmatprep.subr.bf16.mxu0 0
  %381 = vmatpush1.bf16.msra.mxu0 0
  %382 = vmatprep.subr.bf16.mxu0 0
  %383 = vmatpush1.bf16.msra.mxu0 0
  %384 = vmatprep.subr.bf16.mxu0 0
  %385 = vmatpush1.bf16.msra.mxu0 0
  %386 = vmatprep.subr.bf16.mxu0 0
  %387 = vmatpush1.bf16.msra.mxu0 0
  %388 = vmatprep.subr.bf16.mxu0 0
  %389 = vmatpush1.bf16.msra.mxu0 0
  %390 = vmatprep.subr.bf16.mxu0 0
  %391 = vmatpush1.bf16.msra.mxu0 0
  %392 = vmatprep.subr.bf16.mxu0 0
  %393 = vmatpush1.bf16.msra.mxu0 0
  %394 = vmatprep.subr.bf16.mxu0 0
  %395 = vmatpush1.bf16.msra.mxu0 0
  %396 = vmatprep.subr.bf16.mxu0 0
  %397 = vmatpush1.bf16.msra.mxu0 0
  %398 = vmatprep.mubr.bf16.mxu0 0
  %399 = vmatmul.mubr.bf16.gmra.mrb[0].mxu0 %v364
  %v400 = vpop.f32.mrb[0].mxu0
  %v401 = vadd.f32 0.0, %v400
  %v402 = vpop.f32.mrb[0].mxu0
  %v403 = vpop.f32.mrb[0].mxu0
  %v404 = vadd.f32 0.0, %v403
  %v405 = vpop.f32.mrb[0].mxu0
  %406 = vdwg.mxu0
  %v407 = vadd.f32 %v358, %v401
  %v408 = vadd.f32 %v359, %v404
  %v409 = vmul.f32 %v407, 0.5
  %v410 = vmul.f32 %v408, 0.5
  %v411 = vtanh.pop %v409
  %v412 = vtanh.pop %v410
  %v413 = vmul.f32 %v411, 0.5
  %v414 = vmul.f32 %v412, 0.5
  %v415 = vadd.f32 %v413, 0.5
  %v416 = vadd.f32 %v414, 0.5
  %v417 = vtanh.pop %v407
  %v418 = vtanh.pop %v408
  %v419 = vmul.f32 %v415, %v343
  %v420 = vmul.f32 %v416, %v344
  %423 = vrot.lane.b32.xlu0 %v417, 64
  %v424 = vpop.permute.xlu0 %423
  %425 = vrot.lane.b32.xlu0 %v418, 64
  %v426 = vpop.permute.xlu0 %425
  %v429 = vmul.f32 %v415, %v424
  %v430 = vmul.f32 %v416, %v426
  %433 = vrot.lane.b32.xlu0 %v429, 32
  %v434 = vpop.permute.xlu0 %433
  %435 = vrot.lane.b32.xlu0 %v430, 32
  %v436 = vpop.permute.xlu0 %435
  %v439 = vadd.f32 %v419, %v434
  %v440 = vadd.f32 %v420, %v436
  %v441 = vtanh.pop %v439
  %v442 = vtanh.pop %v440
  %445 = vrot.lane.b32.xlu0 %v441, 64
  %v446 = vpop.permute.xlu0 %445
  %447 = vrot.lane.b32.xlu0 %v442, 64
  %v448 = vpop.permute.xlu0 %447
  %v451 = vmul.f32 %v415, %v446
  %v452 = vmul.f32 %v416, %v448
  %v453 = vpack.c.bf16 %v452, %v451
  %v454 = vld [vmem:[%s4] sm:$0xf]
  %v455 = vld [vmem:[%s4 + $0x4] sm:$0xf]
  %v456 = vld [vmem:[%s4 + $0x8] sm:$0xf]
  %v457 = vld [vmem:[%s4 + $0xc] sm:$0xf]
  %v458 = vld [vmem:[%s5] sm:$0xf]
  %v459 = vld [vmem:[%s5 + $0x4] sm:$0xf]
  %v460 = vld [vmem:[%s5 + $0x8] sm:$0xf]
  %v461 = vld [vmem:[%s5 + $0xc] sm:$0xf]
  %v466 = vunpack.c.l.b16 %v458
  %v467 = vunpack.c.l.b16 %v459
  %v468 = vunpack.c.l.b16 %v460
  %v469 = vunpack.c.l.b16 %v461
  %v470 = vpack.c.b16 %v467, %v466
  %v471 = vpack.c.b16 %v469, %v468
  %474 = vmatprep.subr.bf16.mxu0 0
  %475 = vmatpush1.bf16.msra.mxu0 %v470
  %476 = vmatprep.subr.bf16.mxu0 0
  %477 = vmatpush1.bf16.msra.mxu0 %v471
  %478 = vmatprep.subr.bf16.mxu0 0
  %479 = vmatpush1.bf16.msra.mxu0 0
  %480 = vmatprep.subr.bf16.mxu0 0
  %481 = vmatpush1.bf16.msra.mxu0 0
  %482 = vmatprep.subr.bf16.mxu0 0
  %483 = vmatpush1.bf16.msra.mxu0 0
  %484 = vmatprep.subr.bf16.mxu0 0
  %485 = vmatpush1.bf16.msra.mxu0 0
  %486 = vmatprep.subr.bf16.mxu0 0
  %487 = vmatpush1.bf16.msra.mxu0 0
  %488 = vmatprep.subr.bf16.mxu0 0
  %489 = vmatpush1.bf16.msra.mxu0 0
  %490 = vmatprep.subr.bf16.mxu0 0
  %491 = vmatpush1.bf16.msra.mxu0 0
  %492 = vmatprep.subr.bf16.mxu0 0
  %493 = vmatpush1.bf16.msra.mxu0 0
  %494 = vmatprep.subr.bf16.mxu0 0
  %495 = vmatpush1.bf16.msra.mxu0 0
  %496 = vmatprep.subr.bf16.mxu0 0
  %497 = vmatpush1.bf16.msra.mxu0 0
  %498 = vmatprep.subr.bf16.mxu0 0
  %499 = vmatpush1.bf16.msra.mxu0 0
  %500 = vmatprep.subr.bf16.mxu0 0
  %501 = vmatpush1.bf16.msra.mxu0 0
  %502 = vmatprep.subr.bf16.mxu0 0
  %503 = vmatpush1.bf16.msra.mxu0 0
  %504 = vmatprep.subr.bf16.mxu0 0
  %505 = vmatpush1.bf16.msra.mxu0 0
  %506 = vmatprep.mubr.bf16.mxu0 0
  %507 = vmatmul.mubr.bf16.gmra.mrb[0].mxu0 %v268
  %v508 = vpop.f32.mrb[0].mxu0
  %v509 = vadd.f32 0.0, %v508
  %v510 = vpop.f32.mrb[0].mxu0
  %v511 = vpop.f32.mrb[0].mxu0
  %v512 = vadd.f32 0.0, %v511
  %v513 = vpop.f32.mrb[0].mxu0
  %514 = vdwg.mxu0
  %v519 = vunpack.c.l.b16 %v454
  %v520 = vunpack.c.l.b16 %v455
  %v521 = vunpack.c.l.b16 %v456
  %v522 = vunpack.c.l.b16 %v457
  %v523 = vpack.c.b16 %v520, %v519
  %v524 = vpack.c.b16 %v522, %v521
  %527 = vmatprep.subr.bf16.mxu0 0
  %528 = vmatpush1.bf16.msra.mxu0 %v523
  %529 = vmatprep.subr.bf16.mxu0 0
  %530 = vmatpush1.bf16.msra.mxu0 %v524
  %531 = vmatprep.subr.bf16.mxu0 0
  %532 = vmatpush1.bf16.msra.mxu0 0
  %533 = vmatprep.subr.bf16.mxu0 0
  %534 = vmatpush1.bf16.msra.mxu0 0
  %535 = vmatprep.subr.bf16.mxu0 0
  %536 = vmatpush1.bf16.msra.mxu0 0
  %537 = vmatprep.subr.bf16.mxu0 0
  %538 = vmatpush1.bf16.msra.mxu0 0
  %539 = vmatprep.subr.bf16.mxu0 0
  %540 = vmatpush1.bf16.msra.mxu0 0
  %541 = vmatprep.subr.bf16.mxu0 0
  %542 = vmatpush1.bf16.msra.mxu0 0
  %543 = vmatprep.subr.bf16.mxu0 0
  %544 = vmatpush1.bf16.msra.mxu0 0
  %545 = vmatprep.subr.bf16.mxu0 0
  %546 = vmatpush1.bf16.msra.mxu0 0
  %547 = vmatprep.subr.bf16.mxu0 0
  %548 = vmatpush1.bf16.msra.mxu0 0
  %549 = vmatprep.subr.bf16.mxu0 0
  %550 = vmatpush1.bf16.msra.mxu0 0
  %551 = vmatprep.subr.bf16.mxu0 0
  %552 = vmatpush1.bf16.msra.mxu0 0
  %553 = vmatprep.subr.bf16.mxu0 0
  %554 = vmatpush1.bf16.msra.mxu0 0
  %555 = vmatprep.subr.bf16.mxu0 0
  %556 = vmatpush1.bf16.msra.mxu0 0
  %557 = vmatprep.subr.bf16.mxu0 0
  %558 = vmatpush1.bf16.msra.mxu0 0
  %559 = vmatprep.mubr.bf16.mxu0 0
  %560 = vmatmul.mubr.bf16.gmra.mrb[0].mxu0 %v364
  %v561 = vpop.f32.mrb[0].mxu0
  %v562 = vadd.f32 %v509, %v561
  %v563 = vpop.f32.mrb[0].mxu0
  %v564 = vpop.f32.mrb[0].mxu0
  %v565 = vadd.f32 %v512, %v564
  %v566 = vpop.f32.mrb[0].mxu0
  %567 = vdwg.mxu0
  %v568 = vld [vmem:[%s6] sm:$0x1]
  %v570 = vlaneseq
  %v571 = vshrl.u32 %v570, 7
  %v572 = vsub.s32 0, %v571
  %v573 = vrot.slane %v568, %v572
  %v575 = vadd.f32 %v562, %v573
  %v576 = vadd.f32 %v565, %v573
  %v577 = vmul.f32 %v575, 0.5
  %v578 = vmul.f32 %v576, 0.5
  %v579 = vtanh.pop %v577
  %v580 = vtanh.pop %v578
  %v581 = vmul.f32 %v579, 0.5
  %v582 = vmul.f32 %v580, 0.5
  %v583 = vadd.f32 %v581, 0.5
  %v584 = vadd.f32 %v582, 0.5
  %v585 = vtanh.pop %v575
  %v586 = vtanh.pop %v576
  %v587 = vmul.f32 %v583, 0.0
  %v588 = vmul.f32 %v584, 0.0
  %591 = vrot.lane.b32.xlu0 %v585, 64
  %v592 = vpop.permute.xlu0 %591
  %593 = vrot.lane.b32.xlu0 %v586, 64
  %v594 = vpop.permute.xlu0 %593
  %v597 = vmul.f32 %v583, %v592
  %v598 = vmul.f32 %v584, %v594
  %601 = vrot.lane.b32.xlu0 %v597, 32
  %v602 = vpop.permute.xlu0 %601
  %603 = vrot.lane.b32.xlu0 %v598, 32
  %v604 = vpop.permute.xlu0 %603
  %v607 = vadd.f32 %v587, %v602
  %v608 = vadd.f32 %v588, %v604
  %v609 = vtanh.pop %v607
  %v610 = vtanh.pop %v608
  %613 = vrot.lane.b32.xlu0 %v609, 64
  %v614 = vpop.permute.xlu0 %613
  %615 = vrot.lane.b32.xlu0 %v610, 64
  %v616 = vpop.permute.xlu0 %615
  %v619 = vmul.f32 %v583, %v614
  %v620 = vmul.f32 %v584, %v616
  %v621 = vpack.c.bf16 %v620, %v619
  %v622 = vld [vmem:[#allocation2 + $0x20] sm:$0xff]
  %v623 = vld [vmem:[#allocation2 + $0x28] sm:$0xff]
  %625 = vrot.lane.b32.xlu0 %v453, 32
  %v626 = vpop.permute.xlu0 %625
  %v628 = vsel %vm266, %v626, 0
  %630 = vmatprep.subr.bf16.mxu0 0
  %631 = vmatpush1.bf16.msra.mxu0 %v262
  %632 = vmatprep.subr.bf16.mxu0 0
  %633 = vmatpush1.bf16.msra.mxu0 %v263
  %634 = vmatprep.subr.bf16.mxu0 0
  %635 = vmatpush1.bf16.msra.mxu0 0
  %636 = vmatprep.subr.bf16.mxu0 0
  %637 = vmatpush1.bf16.msra.mxu0 0
  %638 = vmatprep.subr.bf16.mxu0 0
  %639 = vmatpush1.bf16.msra.mxu0 0
  %640 = vmatprep.subr.bf16.mxu0 0
  %641 = vmatpush1.bf16.msra.mxu0 0
  %642 = vmatprep.subr.bf16.mxu0 0
  %643 = vmatpush1.bf16.msra.mxu0 0
  %644 = vmatprep.subr.bf16.mxu0 0
  %645 = vmatpush1.bf16.msra.mxu0 0
  %646 = vmatprep.subr.bf16.mxu0 0
  %647 = vmatpush1.bf16.msra.mxu0 0
  %648 = vmatprep.subr.bf16.mxu0 0
  %649 = vmatpush1.bf16.msra.mxu0 0
  %650 = vmatprep.subr.bf16.mxu0 0
  %651 = vmatpush1.bf16.msra.mxu0 0
  %652 = vmatprep.subr.bf16.mxu0 0
  %653 = vmatpush1.bf16.msra.mxu0 0
  %654 = vmatprep.subr.bf16.mxu0 0
  %655 = vmatpush1.bf16.msra.mxu0 0
  %656 = vmatprep.subr.bf16.mxu0 0
  %657 = vmatpush1.bf16.msra.mxu0 0
  %658 = vmatprep.subr.bf16.mxu0 0
  %659 = vmatpush1.bf16.msra.mxu0 0
  %660 = vmatprep.subr.bf16.mxu0 0
  %661 = vmatpush1.bf16.msra.mxu0 0
  %662 = vmatprep.mubr.bf16.mxu0 0
  %663 = vmatmul.mubr.bf16.gmra.mrb[0].mxu0 %v628
  %v664 = vpop.f32.mrb[0].mxu0
  %v665 = vadd.f32 0.0, %v664
  %v666 = vpop.f32.mrb[0].mxu0
  %v667 = vpop.f32.mrb[0].mxu0
  %v668 = vadd.f32 0.0, %v667
  %v669 = vpop.f32.mrb[0].mxu0
  %670 = vdwg.mxu0
  %v671 = vadd.f32 %v622, %v665
  %v672 = vadd.f32 %v623, %v668
  %v673 = vmul.f32 %v671, 0.5
  %v674 = vmul.f32 %v672, 0.5
  %v675 = vtanh.pop %v673
  %v676 = vtanh.pop %v674
  %v677 = vmul.f32 %v675, 0.5
  %v678 = vmul.f32 %v676, 0.5
  %v679 = vadd.f32 %v677, 0.5
  %v680 = vadd.f32 %v678, 0.5
  %v681 = vtanh.pop %v671
  %v682 = vtanh.pop %v672
  %v683 = vmul.f32 %v679, %v439
  %v684 = vmul.f32 %v680, %v440
  %687 = vrot.lane.b32.xlu0 %v681, 64
  %v688 = vpop.permute.xlu0 %687
  %689 = vrot.lane.b32.xlu0 %v682, 64
  %v690 = vpop.permute.xlu0 %689
  %v693 = vmul.f32 %v679, %v688
  %v694 = vmul.f32 %v680, %v690
  %697 = vrot.lane.b32.xlu0 %v693, 32
  %v698 = vpop.permute.xlu0 %697
  %699 = vrot.lane.b32.xlu0 %v694, 32
  %v700 = vpop.permute.xlu0 %699
  %v703 = vadd.f32 %v683, %v698
  %v704 = vadd.f32 %v684, %v700
  %v705 = vtanh.pop %v703
  %v706 = vtanh.pop %v704
  %709 = vrot.lane.b32.xlu0 %v705, 64
  %v710 = vpop.permute.xlu0 %709
  %711 = vrot.lane.b32.xlu0 %v706, 64
  %v712 = vpop.permute.xlu0 %711
  %v715 = vmul.f32 %v679, %v710
  %v716 = vmul.f32 %v680, %v712
  %v717 = vpack.c.bf16 %v716, %v715
  %719 = vrot.lane.b32.xlu0 %v621, 32
  %v720 = vpop.permute.xlu0 %719
  %v722 = vsel %vm266, %v720, 0
  %724 = vmatprep.subr.bf16.mxu0 0
  %725 = vmatpush1.bf16.msra.mxu0 %v470
  %726 = vmatprep.subr.bf16.mxu0 0
  %727 = vmatpush1.bf16.msra.mxu0 %v471
  %728 = vmatprep.subr.bf16.mxu0 0
  %729 = vmatpush1.bf16.msra.mxu0 0
  %730 = vmatprep.subr.bf16.mxu0 0
  %731 = vmatpush1.bf16.msra.mxu0 0
  %732 = vmatprep.subr.bf16.mxu0 0
  %733 = vmatpush1.bf16.msra.mxu0 0
  %734 = vmatprep.subr.bf16.mxu0 0
  %735 = vmatpush1.bf16.msra.mxu0 0
  %736 = vmatprep.subr.bf16.mxu0 0
  %737 = vmatpush1.bf16.msra.mxu0 0
  %738 = vmatprep.subr.bf16.mxu0 0
  %739 = vmatpush1.bf16.msra.mxu0 0
  %740 = vmatprep.subr.bf16.mxu0 0
  %741 = vmatpush1.bf16.msra.mxu0 0
  %742 = vmatprep.subr.bf16.mxu0 0
  %743 = vmatpush1.bf16.msra.mxu0 0
  %744 = vmatprep.subr.bf16.mxu0 0
  %745 = vmatpush1.bf16.msra.mxu0 0
  %746 = vmatprep.subr.bf16.mxu0 0
  %747 = vmatpush1.bf16.msra.mxu0 0
  %748 = vmatprep.subr.bf16.mxu0 0
  %749 = vmatpush1.bf16.msra.mxu0 0
  %750 = vmatprep.subr.bf16.mxu0 0
  %751 = vmatpush1.bf16.msra.mxu0 0
  %752 = vmatprep.subr.bf16.mxu0 0
  %753 = vmatpush1.bf16.msra.mxu0 0
  %754 = vmatprep.subr.bf16.mxu0 0
  %755 = vmatpush1.bf16.msra.mxu0 0
  %756 = vmatprep.mubr.bf16.mxu0 0
  %757 = vmatmul.mubr.bf16.gmra.mrb[0].mxu0 %v722
  %v758 = vpop.f32.mrb[0].mxu0
  %v759 = vadd.f32 0.0, %v758
  %v760 = vpop.f32.mrb[0].mxu0
  %v761 = vpop.f32.mrb[0].mxu0
  %v762 = vadd.f32 0.0, %v761
  %v763 = vpop.f32.mrb[0].mxu0
  %764 = vdwg.mxu0
  %765 = vmatprep.subr.bf16.mxu0 0
  %766 = vmatpush1.bf16.msra.mxu0 %v523
  %767 = vmatprep.subr.bf16.mxu0 0
  %768 = vmatpush1.bf16.msra.mxu0 %v524
  %769 = vmatprep.subr.bf16.mxu0 0
  %770 = vmatpush1.bf16.msra.mxu0 0
  %771 = vmatprep.subr.bf16.mxu0 0
  %772 = vmatpush1.bf16.msra.mxu0 0
  %773 = vmatprep.subr.bf16.mxu0 0
  %774 = vmatpush1.bf16.msra.mxu0 0
  %775 = vmatprep.subr.bf16.mxu0 0
  %776 = vmatpush1.bf16.msra.mxu0 0
  %777 = vmatprep.subr.bf16.mxu0 0
  %778 = vmatpush1.bf16.msra.mxu0 0
  %779 = vmatprep.subr.bf16.mxu0 0
  %780 = vmatpush1.bf16.msra.mxu0 0
  %781 = vmatprep.subr.bf16.mxu0 0
  %782 = vmatpush1.bf16.msra.mxu0 0
  %783 = vmatprep.subr.bf16.mxu0 0
  %784 = vmatpush1.bf16.msra.mxu0 0
  %785 = vmatprep.subr.bf16.mxu0 0
  %786 = vmatpush1.bf16.msra.mxu0 0
  %787 = vmatprep.subr.bf16.mxu0 0
  %788 = vmatpush1.bf16.msra.mxu0 0
  %789 = vmatprep.subr.bf16.mxu0 0
  %790 = vmatpush1.bf16.msra.mxu0 0
  %791 = vmatprep.subr.bf16.mxu0 0
  %792 = vmatpush1.bf16.msra.mxu0 0
  %793 = vmatprep.subr.bf16.mxu0 0
  %794 = vmatpush1.bf16.msra.mxu0 0
  %795 = vmatprep.subr.bf16.mxu0 0
  %796 = vmatpush1.bf16.msra.mxu0 0
  %797 = vmatprep.mubr.bf16.mxu0 0
  %798 = vmatmul.mubr.bf16.gmra.mrb[0].mxu0 %v628
  %v799 = vpop.f32.mrb[0].mxu0
  %v800 = vadd.f32 %v759, %v799
  %v801 = vpop.f32.mrb[0].mxu0
  %v802 = vpop.f32.mrb[0].mxu0
  %v803 = vadd.f32 %v762, %v802
  %v804 = vpop.f32.mrb[0].mxu0
  %805 = vdwg.mxu0
  %v806 = vadd.f32 %v800, %v573
  %v807 = vadd.f32 %v803, %v573
  %v808 = vmul.f32 %v806, 0.5
  %v809 = vmul.f32 %v807, 0.5
  %v810 = vtanh.pop %v808
  %v811 = vtanh.pop %v809
  %v812 = vmul.f32 %v810, 0.5
  %v813 = vmul.f32 %v811, 0.5
  %v814 = vadd.f32 %v812, 0.5
  %v815 = vadd.f32 %v813, 0.5
  %v816 = vtanh.pop %v806
  %v817 = vtanh.pop %v807
  %v818 = vmul.f32 %v814, %v607
  %v819 = vmul.f32 %v815, %v608
  %822 = vrot.lane.b32.xlu0 %v816, 64
  %v823 = vpop.permute.xlu0 %822
  %824 = vrot.lane.b32.xlu0 %v817, 64
  %v825 = vpop.permute.xlu0 %824
  %v828 = vmul.f32 %v814, %v823
  %v829 = vmul.f32 %v815, %v825
  %832 = vrot.lane.b32.xlu0 %v828, 32
  %v833 = vpop.permute.xlu0 %832
  %834 = vrot.lane.b32.xlu0 %v829, 32
  %v835 = vpop.permute.xlu0 %834
  %v838 = vadd.f32 %v818, %v833
  %v839 = vadd.f32 %v819, %v835
  %v840 = vtanh.pop %v838
  %v841 = vtanh.pop %v839
  %844 = vrot.lane.b32.xlu0 %v840, 64
  %v845 = vpop.permute.xlu0 %844
  %846 = vrot.lane.b32.xlu0 %v841, 64
  %v847 = vpop.permute.xlu0 %846
  %v850 = vmul.f32 %v814, %v845
  %v851 = vmul.f32 %v815, %v847
  %v852 = vpack.c.bf16 %v851, %v850
  %v853 = vld [vmem:[#allocation2 + $0x30] sm:$0xff]
  %v854 = vld [vmem:[#allocation2 + $0x38] sm:$0xff]
  %856 = vrot.lane.b32.xlu0 %v717, 32
  %v857 = vpop.permute.xlu0 %856
  %v859 = vsel %vm266, %v857, 0
  %861 = vmatprep.subr.bf16.mxu0 0
  %862 = vmatpush1.bf16.msra.mxu0 %v262
  %863 = vmatprep.subr.bf16.mxu0 0
  %864 = vmatpush1.bf16.msra.mxu0 %v263
  %865 = vmatprep.subr.bf16.mxu0 0
  %866 = vmatpush1.bf16.msra.mxu0 0
  %867 = vmatprep.subr.bf16.mxu0 0
  %868 = vmatpush1.bf16.msra.mxu0 0
  %869 = vmatprep.subr.bf16.mxu0 0
  %870 = vmatpush1.bf16.msra.mxu0 0
  %871 = vmatprep.subr.bf16.mxu0 0
  %872 = vmatpush1.bf16.msra.mxu0 0
  %873 = vmatprep.subr.bf16.mxu0 0
  %874 = vmatpush1.bf16.msra.mxu0 0
  %875 = vmatprep.subr.bf16.mxu0 0
  %876 = vmatpush1.bf16.msra.mxu0 0
  %877 = vmatprep.subr.bf16.mxu0 0
  %878 = vmatpush1.bf16.msra.mxu0 0
  %879 = vmatprep.subr.bf16.mxu0 0
  %880 = vmatpush1.bf16.msra.mxu0 0
  %881 = vmatprep.subr.bf16.mxu0 0
  %882 = vmatpush1.bf16.msra.mxu0 0
  %883 = vmatprep.subr.bf16.mxu0 0
  %884 = vmatpush1.bf16.msra.mxu0 0
  %885 = vmatprep.subr.bf16.mxu0 0
  %886 = vmatpush1.bf16.msra.mxu0 0
  %887 = vmatprep.subr.bf16.mxu0 0
  %888 = vmatpush1.bf16.msra.mxu0 0
  %889 = vmatprep.subr.bf16.mxu0 0
  %890 = vmatpush1.bf16.msra.mxu0 0
  %891 = vmatprep.subr.bf16.mxu0 0
  %892 = vmatpush1.bf16.msra.mxu0 0
  %893 = vmatprep.mubr.bf16.mxu0 0
  %894 = vmatmul.mubr.bf16.gmra.mrb[0].mxu0 %v859
  %v895 = vpop.f32.mrb[0].mxu0
  %v896 = vadd.f32 0.0, %v895
  %v897 = vpop.f32.mrb[0].mxu0
  %v898 = vpop.f32.mrb[0].mxu0
  %v899 = vadd.f32 0.0, %v898
  %v900 = vpop.f32.mrb[0].mxu0
  %901 = vdwg.mxu0
  %v902 = vadd.f32 %v853, %v896
  %v903 = vadd.f32 %v854, %v899
  %v904 = vmul.f32 %v902, 0.5
  %v905 = vmul.f32 %v903, 0.5
  %v906 = vtanh.pop %v904
  %v907 = vtanh.pop %v905
  %v908 = vmul.f32 %v906, 0.5
  %v909 = vmul.f32 %v907, 0.5
  %v910 = vadd.f32 %v908, 0.5
  %v911 = vadd.f32 %v909, 0.5
  %v912 = vtanh.pop %v902
  %v913 = vtanh.pop %v903
  %v914 = vmul.f32 %v910, %v703
  %v915 = vmul.f32 %v911, %v704
  %918 = vrot.lane.b32.xlu0 %v912, 64
  %v919 = vpop.permute.xlu0 %918
  %920 = vrot.lane.b32.xlu0 %v913, 64
  %v921 = vpop.permute.xlu0 %920
  %v924 = vmul.f32 %v910, %v919
  %v925 = vmul.f32 %v911, %v921
  %928 = vrot.lane.b32.xlu0 %v924, 32
  %v929 = vpop.permute.xlu0 %928
  %930 = vrot.lane.b32.xlu0 %v925, 32
  %v931 = vpop.permute.xlu0 %930
  %v934 = vadd.f32 %v914, %v929
  %v935 = vadd.f32 %v915, %v931
  %v936 = vtanh.pop %v934
  %v937 = vtanh.pop %v935
  %940 = vrot.lane.b32.xlu0 %v936, 64
  %v941 = vpop.permute.xlu0 %940
  %942 = vrot.lane.b32.xlu0 %v937, 64
  %v943 = vpop.permute.xlu0 %942
  %v946 = vmul.f32 %v910, %v941
  %v947 = vmul.f32 %v911, %v943
  %v948 = vpack.c.bf16 %v947, %v946
  %950 = vrot.lane.b32.xlu0 %v852, 32
  %v951 = vpop.permute.xlu0 %950
  %v953 = vsel %vm266, %v951, 0
  %955 = vmatprep.subr.bf16.mxu0 0
  %956 = vmatpush1.bf16.msra.mxu0 %v470
  %957 = vmatprep.subr.bf16.mxu0 0
  %958 = vmatpush1.bf16.msra.mxu0 %v471
  %959 = vmatprep.subr.bf16.mxu0 0
  %960 = vmatpush1.bf16.msra.mxu0 0
  %961 = vmatprep.subr.bf16.mxu0 0
  %962 = vmatpush1.bf16.msra.mxu0 0
  %963 = vmatprep.subr.bf16.mxu0 0
  %964 = vmatpush1.bf16.msra.mxu0 0
  %965 = vmatprep.subr.bf16.mxu0 0
  %966 = vmatpush1.bf16.msra.mxu0 0
  %967 = vmatprep.subr.bf16.mxu0 0
  %968 = vmatpush1.bf16.msra.mxu0 0
  %969 = vmatprep.subr.bf16.mxu0 0
  %970 = vmatpush1.bf16.msra.mxu0 0
  %971 = vmatprep.subr.bf16.mxu0 0
  %972 = vmatpush1.bf16.msra.mxu0 0
  %973 = vmatprep.subr.bf16.mxu0 0
  %974 = vmatpush1.bf16.msra.mxu0 0
  %975 = vmatprep.subr.bf16.mxu0 0
  %976 = vmatpush1.bf16.msra.mxu0 0
  %977 = vmatprep.subr.bf16.mxu0 0
  %978 = vmatpush1.bf16.msra.mxu0 0
  %979 = vmatprep.subr.bf16.mxu0 0
  %980 = vmatpush1.bf16.msra.mxu0 0
  %981 = vmatprep.subr.bf16.mxu0 0
  %982 = vmatpush1.bf16.msra.mxu0 0
  %983 = vmatprep.subr.bf16.mxu0 0
  %984 = vmatpush1.bf16.msra.mxu0 0
  %985 = vmatprep.subr.bf16.mxu0 0
  %986 = vmatpush1.bf16.msra.mxu0 0
  %987 = vmatprep.mubr.bf16.mxu0 0
  %988 = vmatmul.mubr.bf16.gmra.mrb[0].mxu0 %v953
  %v989 = vpop.f32.mrb[0].mxu0
  %v990 = vadd.f32 0.0, %v989
  %v991 = vpop.f32.mrb[0].mxu0
  %v992 = vpop.f32.mrb[0].mxu0
  %v993 = vadd.f32 0.0, %v992
  %v994 = vpop.f32.mrb[0].mxu0
  %995 = vdwg.mxu0
  %996 = vmatprep.subr.bf16.mxu0 0
  %997 = vmatpush1.bf16.msra.mxu0 %v523
  %998 = vmatprep.subr.bf16.mxu0 0
  %999 = vmatpush1.bf16.msra.mxu0 %v524
  %1000 = vmatprep.subr.bf16.mxu0 0
  %1001 = vmatpush1.bf16.msra.mxu0 0
  %1002 = vmatprep.subr.bf16.mxu0 0
  %1003 = vmatpush1.bf16.msra.mxu0 0
  %1004 = vmatprep.subr.bf16.mxu0 0
  %1005 = vmatpush1.bf16.msra.mxu0 0
  %1006 = vmatprep.subr.bf16.mxu0 0
  %1007 = vmatpush1.bf16.msra.mxu0 0
  %1008 = vmatprep.subr.bf16.mxu0 0
  %1009 = vmatpush1.bf16.msra.mxu0 0
  %1010 = vmatprep.subr.bf16.mxu0 0
  %1011 = vmatpush1.bf16.msra.mxu0 0
  %1012 = vmatprep.subr.bf16.mxu0 0
  %1013 = vmatpush1.bf16.msra.mxu0 0
  %1014 = vmatprep.subr.bf16.mxu0 0
  %1015 = vmatpush1.bf16.msra.mxu0 0
  %1016 = vmatprep.subr.bf16.mxu0 0
  %1017 = vmatpush1.bf16.msra.mxu0 0
  %1018 = vmatprep.subr.bf16.mxu0 0
  %1019 = vmatpush1.bf16.msra.mxu0 0
  %1020 = vmatprep.subr.bf16.mxu0 0
  %1021 = vmatpush1.bf16.msra.mxu0 0
  %1022 = vmatprep.subr.bf16.mxu0 0
  %1023 = vmatpush1.bf16.msra.mxu0 0
  %1024 = vmatprep.subr.bf16.mxu0 0
  %1025 = vmatpush1.bf16.msra.mxu0 0
  %1026 = vmatprep.subr.bf16.mxu0 0
  %1027 = vmatpush1.bf16.msra.mxu0 0
  %1028 = vmatprep.mubr.bf16.mxu0 0
  %1029 = vmatmul.mubr.bf16.gmra.mrb[0].mxu0 %v859
  %v1030 = vpop.f32.mrb[0].mxu0
  %v1031 = vadd.f32 %v990, %v1030
  %v1032 = vpop.f32.mrb[0].mxu0
  %v1033 = vpop.f32.mrb[0].mxu0
  %v1034 = vadd.f32 %v993, %v1033
  %v1035 = vpop.f32.mrb[0].mxu0
  %1036 = vdwg.mxu0
  %v1037 = vadd.f32 %v1031, %v573
  %v1038 = vadd.f32 %v1034, %v573
  %v1039 = vmul.f32 %v1037, 0.5
  %v1040 = vmul.f32 %v1038, 0.5
  %v1041 = vtanh.pop %v1039
  %v1042 = vtanh.pop %v1040
  %v1043 = vmul.f32 %v1041, 0.5
  %v1044 = vmul.f32 %v1042, 0.5
  %v1045 = vadd.f32 %v1043, 0.5
  %v1046 = vadd.f32 %v1044, 0.5
  %v1047 = vtanh.pop %v1037
  %v1048 = vtanh.pop %v1038
  %v1049 = vmul.f32 %v1045, %v838
  %v1050 = vmul.f32 %v1046, %v839
  %1053 = vrot.lane.b32.xlu0 %v1047, 64
  %v1054 = vpop.permute.xlu0 %1053
  %1055 = vrot.lane.b32.xlu0 %v1048, 64
  %v1056 = vpop.permute.xlu0 %1055
  %v1059 = vmul.f32 %v1045, %v1054
  %v1060 = vmul.f32 %v1046, %v1056
  %1063 = vrot.lane.b32.xlu0 %v1059, 32
  %v1064 = vpop.permute.xlu0 %1063
  %1065 = vrot.lane.b32.xlu0 %v1060, 32
  %v1066 = vpop.permute.xlu0 %1065
  %v1069 = vadd.f32 %v1049, %v1064
  %v1070 = vadd.f32 %v1050, %v1066
  %v1071 = vtanh.pop %v1069
  %v1072 = vtanh.pop %v1070
  %1075 = vrot.lane.b32.xlu0 %v1071, 64
  %v1076 = vpop.permute.xlu0 %1075
  %1077 = vrot.lane.b32.xlu0 %v1072, 64
  %v1078 = vpop.permute.xlu0 %1077
  %v1081 = vmul.f32 %v1045, %v1076
  %v1082 = vmul.f32 %v1046, %v1078
  %v1083 = vpack.c.bf16 %v1082, %v1081
  %v1084 = vld [vmem:[#allocation2 + $0x40] sm:$0xff]
  %v1085 = vld [vmem:[#allocation2 + $0x48] sm:$0xff]
  %1087 = vrot.lane.b32.xlu0 %v948, 32
  %v1088 = vpop.permute.xlu0 %1087
  %v1090 = vsel %vm266, %v1088, 0
  %1092 = vmatprep.subr.bf16.mxu0 0
  %1093 = vmatpush1.bf16.msra.mxu0 %v262
  %1094 = vmatprep.subr.bf16.mxu0 0
  %1095 = vmatpush1.bf16.msra.mxu0 %v263
  %1096 = vmatprep.subr.bf16.mxu0 0
  %1097 = vmatpush1.bf16.msra.mxu0 0
  %1098 = vmatprep.subr.bf16.mxu0 0
  %1099 = vmatpush1.bf16.msra.mxu0 0
  %1100 = vmatprep.subr.bf16.mxu0 0
  %1101 = vmatpush1.bf16.msra.mxu0 0
  %1102 = vmatprep.subr.bf16.mxu0 0
  %1103 = vmatpush1.bf16.msra.mxu0 0
  %1104 = vmatprep.subr.bf16.mxu0 0
  %1105 = vmatpush1.bf16.msra.mxu0 0
  %1106 = vmatprep.subr.bf16.mxu0 0
  %1107 = vmatpush1.bf16.msra.mxu0 0
  %1108 = vmatprep.subr.bf16.mxu0 0
  %1109 = vmatpush1.bf16.msra.mxu0 0
  %1110 = vmatprep.subr.bf16.mxu0 0
  %1111 = vmatpush1.bf16.msra.mxu0 0
  %1112 = vmatprep.subr.bf16.mxu0 0
  %1113 = vmatpush1.bf16.msra.mxu0 0
  %1114 = vmatprep.subr.bf16.mxu0 0
  %1115 = vmatpush1.bf16.msra.mxu0 0
  %1116 = vmatprep.subr.bf16.mxu0 0
  %1117 = vmatpush1.bf16.msra.mxu0 0
  %1118 = vmatprep.subr.bf16.mxu0 0
  %1119 = vmatpush1.bf16.msra.mxu0 0
  %1120 = vmatprep.subr.bf16.mxu0 0
  %1121 = vmatpush1.bf16.msra.mxu0 0
  %1122 = vmatprep.subr.bf16.mxu0 0
  %1123 = vmatpush1.bf16.msra.mxu0 0
  %1124 = vmatprep.mubr.bf16.mxu0 0
  %1125 = vmatmul.mubr.bf16.gmra.mrb[0].mxu0 %v1090
  %v1126 = vpop.f32.mrb[0].mxu0
  %v1127 = vadd.f32 0.0, %v1126
  %v1128 = vpop.f32.mrb[0].mxu0
  %v1129 = vpop.f32.mrb[0].mxu0
  %v1130 = vadd.f32 0.0, %v1129
  %v1131 = vpop.f32.mrb[0].mxu0
  %1132 = vdwg.mxu0
  %v1133 = vadd.f32 %v1084, %v1127
  %v1134 = vadd.f32 %v1085, %v1130
  %v1135 = vmul.f32 %v1133, 0.5
  %v1136 = vmul.f32 %v1134, 0.5
  %v1137 = vtanh.pop %v1135
  %v1138 = vtanh.pop %v1136
  %v1139 = vmul.f32 %v1137, 0.5
  %v1140 = vmul.f32 %v1138, 0.5
  %v1141 = vadd.f32 %v1139, 0.5
  %v1142 = vadd.f32 %v1140, 0.5
  %v1143 = vtanh.pop %v1133
  %v1144 = vtanh.pop %v1134
  %v1145 = vmul.f32 %v1141, %v934
  %v1146 = vmul.f32 %v1142, %v935
  %1149 = vrot.lane.b32.xlu0 %v1143, 64
  %v1150 = vpop.permute.xlu0 %1149
  %1151 = vrot.lane.b32.xlu0 %v1144, 64
  %v1152 = vpop.permute.xlu0 %1151
  %v1155 = vmul.f32 %v1141, %v1150
  %v1156 = vmul.f32 %v1142, %v1152
  %1159 = vrot.lane.b32.xlu0 %v1155, 32
  %v1160 = vpop.permute.xlu0 %1159
  %1161 = vrot.lane.b32.xlu0 %v1156, 32
  %v1162 = vpop.permute.xlu0 %1161
  %v1165 = vadd.f32 %v1145, %v1160
  %v1166 = vadd.f32 %v1146, %v1162
  %v1167 = vtanh.pop %v1165
  %v1168 = vtanh.pop %v1166
  %1171 = vrot.lane.b32.xlu0 %v1167, 64
  %v1172 = vpop.permute.xlu0 %1171
  %1173 = vrot.lane.b32.xlu0 %v1168, 64
  %v1174 = vpop.permute.xlu0 %1173
  %v1177 = vmul.f32 %v1141, %v1172
  %v1178 = vmul.f32 %v1142, %v1174
  %v1179 = vpack.c.bf16 %v1178, %v1177
  %1181 = vrot.lane.b32.xlu0 %v1083, 32
  %v1182 = vpop.permute.xlu0 %1181
  %v1184 = vsel %vm266, %v1182, 0
  %1186 = vmatprep.subr.bf16.mxu0 0
  %1187 = vmatpush1.bf16.msra.mxu0 %v470
  %1188 = vmatprep.subr.bf16.mxu0 0
  %1189 = vmatpush1.bf16.msra.mxu0 %v471
  %1190 = vmatprep.subr.bf16.mxu0 0
  %1191 = vmatpush1.bf16.msra.mxu0 0
  %1192 = vmatprep.subr.bf16.mxu0 0
  %1193 = vmatpush1.bf16.msra.mxu0 0
  %1194 = vmatprep.subr.bf16.mxu0 0
  %1195 = vmatpush1.bf16.msra.mxu0 0
  %1196 = vmatprep.subr.bf16.mxu0 0
  %1197 = vmatpush1.bf16.msra.mxu0 0
  %1198 = vmatprep.subr.bf16.mxu0 0
  %1199 = vmatpush1.bf16.msra.mxu0 0
  %1200 = vmatprep.subr.bf16.mxu0 0
  %1201 = vmatpush1.bf16.msra.mxu0 0
  %1202 = vmatprep.subr.bf16.mxu0 0
  %1203 = vmatpush1.bf16.msra.mxu0 0
  %1204 = vmatprep.subr.bf16.mxu0 0
  %1205 = vmatpush1.bf16.msra.mxu0 0
  %1206 = vmatprep.subr.bf16.mxu0 0
  %1207 = vmatpush1.bf16.msra.mxu0 0
  %1208 = vmatprep.subr.bf16.mxu0 0
  %1209 = vmatpush1.bf16.msra.mxu0 0
  %1210 = vmatprep.subr.bf16.mxu0 0
  %1211 = vmatpush1.bf16.msra.mxu0 0
  %1212 = vmatprep.subr.bf16.mxu0 0
  %1213 = vmatpush1.bf16.msra.mxu0 0
  %1214 = vmatprep.subr.bf16.mxu0 0
  %1215 = vmatpush1.bf16.msra.mxu0 0
  %1216 = vmatprep.subr.bf16.mxu0 0
  %1217 = vmatpush1.bf16.msra.mxu0 0
  %1218 = vmatprep.mubr.bf16.mxu0 0
  %1219 = vmatmul.mubr.bf16.gmra.mrb[0].mxu0 %v1184
  %v1220 = vpop.f32.mrb[0].mxu0
  %v1221 = vadd.f32 0.0, %v1220
  %v1222 = vpop.f32.mrb[0].mxu0
  %v1223 = vpop.f32.mrb[0].mxu0
  %v1224 = vadd.f32 0.0, %v1223
  %v1225 = vpop.f32.mrb[0].mxu0
  %1226 = vdwg.mxu0
  %1227 = vmatprep.subr.bf16.mxu0 0
  %1228 = vmatpush1.bf16.msra.mxu0 %v523
  %1229 = vmatprep.subr.bf16.mxu0 0
  %1230 = vmatpush1.bf16.msra.mxu0 %v524
  %1231 = vmatprep.subr.bf16.mxu0 0
  %1232 = vmatpush1.bf16.msra.mxu0 0
  %1233 = vmatprep.subr.bf16.mxu0 0
  %1234 = vmatpush1.bf16.msra.mxu0 0
  %1235 = vmatprep.subr.bf16.mxu0 0
  %1236 = vmatpush1.bf16.msra.mxu0 0
  %1237 = vmatprep.subr.bf16.mxu0 0
  %1238 = vmatpush1.bf16.msra.mxu0 0
  %1239 = vmatprep.subr.bf16.mxu0 0
  %1240 = vmatpush1.bf16.msra.mxu0 0
  %1241 = vmatprep.subr.bf16.mxu0 0
  %1242 = vmatpush1.bf16.msra.mxu0 0
  %1243 = vmatprep.subr.bf16.mxu0 0
  %1244 = vmatpush1.bf16.msra.mxu0 0
  %1245 = vmatprep.subr.bf16.mxu0 0
  %1246 = vmatpush1.bf16.msra.mxu0 0
  %1247 = vmatprep.subr.bf16.mxu0 0
  %1248 = vmatpush1.bf16.msra.mxu0 0
  %1249 = vmatprep.subr.bf16.mxu0 0
  %1250 = vmatpush1.bf16.msra.mxu0 0
  %1251 = vmatprep.subr.bf16.mxu0 0
  %1252 = vmatpush1.bf16.msra.mxu0 0
  %1253 = vmatprep.subr.bf16.mxu0 0
  %1254 = vmatpush1.bf16.msra.mxu0 0
  %1255 = vmatprep.subr.bf16.mxu0 0
  %1256 = vmatpush1.bf16.msra.mxu0 0
  %1257 = vmatprep.subr.bf16.mxu0 0
  %1258 = vmatpush1.bf16.msra.mxu0 0
  %1259 = vmatprep.mubr.bf16.mxu0 0
  %1260 = vmatmul.mubr.bf16.gmra.mrb[0].mxu0 %v1090
  %v1261 = vpop.f32.mrb[0].mxu0
  %v1262 = vadd.f32 %v1221, %v1261
  %v1263 = vpop.f32.mrb[0].mxu0
  %v1264 = vpop.f32.mrb[0].mxu0
  %v1265 = vadd.f32 %v1224, %v1264
  %v1266 = vpop.f32.mrb[0].mxu0
  %1267 = vdwg.mxu0
  %v1268 = vadd.f32 %v1262, %v573
  %v1269 = vadd.f32 %v1265, %v573
  %v1270 = vmul.f32 %v1268, 0.5
  %v1271 = vmul.f32 %v1269, 0.5
  %v1272 = vtanh.pop %v1270
  %v1273 = vtanh.pop %v1271
  %v1274 = vmul.f32 %v1272, 0.5
  %v1275 = vmul.f32 %v1273, 0.5
  %v1276 = vadd.f32 %v1274, 0.5
  %v1277 = vadd.f32 %v1275, 0.5
  %v1278 = vtanh.pop %v1268
  %v1279 = vtanh.pop %v1269
  %v1280 = vmul.f32 %v1276, %v1069
  %v1281 = vmul.f32 %v1277, %v1070
  %1284 = vrot.lane.b32.xlu0 %v1278, 64
  %v1285 = vpop.permute.xlu0 %1284
  %1286 = vrot.lane.b32.xlu0 %v1279, 64
  %v1287 = vpop.permute.xlu0 %1286
  %v1290 = vmul.f32 %v1276, %v1285
  %v1291 = vmul.f32 %v1277, %v1287
  %1294 = vrot.lane.b32.xlu0 %v1290, 32
  %v1295 = vpop.permute.xlu0 %1294
  %1296 = vrot.lane.b32.xlu0 %v1291, 32
  %v1297 = vpop.permute.xlu0 %1296
  %v1300 = vadd.f32 %v1280, %v1295
  %v1301 = vadd.f32 %v1281, %v1297
  %v1302 = vtanh.pop %v1300
  %v1303 = vtanh.pop %v1301
  %1306 = vrot.lane.b32.xlu0 %v1302, 64
  %v1307 = vpop.permute.xlu0 %1306
  %1308 = vrot.lane.b32.xlu0 %v1303, 64
  %v1309 = vpop.permute.xlu0 %1308
  %v1312 = vmul.f32 %v1276, %v1307
  %v1313 = vmul.f32 %v1277, %v1309
  %v1314 = vpack.c.bf16 %v1313, %v1312
  %v1315 = vld [vmem:[#allocation2 + $0x50] sm:$0xff]
  %v1316 = vld [vmem:[#allocation2 + $0x58] sm:$0xff]
  %1318 = vrot.lane.b32.xlu0 %v1179, 32
  %v1319 = vpop.permute.xlu0 %1318
  %v1321 = vsel %vm266, %v1319, 0
  %1323 = vmatprep.subr.bf16.mxu0 0
  %1324 = vmatpush1.bf16.msra.mxu0 %v262
  %1325 = vmatprep.subr.bf16.mxu0 0
  %1326 = vmatpush1.bf16.msra.mxu0 %v263
  %1327 = vmatprep.subr.bf16.mxu0 0
  %1328 = vmatpush1.bf16.msra.mxu0 0
  %1329 = vmatprep.subr.bf16.mxu0 0
  %1330 = vmatpush1.bf16.msra.mxu0 0
  %1331 = vmatprep.subr.bf16.mxu0 0
  %1332 = vmatpush1.bf16.msra.mxu0 0
  %1333 = vmatprep.subr.bf16.mxu0 0
  %1334 = vmatpush1.bf16.msra.mxu0 0
  %1335 = vmatprep.subr.bf16.mxu0 0
  %1336 = vmatpush1.bf16.msra.mxu0 0
  %1337 = vmatprep.subr.bf16.mxu0 0
  %1338 = vmatpush1.bf16.msra.mxu0 0
  %1339 = vmatprep.subr.bf16.mxu0 0
  %1340 = vmatpush1.bf16.msra.mxu0 0
  %1341 = vmatprep.subr.bf16.mxu0 0
  %1342 = vmatpush1.bf16.msra.mxu0 0
  %1343 = vmatprep.subr.bf16.mxu0 0
  %1344 = vmatpush1.bf16.msra.mxu0 0
  %1345 = vmatprep.subr.bf16.mxu0 0
  %1346 = vmatpush1.bf16.msra.mxu0 0
  %1347 = vmatprep.subr.bf16.mxu0 0
  %1348 = vmatpush1.bf16.msra.mxu0 0
  %1349 = vmatprep.subr.bf16.mxu0 0
  %1350 = vmatpush1.bf16.msra.mxu0 0
  %1351 = vmatprep.subr.bf16.mxu0 0
  %1352 = vmatpush1.bf16.msra.mxu0 0
  %1353 = vmatprep.subr.bf16.mxu0 0
  %1354 = vmatpush1.bf16.msra.mxu0 0
  %1355 = vmatprep.mubr.bf16.mxu0 0
  %1356 = vmatmul.mubr.bf16.gmra.mrb[0].mxu0 %v1321
  %v1357 = vpop.f32.mrb[0].mxu0
  %v1358 = vadd.f32 0.0, %v1357
  %v1359 = vpop.f32.mrb[0].mxu0
  %v1360 = vpop.f32.mrb[0].mxu0
  %v1361 = vadd.f32 0.0, %v1360
  %v1362 = vpop.f32.mrb[0].mxu0
  %1363 = vdwg.mxu0
  %v1364 = vadd.f32 %v1315, %v1358
  %v1365 = vadd.f32 %v1316, %v1361
  %v1366 = vmul.f32 %v1364, 0.5
  %v1367 = vmul.f32 %v1365, 0.5
  %v1368 = vtanh.pop %v1366
  %v1369 = vtanh.pop %v1367
  %v1370 = vmul.f32 %v1368, 0.5
  %v1371 = vmul.f32 %v1369, 0.5
  %v1372 = vadd.f32 %v1370, 0.5
  %v1373 = vadd.f32 %v1371, 0.5
  %v1374 = vtanh.pop %v1364
  %v1375 = vtanh.pop %v1365
  %v1376 = vmul.f32 %v1372, %v1165
  %v1377 = vmul.f32 %v1373, %v1166
  %1380 = vrot.lane.b32.xlu0 %v1374, 64
  %v1381 = vpop.permute.xlu0 %1380
  %1382 = vrot.lane.b32.xlu0 %v1375, 64
  %v1383 = vpop.permute.xlu0 %1382
  %v1386 = vmul.f32 %v1372, %v1381
  %v1387 = vmul.f32 %v1373, %v1383
  %1390 = vrot.lane.b32.xlu0 %v1386, 32
  %v1391 = vpop.permute.xlu0 %1390
  %1392 = vrot.lane.b32.xlu0 %v1387, 32
  %v1393 = vpop.permute.xlu0 %1392
  %v1396 = vadd.f32 %v1376, %v1391
  %v1397 = vadd.f32 %v1377, %v1393
  %v1398 = vtanh.pop %v1396
  %v1399 = vtanh.pop %v1397
  %1402 = vrot.lane.b32.xlu0 %v1398, 64
  %v1403 = vpop.permute.xlu0 %1402
  %1404 = vrot.lane.b32.xlu0 %v1399, 64
  %v1405 = vpop.permute.xlu0 %1404
  %v1408 = vmul.f32 %v1372, %v1403
  %v1409 = vmul.f32 %v1373, %v1405
  %v1410 = vpack.c.bf16 %v1409, %v1408
  %1412 = vrot.lane.b32.xlu0 %v1314, 32
  %v1413 = vpop.permute.xlu0 %1412
  %v1415 = vsel %vm266, %v1413, 0
  %1417 = vmatprep.subr.bf16.mxu0 0
  %1418 = vmatpush1.bf16.msra.mxu0 %v470
  %1419 = vmatprep.subr.bf16.mxu0 0
  %1420 = vmatpush1.bf16.msra.mxu0 %v471
  %1421 = vmatprep.subr.bf16.mxu0 0
  %1422 = vmatpush1.bf16.msra.mxu0 0
  %1423 = vmatprep.subr.bf16.mxu0 0
  %1424 = vmatpush1.bf16.msra.mxu0 0
  %1425 = vmatprep.subr.bf16.mxu0 0
  %1426 = vmatpush1.bf16.msra.mxu0 0
  %1427 = vmatprep.subr.bf16.mxu0 0
  %1428 = vmatpush1.bf16.msra.mxu0 0
  %1429 = vmatprep.subr.bf16.mxu0 0
  %1430 = vmatpush1.bf16.msra.mxu0 0
  %1431 = vmatprep.subr.bf16.mxu0 0
  %1432 = vmatpush1.bf16.msra.mxu0 0
  %1433 = vmatprep.subr.bf16.mxu0 0
  %1434 = vmatpush1.bf16.msra.mxu0 0
  %1435 = vmatprep.subr.bf16.mxu0 0
  %1436 = vmatpush1.bf16.msra.mxu0 0
  %1437 = vmatprep.subr.bf16.mxu0 0
  %1438 = vmatpush1.bf16.msra.mxu0 0
  %1439 = vmatprep.subr.bf16.mxu0 0
  %1440 = vmatpush1.bf16.msra.mxu0 0
  %1441 = vmatprep.subr.bf16.mxu0 0
  %1442 = vmatpush1.bf16.msra.mxu0 0
  %1443 = vmatprep.subr.bf16.mxu0 0
  %1444 = vmatpush1.bf16.msra.mxu0 0
  %1445 = vmatprep.subr.bf16.mxu0 0
  %1446 = vmatpush1.bf16.msra.mxu0 0
  %1447 = vmatprep.subr.bf16.mxu0 0
  %1448 = vmatpush1.bf16.msra.mxu0 0
  %1449 = vmatprep.mubr.bf16.mxu0 0
  %1450 = vmatmul.mubr.bf16.gmra.mrb[0].mxu0 %v1415
  %v1451 = vpop.f32.mrb[0].mxu0
  %v1452 = vadd.f32 0.0, %v1451
  %v1453 = vpop.f32.mrb[0].mxu0
  %v1454 = vpop.f32.mrb[0].mxu0
  %v1455 = vadd.f32 0.0, %v1454
  %v1456 = vpop.f32.mrb[0].mxu0
  %1457 = vdwg.mxu0
  %1458 = vmatprep.subr.bf16.mxu0 0
  %1459 = vmatpush1.bf16.msra.mxu0 %v523
  %1460 = vmatprep.subr.bf16.mxu0 0
  %1461 = vmatpush1.bf16.msra.mxu0 %v524
  %1462 = vmatprep.subr.bf16.mxu0 0
  %1463 = vmatpush1.bf16.msra.mxu0 0
  %1464 = vmatprep.subr.bf16.mxu0 0
  %1465 = vmatpush1.bf16.msra.mxu0 0
  %1466 = vmatprep.subr.bf16.mxu0 0
  %1467 = vmatpush1.bf16.msra.mxu0 0
  %1468 = vmatprep.subr.bf16.mxu0 0
  %1469 = vmatpush1.bf16.msra.mxu0 0
  %1470 = vmatprep.subr.bf16.mxu0 0
  %1471 = vmatpush1.bf16.msra.mxu0 0
  %1472 = vmatprep.subr.bf16.mxu0 0
  %1473 = vmatpush1.bf16.msra.mxu0 0
  %1474 = vmatprep.subr.bf16.mxu0 0
  %1475 = vmatpush1.bf16.msra.mxu0 0
  %1476 = vmatprep.subr.bf16.mxu0 0
  %1477 = vmatpush1.bf16.msra.mxu0 0
  %1478 = vmatprep.subr.bf16.mxu0 0
  %1479 = vmatpush1.bf16.msra.mxu0 0
  %1480 = vmatprep.subr.bf16.mxu0 0
  %1481 = vmatpush1.bf16.msra.mxu0 0
  %1482 = vmatprep.subr.bf16.mxu0 0
  %1483 = vmatpush1.bf16.msra.mxu0 0
  %1484 = vmatprep.subr.bf16.mxu0 0
  %1485 = vmatpush1.bf16.msra.mxu0 0
  %1486 = vmatprep.subr.bf16.mxu0 0
  %1487 = vmatpush1.bf16.msra.mxu0 0
  %1488 = vmatprep.subr.bf16.mxu0 0
  %1489 = vmatpush1.bf16.msra.mxu0 0
  %1490 = vmatprep.mubr.bf16.mxu0 0
  %1491 = vmatmul.mubr.bf16.gmra.mrb[0].mxu0 %v1321
  %v1492 = vpop.f32.mrb[0].mxu0
  %v1493 = vadd.f32 %v1452, %v1492
  %v1494 = vpop.f32.mrb[0].mxu0
  %v1495 = vpop.f32.mrb[0].mxu0
  %v1496 = vadd.f32 %v1455, %v1495
  %v1497 = vpop.f32.mrb[0].mxu0
  %1498 = vdwg.mxu0
  %v1499 = vadd.f32 %v1493, %v573
  %v1500 = vadd.f32 %v1496, %v573
  %v1501 = vmul.f32 %v1499, 0.5
  %v1502 = vmul.f32 %v1500, 0.5
  %v1503 = vtanh.pop %v1501
  %v1504 = vtanh.pop %v1502
  %v1505 = vmul.f32 %v1503, 0.5
  %v1506 = vmul.f32 %v1504, 0.5
  %v1507 = vadd.f32 %v1505, 0.5
  %v1508 = vadd.f32 %v1506, 0.5
  %v1509 = vtanh.pop %v1499
  %v1510 = vtanh.pop %v1500
  %v1511 = vmul.f32 %v1507, %v1300
  %v1512 = vmul.f32 %v1508, %v1301
  %1515 = vrot.lane.b32.xlu0 %v1509, 64
  %v1516 = vpop.permute.xlu0 %1515
  %1517 = vrot.lane.b32.xlu0 %v1510, 64
  %v1518 = vpop.permute.xlu0 %1517
  %v1521 = vmul.f32 %v1507, %v1516
  %v1522 = vmul.f32 %v1508, %v1518
  %1525 = vrot.lane.b32.xlu0 %v1521, 32
  %v1526 = vpop.permute.xlu0 %1525
  %1527 = vrot.lane.b32.xlu0 %v1522, 32
  %v1528 = vpop.permute.xlu0 %1527
  %v1531 = vadd.f32 %v1511, %v1526
  %v1532 = vadd.f32 %v1512, %v1528
  %v1533 = vtanh.pop %v1531
  %v1534 = vtanh.pop %v1532
  %1537 = vrot.lane.b32.xlu0 %v1533, 64
  %v1538 = vpop.permute.xlu0 %1537
  %1539 = vrot.lane.b32.xlu0 %v1534, 64
  %v1540 = vpop.permute.xlu0 %1539
  %v1543 = vmul.f32 %v1507, %v1538
  %v1544 = vmul.f32 %v1508, %v1540
  %v1545 = vpack.c.bf16 %v1544, %v1543
  %v1546 = vld [vmem:[#allocation2 + $0x60] sm:$0xff]
  %v1547 = vld [vmem:[#allocation2 + $0x68] sm:$0xff]
  %1549 = vrot.lane.b32.xlu0 %v1410, 32
  %v1550 = vpop.permute.xlu0 %1549
  %v1552 = vsel %vm266, %v1550, 0
  %1554 = vmatprep.subr.bf16.mxu0 0
  %1555 = vmatpush1.bf16.msra.mxu0 %v262
  %1556 = vmatprep.subr.bf16.mxu0 0
  %1557 = vmatpush1.bf16.msra.mxu0 %v263
  %1558 = vmatprep.subr.bf16.mxu0 0
  %1559 = vmatpush1.bf16.msra.mxu0 0
  %1560 = vmatprep.subr.bf16.mxu0 0
  %1561 = vmatpush1.bf16.msra.mxu0 0
  %1562 = vmatprep.subr.bf16.mxu0 0
  %1563 = vmatpush1.bf16.msra.mxu0 0
  %1564 = vmatprep.subr.bf16.mxu0 0
  %1565 = vmatpush1.bf16.msra.mxu0 0
  %1566 = vmatprep.subr.bf16.mxu0 0
  %1567 = vmatpush1.bf16.msra.mxu0 0
  %1568 = vmatprep.subr.bf16.mxu0 0
  %1569 = vmatpush1.bf16.msra.mxu0 0
  %1570 = vmatprep.subr.bf16.mxu0 0
  %1571 = vmatpush1.bf16.msra.mxu0 0
  %1572 = vmatprep.subr.bf16.mxu0 0
  %1573 = vmatpush1.bf16.msra.mxu0 0
  %1574 = vmatprep.subr.bf16.mxu0 0
  %1575 = vmatpush1.bf16.msra.mxu0 0
  %1576 = vmatprep.subr.bf16.mxu0 0
  %1577 = vmatpush1.bf16.msra.mxu0 0
  %1578 = vmatprep.subr.bf16.mxu0 0
  %1579 = vmatpush1.bf16.msra.mxu0 0
  %1580 = vmatprep.subr.bf16.mxu0 0
  %1581 = vmatpush1.bf16.msra.mxu0 0
  %1582 = vmatprep.subr.bf16.mxu0 0
  %1583 = vmatpush1.bf16.msra.mxu0 0
  %1584 = vmatprep.subr.bf16.mxu0 0
  %1585 = vmatpush1.bf16.msra.mxu0 0
  %1586 = vmatprep.mubr.bf16.mxu0 0
  %1587 = vmatmul.mubr.bf16.gmra.mrb[0].mxu0 %v1552
  %v1588 = vpop.f32.mrb[0].mxu0
  %v1589 = vadd.f32 0.0, %v1588
  %v1590 = vpop.f32.mrb[0].mxu0
  %v1591 = vpop.f32.mrb[0].mxu0
  %v1592 = vadd.f32 0.0, %v1591
  %v1593 = vpop.f32.mrb[0].mxu0
  %1594 = vdwg.mxu0
  %v1595 = vadd.f32 %v1546, %v1589
  %v1596 = vadd.f32 %v1547, %v1592
  %v1597 = vmul.f32 %v1595, 0.5
  %v1598 = vmul.f32 %v1596, 0.5
  %v1599 = vtanh.pop %v1597
  %v1600 = vtanh.pop %v1598
  %v1601 = vmul.f32 %v1599, 0.5
  %v1602 = vmul.f32 %v1600, 0.5
  %v1603 = vadd.f32 %v1601, 0.5
  %v1604 = vadd.f32 %v1602, 0.5
  %v1605 = vtanh.pop %v1595
  %v1606 = vtanh.pop %v1596
  %v1607 = vmul.f32 %v1603, %v1396
  %v1608 = vmul.f32 %v1604, %v1397
  %1611 = vrot.lane.b32.xlu0 %v1605, 64
  %v1612 = vpop.permute.xlu0 %1611
  %1613 = vrot.lane.b32.xlu0 %v1606, 64
  %v1614 = vpop.permute.xlu0 %1613
  %v1617 = vmul.f32 %v1603, %v1612
  %v1618 = vmul.f32 %v1604, %v1614
  %1621 = vrot.lane.b32.xlu0 %v1617, 32
  %v1622 = vpop.permute.xlu0 %1621
  %1623 = vrot.lane.b32.xlu0 %v1618, 32
  %v1624 = vpop.permute.xlu0 %1623
  %v1627 = vadd.f32 %v1607, %v1622
  %v1628 = vadd.f32 %v1608, %v1624
  %v1629 = vtanh.pop %v1627
  %v1630 = vtanh.pop %v1628
  %1633 = vrot.lane.b32.xlu0 %v1629, 64
  %v1634 = vpop.permute.xlu0 %1633
  %1635 = vrot.lane.b32.xlu0 %v1630, 64
  %v1636 = vpop.permute.xlu0 %1635
  %v1639 = vmul.f32 %v1603, %v1634
  %v1640 = vmul.f32 %v1604, %v1636
  %v1641 = vpack.c.bf16 %v1640, %v1639
  %1643 = vrot.lane.b32.xlu0 %v1545, 32
  %v1644 = vpop.permute.xlu0 %1643
  %v1646 = vsel %vm266, %v1644, 0
  %1648 = vmatprep.subr.bf16.mxu0 0
  %1649 = vmatpush1.bf16.msra.mxu0 %v470
  %1650 = vmatprep.subr.bf16.mxu0 0
  %1651 = vmatpush1.bf16.msra.mxu0 %v471
  %1652 = vmatprep.subr.bf16.mxu0 0
  %1653 = vmatpush1.bf16.msra.mxu0 0
  %1654 = vmatprep.subr.bf16.mxu0 0
  %1655 = vmatpush1.bf16.msra.mxu0 0
  %1656 = vmatprep.subr.bf16.mxu0 0
  %1657 = vmatpush1.bf16.msra.mxu0 0
  %1658 = vmatprep.subr.bf16.mxu0 0
  %1659 = vmatpush1.bf16.msra.mxu0 0
  %1660 = vmatprep.subr.bf16.mxu0 0
  %1661 = vmatpush1.bf16.msra.mxu0 0
  %1662 = vmatprep.subr.bf16.mxu0 0
  %1663 = vmatpush1.bf16.msra.mxu0 0
  %1664 = vmatprep.subr.bf16.mxu0 0
  %1665 = vmatpush1.bf16.msra.mxu0 0
  %1666 = vmatprep.subr.bf16.mxu0 0
  %1667 = vmatpush1.bf16.msra.mxu0 0
  %1668 = vmatprep.subr.bf16.mxu0 0
  %1669 = vmatpush1.bf16.msra.mxu0 0
  %1670 = vmatprep.subr.bf16.mxu0 0
  %1671 = vmatpush1.bf16.msra.mxu0 0
  %1672 = vmatprep.subr.bf16.mxu0 0
  %1673 = vmatpush1.bf16.msra.mxu0 0
  %1674 = vmatprep.subr.bf16.mxu0 0
  %1675 = vmatpush1.bf16.msra.mxu0 0
  %1676 = vmatprep.subr.bf16.mxu0 0
  %1677 = vmatpush1.bf16.msra.mxu0 0
  %1678 = vmatprep.subr.bf16.mxu0 0
  %1679 = vmatpush1.bf16.msra.mxu0 0
  %1680 = vmatprep.mubr.bf16.mxu0 0
  %1681 = vmatmul.mubr.bf16.gmra.mrb[0].mxu0 %v1646
  %v1682 = vpop.f32.mrb[0].mxu0
  %v1683 = vadd.f32 0.0, %v1682
  %v1684 = vpop.f32.mrb[0].mxu0
  %v1685 = vpop.f32.mrb[0].mxu0
  %v1686 = vadd.f32 0.0, %v1685
  %v1687 = vpop.f32.mrb[0].mxu0
  %1688 = vdwg.mxu0
  %1689 = vmatprep.subr.bf16.mxu0 0
  %1690 = vmatpush1.bf16.msra.mxu0 %v523
  %1691 = vmatprep.subr.bf16.mxu0 0
  %1692 = vmatpush1.bf16.msra.mxu0 %v524
  %1693 = vmatprep.subr.bf16.mxu0 0
  %1694 = vmatpush1.bf16.msra.mxu0 0
  %1695 = vmatprep.subr.bf16.mxu0 0
  %1696 = vmatpush1.bf16.msra.mxu0 0
  %1697 = vmatprep.subr.bf16.mxu0 0
  %1698 = vmatpush1.bf16.msra.mxu0 0
  %1699 = vmatprep.subr.bf16.mxu0 0
  %1700 = vmatpush1.bf16.msra.mxu0 0
  %1701 = vmatprep.subr.bf16.mxu0 0
  %1702 = vmatpush1.bf16.msra.mxu0 0
  %1703 = vmatprep.subr.bf16.mxu0 0
  %1704 = vmatpush1.bf16.msra.mxu0 0
  %1705 = vmatprep.subr.bf16.mxu0 0
  %1706 = vmatpush1.bf16.msra.mxu0 0
  %1707 = vmatprep.subr.bf16.mxu0 0
  %1708 = vmatpush1.bf16.msra.mxu0 0
  %1709 = vmatprep.subr.bf16.mxu0 0
  %1710 = vmatpush1.bf16.msra.mxu0 0
  %1711 = vmatprep.subr.bf16.mxu0 0
  %1712 = vmatpush1.bf16.msra.mxu0 0
  %1713 = vmatprep.subr.bf16.mxu0 0
  %1714 = vmatpush1.bf16.msra.mxu0 0
  %1715 = vmatprep.subr.bf16.mxu0 0
  %1716 = vmatpush1.bf16.msra.mxu0 0
  %1717 = vmatprep.subr.bf16.mxu0 0
  %1718 = vmatpush1.bf16.msra.mxu0 0
  %1719 = vmatprep.subr.bf16.mxu0 0
  %1720 = vmatpush1.bf16.msra.mxu0 0
  %1721 = vmatprep.mubr.bf16.mxu0 0
  %1722 = vmatmul.mubr.bf16.gmra.mrb[0].mxu0 %v1552
  %v1723 = vpop.f32.mrb[0].mxu0
  %v1724 = vadd.f32 %v1683, %v1723
  %v1725 = vpop.f32.mrb[0].mxu0
  %v1726 = vpop.f32.mrb[0].mxu0
  %v1727 = vadd.f32 %v1686, %v1726
  %v1728 = vpop.f32.mrb[0].mxu0
  %1729 = vdwg.mxu0
  %v1730 = vadd.f32 %v1724, %v573
  %v1731 = vadd.f32 %v1727, %v573
  %v1732 = vmul.f32 %v1730, 0.5
  %v1733 = vmul.f32 %v1731, 0.5
  %v1734 = vtanh.pop %v1732
  %v1735 = vtanh.pop %v1733
  %v1736 = vmul.f32 %v1734, 0.5
  %v1737 = vmul.f32 %v1735, 0.5
  %v1738 = vadd.f32 %v1736, 0.5
  %v1739 = vadd.f32 %v1737, 0.5
  %v1740 = vtanh.pop %v1730
  %v1741 = vtanh.pop %v1731
  %v1742 = vmul.f32 %v1738, %v1531
  %v1743 = vmul.f32 %v1739, %v1532
  %1746 = vrot.lane.b32.xlu0 %v1740, 64
  %v1747 = vpop.permute.xlu0 %1746
  %1748 = vrot.lane.b32.xlu0 %v1741, 64
  %v1749 = vpop.permute.xlu0 %1748
  %v1752 = vmul.f32 %v1738, %v1747
  %v1753 = vmul.f32 %v1739, %v1749
  %1756 = vrot.lane.b32.xlu0 %v1752, 32
  %v1757 = vpop.permute.xlu0 %1756
  %1758 = vrot.lane.b32.xlu0 %v1753, 32
  %v1759 = vpop.permute.xlu0 %1758
  %v1762 = vadd.f32 %v1742, %v1757
  %v1763 = vadd.f32 %v1743, %v1759
  %v1764 = vtanh.pop %v1762
  %v1765 = vtanh.pop %v1763
  %1768 = vrot.lane.b32.xlu0 %v1764, 64
  %v1769 = vpop.permute.xlu0 %1768
  %1770 = vrot.lane.b32.xlu0 %v1765, 64
  %v1771 = vpop.permute.xlu0 %1770
  %v1774 = vmul.f32 %v1738, %v1769
  %v1775 = vmul.f32 %v1739, %v1771
  %v1776 = vpack.c.bf16 %v1775, %v1774
  %v1777 = vld [vmem:[#allocation2 + $0x70] sm:$0xff]
  %v1778 = vld [vmem:[#allocation2 + $0x78] sm:$0xff]
  %1780 = vrot.lane.b32.xlu0 %v1641, 32
  %v1781 = vpop.permute.xlu0 %1780
  %v1783 = vsel %vm266, %v1781, 0
  %1785 = vmatprep.subr.bf16.mxu0 0
  %1786 = vmatpush1.bf16.msra.mxu0 %v262
  %1787 = vmatprep.subr.bf16.mxu0 0
  %1788 = vmatpush1.bf16.msra.mxu0 %v263
  %1789 = vmatprep.subr.bf16.mxu0 0
  %1790 = vmatpush1.bf16.msra.mxu0 0
  %1791 = vmatprep.subr.bf16.mxu0 0
  %1792 = vmatpush1.bf16.msra.mxu0 0
  %1793 = vmatprep.subr.bf16.mxu0 0
  %1794 = vmatpush1.bf16.msra.mxu0 0
  %1795 = vmatprep.subr.bf16.mxu0 0
  %1796 = vmatpush1.bf16.msra.mxu0 0
  %1797 = vmatprep.subr.bf16.mxu0 0
  %1798 = vmatpush1.bf16.msra.mxu0 0
  %1799 = vmatprep.subr.bf16.mxu0 0
  %1800 = vmatpush1.bf16.msra.mxu0 0
  %1801 = vmatprep.subr.bf16.mxu0 0
  %1802 = vmatpush1.bf16.msra.mxu0 0
  %1803 = vmatprep.subr.bf16.mxu0 0
  %1804 = vmatpush1.bf16.msra.mxu0 0
  %1805 = vmatprep.subr.bf16.mxu0 0
  %1806 = vmatpush1.bf16.msra.mxu0 0
  %1807 = vmatprep.subr.bf16.mxu0 0
  %1808 = vmatpush1.bf16.msra.mxu0 0
  %1809 = vmatprep.subr.bf16.mxu0 0
  %1810 = vmatpush1.bf16.msra.mxu0 0
  %1811 = vmatprep.subr.bf16.mxu0 0
  %1812 = vmatpush1.bf16.msra.mxu0 0
  %1813 = vmatprep.subr.bf16.mxu0 0
  %1814 = vmatpush1.bf16.msra.mxu0 0
  %1815 = vmatprep.subr.bf16.mxu0 0
  %1816 = vmatpush1.bf16.msra.mxu0 0
  %1817 = vmatprep.mubr.bf16.mxu0 0
  %1818 = vmatmul.mubr.bf16.gmra.mrb[0].mxu0 %v1783
  %v1819 = vpop.f32.mrb[0].mxu0
  %v1820 = vadd.f32 0.0, %v1819
  %v1821 = vpop.f32.mrb[0].mxu0
  %v1822 = vpop.f32.mrb[0].mxu0
  %v1823 = vadd.f32 0.0, %v1822
  %v1824 = vpop.f32.mrb[0].mxu0
  %1825 = vdwg.mxu0
  %v1826 = vadd.f32 %v1777, %v1820
  %v1827 = vadd.f32 %v1778, %v1823
  %v1828 = vmul.f32 %v1826, 0.5
  %v1829 = vmul.f32 %v1827, 0.5
  %v1830 = vtanh.pop %v1828
  %v1831 = vtanh.pop %v1829
  %v1832 = vmul.f32 %v1830, 0.5
  %v1833 = vmul.f32 %v1831, 0.5
  %v1834 = vadd.f32 %v1832, 0.5
  %v1835 = vadd.f32 %v1833, 0.5
  %v1836 = vtanh.pop %v1826
  %v1837 = vtanh.pop %v1827
  %v1838 = vmul.f32 %v1834, %v1627
  %v1839 = vmul.f32 %v1835, %v1628
  %1842 = vrot.lane.b32.xlu0 %v1836, 64
  %v1843 = vpop.permute.xlu0 %1842
  %1844 = vrot.lane.b32.xlu0 %v1837, 64
  %v1845 = vpop.permute.xlu0 %1844
  %v1848 = vmul.f32 %v1834, %v1843
  %v1849 = vmul.f32 %v1835, %v1845
  %1852 = vrot.lane.b32.xlu0 %v1848, 32
  %v1853 = vpop.permute.xlu0 %1852
  %1854 = vrot.lane.b32.xlu0 %v1849, 32
  %v1855 = vpop.permute.xlu0 %1854
  %v1858 = vadd.f32 %v1838, %v1853
  %v1859 = vadd.f32 %v1839, %v1855
  %v1860 = vtanh.pop %v1858
  %v1861 = vtanh.pop %v1859
  %1864 = vrot.lane.b32.xlu0 %v1860, 64
  %v1865 = vpop.permute.xlu0 %1864
  %1866 = vrot.lane.b32.xlu0 %v1861, 64
  %v1867 = vpop.permute.xlu0 %1866
  %v1870 = vmul.f32 %v1834, %v1865
  %v1871 = vmul.f32 %v1835, %v1867
  %v1872 = vpack.c.bf16 %v1871, %v1870
  %1874 = vrot.lane.b32.xlu0 %v1776, 32
  %v1875 = vpop.permute.xlu0 %1874
  %v1877 = vsel %vm266, %v1875, 0
  %1879 = vmatprep.subr.bf16.mxu0 0
  %1880 = vmatpush1.bf16.msra.mxu0 %v470
  %1881 = vmatprep.subr.bf16.mxu0 0
  %1882 = vmatpush1.bf16.msra.mxu0 %v471
  %1883 = vmatprep.subr.bf16.mxu0 0
  %1884 = vmatpush1.bf16.msra.mxu0 0
  %1885 = vmatprep.subr.bf16.mxu0 0
  %1886 = vmatpush1.bf16.msra.mxu0 0
  %1887 = vmatprep.subr.bf16.mxu0 0
  %1888 = vmatpush1.bf16.msra.mxu0 0
  %1889 = vmatprep.subr.bf16.mxu0 0
  %1890 = vmatpush1.bf16.msra.mxu0 0
  %1891 = vmatprep.subr.bf16.mxu0 0
  %1892 = vmatpush1.bf16.msra.mxu0 0
  %1893 = vmatprep.subr.bf16.mxu0 0
  %1894 = vmatpush1.bf16.msra.mxu0 0
  %1895 = vmatprep.subr.bf16.mxu0 0
  %1896 = vmatpush1.bf16.msra.mxu0 0
  %1897 = vmatprep.subr.bf16.mxu0 0
  %1898 = vmatpush1.bf16.msra.mxu0 0
  %1899 = vmatprep.subr.bf16.mxu0 0
  %1900 = vmatpush1.bf16.msra.mxu0 0
  %1901 = vmatprep.subr.bf16.mxu0 0
  %1902 = vmatpush1.bf16.msra.mxu0 0
  %1903 = vmatprep.subr.bf16.mxu0 0
  %1904 = vmatpush1.bf16.msra.mxu0 0
  %1905 = vmatprep.subr.bf16.mxu0 0
  %1906 = vmatpush1.bf16.msra.mxu0 0
  %1907 = vmatprep.subr.bf16.mxu0 0
  %1908 = vmatpush1.bf16.msra.mxu0 0
  %1909 = vmatprep.subr.bf16.mxu0 0
  %1910 = vmatpush1.bf16.msra.mxu0 0
  %1911 = vmatprep.mubr.bf16.mxu0 0
  %1912 = vmatmul.mubr.bf16.gmra.mrb[0].mxu0 %v1877
  %v1913 = vpop.f32.mrb[0].mxu0
  %v1914 = vadd.f32 0.0, %v1913
  %v1915 = vpop.f32.mrb[0].mxu0
  %v1916 = vpop.f32.mrb[0].mxu0
  %v1917 = vadd.f32 0.0, %v1916
  %v1918 = vpop.f32.mrb[0].mxu0
  %1919 = vdwg.mxu0
  %1920 = vmatprep.subr.bf16.mxu0 0
  %1921 = vmatpush1.bf16.msra.mxu0 %v523
  %1922 = vmatprep.subr.bf16.mxu0 0
  %1923 = vmatpush1.bf16.msra.mxu0 %v524
  %1924 = vmatprep.subr.bf16.mxu0 0
  %1925 = vmatpush1.bf16.msra.mxu0 0
  %1926 = vmatprep.subr.bf16.mxu0 0
  %1927 = vmatpush1.bf16.msra.mxu0 0
  %1928 = vmatprep.subr.bf16.mxu0 0
  %1929 = vmatpush1.bf16.msra.mxu0 0
  %1930 = vmatprep.subr.bf16.mxu0 0
  %1931 = vmatpush1.bf16.msra.mxu0 0
  %1932 = vmatprep.subr.bf16.mxu0 0
  %1933 = vmatpush1.bf16.msra.mxu0 0
  %1934 = vmatprep.subr.bf16.mxu0 0
  %1935 = vmatpush1.bf16.msra.mxu0 0
  %1936 = vmatprep.subr.bf16.mxu0 0
  %1937 = vmatpush1.bf16.msra.mxu0 0
  %1938 = vmatprep.subr.bf16.mxu0 0
  %1939 = vmatpush1.bf16.msra.mxu0 0
  %1940 = vmatprep.subr.bf16.mxu0 0
  %1941 = vmatpush1.bf16.msra.mxu0 0
  %1942 = vmatprep.subr.bf16.mxu0 0
  %1943 = vmatpush1.bf16.msra.mxu0 0
  %1944 = vmatprep.subr.bf16.mxu0 0
  %1945 = vmatpush1.bf16.msra.mxu0 0
  %1946 = vmatprep.subr.bf16.mxu0 0
  %1947 = vmatpush1.bf16.msra.mxu0 0
  %1948 = vmatprep.subr.bf16.mxu0 0
  %1949 = vmatpush1.bf16.msra.mxu0 0
  %1950 = vmatprep.subr.bf16.mxu0 0
  %1951 = vmatpush1.bf16.msra.mxu0 0
  %1952 = vmatprep.mubr.bf16.mxu0 0
  %1953 = vmatmul.mubr.bf16.gmra.mrb[0].mxu0 %v1783
  %v1954 = vpop.f32.mrb[0].mxu0
  %v1955 = vadd.f32 %v1914, %v1954
  %v1956 = vpop.f32.mrb[0].mxu0
  %v1957 = vpop.f32.mrb[0].mxu0
  %v1958 = vadd.f32 %v1917, %v1957
  %v1959 = vpop.f32.mrb[0].mxu0
  %1960 = vdwg.mxu0
  %v1961 = vadd.f32 %v1955, %v573
  %v1962 = vadd.f32 %v1958, %v573
  %v1963 = vmul.f32 %v1961, 0.5
  %v1964 = vmul.f32 %v1962, 0.5
  %v1965 = vtanh.pop %v1963
  %v1966 = vtanh.pop %v1964
  %v1967 = vmul.f32 %v1965, 0.5
  %v1968 = vmul.f32 %v1966, 0.5
  %v1969 = vadd.f32 %v1967, 0.5
  %v1970 = vadd.f32 %v1968, 0.5
  %v1971 = vtanh.pop %v1961
  %v1972 = vtanh.pop %v1962
  %v1973 = vmul.f32 %v1969, %v1762
  %v1974 = vmul.f32 %v1970, %v1763
  %1977 = vrot.lane.b32.xlu0 %v1971, 64
  %v1978 = vpop.permute.xlu0 %1977
  %1979 = vrot.lane.b32.xlu0 %v1972, 64
  %v1980 = vpop.permute.xlu0 %1979
  %v1983 = vmul.f32 %v1969, %v1978
  %v1984 = vmul.f32 %v1970, %v1980
  %1987 = vrot.lane.b32.xlu0 %v1983, 32
  %v1988 = vpop.permute.xlu0 %1987
  %1989 = vrot.lane.b32.xlu0 %v1984, 32
  %v1990 = vpop.permute.xlu0 %1989
  %v1993 = vadd.f32 %v1973, %v1988
  %v1994 = vadd.f32 %v1974, %v1990
  %v1995 = vtanh.pop %v1993
  %v1996 = vtanh.pop %v1994
  %1999 = vrot.lane.b32.xlu0 %v1995, 64
  %v2000 = vpop.permute.xlu0 %1999
  %2001 = vrot.lane.b32.xlu0 %v1996, 64
  %v2002 = vpop.permute.xlu0 %2001
  %v2005 = vmul.f32 %v1969, %v2000
  %v2006 = vmul.f32 %v1970, %v2002
  %v2007 = vpack.c.bf16 %v2006, %v2005
  %2009 = vrot.lane.b32.xlu0 %v2007, 32
  %v2010 = vpop.permute.xlu0 %2009
  %v2012 = vsel %vm266, %v2010, 0
  %2014 = vmatprep.subr.bf16.mxu0 0
  %2015 = vmatpush1.bf16.msra.mxu0 %v470
  %2016 = vmatprep.subr.bf16.mxu0 0
  %2017 = vmatpush1.bf16.msra.mxu0 %v471
  %2018 = vmatprep.subr.bf16.mxu0 0
  %2019 = vmatpush1.bf16.msra.mxu0 0
  %2020 = vmatprep.subr.bf16.mxu0 0
  %2021 = vmatpush1.bf16.msra.mxu0 0
  %2022 = vmatprep.subr.bf16.mxu0 0
  %2023 = vmatpush1.bf16.msra.mxu0 0
  %2024 = vmatprep.subr.bf16.mxu0 0
  %2025 = vmatpush1.bf16.msra.mxu0 0
  %2026 = vmatprep.subr.bf16.mxu0 0
  %2027 = vmatpush1.bf16.msra.mxu0 0
  %2028 = vmatprep.subr.bf16.mxu0 0
  %2029 = vmatpush1.bf16.msra.mxu0 0
  %2030 = vmatprep.subr.bf16.mxu0 0
  %2031 = vmatpush1.bf16.msra.mxu0 0
  %2032 = vmatprep.subr.bf16.mxu0 0
  %2033 = vmatpush1.bf16.msra.mxu0 0
  %2034 = vmatprep.subr.bf16.mxu0 0
  %2035 = vmatpush1.bf16.msra.mxu0 0
  %2036 = vmatprep.subr.bf16.mxu0 0
  %2037 = vmatpush1.bf16.msra.mxu0 0
  %2038 = vmatprep.subr.bf16.mxu0 0
  %2039 = vmatpush1.bf16.msra.mxu0 0
  %2040 = vmatprep.subr.bf16.mxu0 0
  %2041 = vmatpush1.bf16.msra.mxu0 0
  %2042 = vmatprep.subr.bf16.mxu0 0
  %2043 = vmatpush1.bf16.msra.mxu0 0
  %2044 = vmatprep.subr.bf16.mxu0 0
  %2045 = vmatpush1.bf16.msra.mxu0 0
  %2046 = vmatprep.mubr.bf16.mxu0 0
  %2047 = vmatmul.mubr.bf16.gmra.mrb[0].mxu0 %v2012
  %v2048 = vpop.f32.mrb[0].mxu0
  %v2049 = vadd.f32 0.0, %v2048
  %v2050 = vpop.f32.mrb[0].mxu0
  %v2051 = vpop.f32.mrb[0].mxu0
  %v2052 = vadd.f32 0.0, %v2051
  %v2053 = vpop.f32.mrb[0].mxu0
  %2054 = vdwg.mxu0
  %2056 = vrot.lane.b32.xlu0 %v1872, 32
  %v2057 = vpop.permute.xlu0 %2056
  %v2059 = vsel %vm266, %v2057, 0
  %2061 = vmatprep.subr.bf16.mxu0 0
  %2062 = vmatpush1.bf16.msra.mxu0 %v523
  %2063 = vmatprep.subr.bf16.mxu0 0
  %2064 = vmatpush1.bf16.msra.mxu0 %v524
  %2065 = vmatprep.subr.bf16.mxu0 0
  %2066 = vmatpush1.bf16.msra.mxu0 0
  %2067 = vmatprep.subr.bf16.mxu0 0
  %2068 = vmatpush1.bf16.msra.mxu0 0
  %2069 = vmatprep.subr.bf16.mxu0 0
  %2070 = vmatpush1.bf16.msra.mxu0 0
  %2071 = vmatprep.subr.bf16.mxu0 0
  %2072 = vmatpush1.bf16.msra.mxu0 0
  %2073 = vmatprep.subr.bf16.mxu0 0
  %2074 = vmatpush1.bf16.msra.mxu0 0
  %2075 = vmatprep.subr.bf16.mxu0 0
  %2076 = vmatpush1.bf16.msra.mxu0 0
  %2077 = vmatprep.subr.bf16.mxu0 0
  %2078 = vmatpush1.bf16.msra.mxu0 0
  %2079 = vmatprep.subr.bf16.mxu0 0
  %2080 = vmatpush1.bf16.msra.mxu0 0
  %2081 = vmatprep.subr.bf16.mxu0 0
  %2082 = vmatpush1.bf16.msra.mxu0 0
  %2083 = vmatprep.subr.bf16.mxu0 0
  %2084 = vmatpush1.bf16.msra.mxu0 0
  %2085 = vmatprep.subr.bf16.mxu0 0
  %2086 = vmatpush1.bf16.msra.mxu0 0
  %2087 = vmatprep.subr.bf16.mxu0 0
  %2088 = vmatpush1.bf16.msra.mxu0 0
  %2089 = vmatprep.subr.bf16.mxu0 0
  %2090 = vmatpush1.bf16.msra.mxu0 0
  %2091 = vmatprep.subr.bf16.mxu0 0
  %2092 = vmatpush1.bf16.msra.mxu0 0
  %2093 = vmatprep.mubr.bf16.mxu0 0
  %2094 = vmatmul.mubr.bf16.gmra.mrb[0].mxu0 %v2059
  %v2095 = vpop.f32.mrb[0].mxu0
  %v2096 = vadd.f32 %v2049, %v2095
  %v2097 = vpop.f32.mrb[0].mxu0
  %v2098 = vpop.f32.mrb[0].mxu0
  %v2099 = vadd.f32 %v2052, %v2098
  %v2100 = vpop.f32.mrb[0].mxu0
  %2101 = vdwg.mxu0
  %v2102 = vadd.f32 %v2096, %v573
  %v2103 = vadd.f32 %v2099, %v573
  %v2104 = vmul.f32 %v2102, 0.5
  %v2105 = vmul.f32 %v2103, 0.5
  %v2106 = vtanh.pop %v2104
  %v2107 = vtanh.pop %v2105
  %v2108 = vmul.f32 %v2106, 0.5
  %v2109 = vmul.f32 %v2107, 0.5
  %v2110 = vadd.f32 %v2108, 0.5
  %v2111 = vadd.f32 %v2109, 0.5
  %v2112 = vtanh.pop %v2102
  %v2113 = vtanh.pop %v2103
  %v2114 = vmul.f32 %v2110, %v1993
  %v2115 = vmul.f32 %v2111, %v1994
  %2118 = vrot.lane.b32.xlu0 %v2112, 64
  %v2119 = vpop.permute.xlu0 %2118
  %2120 = vrot.lane.b32.xlu0 %v2113, 64
  %v2121 = vpop.permute.xlu0 %2120
  %v2124 = vmul.f32 %v2110, %v2119
  %v2125 = vmul.f32 %v2111, %v2121
  %2128 = vrot.lane.b32.xlu0 %v2124, 32
  %v2129 = vpop.permute.xlu0 %2128
  %2130 = vrot.lane.b32.xlu0 %v2125, 32
  %v2131 = vpop.permute.xlu0 %2130
  %v2134 = vadd.f32 %v2114, %v2129
  %v2135 = vadd.f32 %v2115, %v2131
  %v2136 = vtanh.pop %v2134
  %v2137 = vtanh.pop %v2135
  %2140 = vrot.lane.b32.xlu0 %v2136, 64
  %v2141 = vpop.permute.xlu0 %2140
  %2142 = vrot.lane.b32.xlu0 %v2137, 64
  %v2143 = vpop.permute.xlu0 %2142
  %v2146 = vmul.f32 %v2110, %v2141
  %v2147 = vmul.f32 %v2111, %v2143
  %v2148 = vpack.c.bf16 %v2147, %v2146
  %v2149 = vld [vmem:[%s7] sm:$0xf]
  %v2150 = vld [vmem:[%s7 + $0x4] sm:$0xf]
  %v2151 = vld [vmem:[%s7 + $0x8] sm:$0xf]
  %v2152 = vld [vmem:[%s7 + $0xc] sm:$0xf]
  %v2153 = vld [vmem:[%s8] sm:$0x1]
  %v2155 = vlaneseq
  %v2156 = vshrl.u32 %v2155, 7
  %v2157 = vsub.s32 0, %v2156
  %v2158 = vrot.slane %v2153, %v2157
  %2161 = vrot.lane.b32.xlu0 %v2148, 32
  %v2162 = vpop.permute.xlu0 %2161
  %v2167 = vunpack.c.l.b16 %v2149
  %v2168 = vunpack.c.l.b16 %v2150
  %v2169 = vunpack.c.l.b16 %v2151
  %v2170 = vunpack.c.l.b16 %v2152
  %v2171 = vpack.c.b16 %v2168, %v2167
  %v2172 = vpack.c.b16 %v2170, %v2169
  %v2176 = vsel %vm266, %v2162, 0
  %2178 = vmatprep.subr.bf16.mxu0 0
  %2179 = vmatpush1.bf16.msra.mxu0 %v2171
  %2180 = vmatprep.subr.bf16.mxu0 0
  %2181 = vmatpush1.bf16.msra.mxu0 %v2172
  %2182 = vmatprep.subr.bf16.mxu0 0
  %2183 = vmatpush1.bf16.msra.mxu0 0
  %2184 = vmatprep.subr.bf16.mxu0 0
  %2185 = vmatpush1.bf16.msra.mxu0 0
  %2186 = vmatprep.subr.bf16.mxu0 0
  %2187 = vmatpush1.bf16.msra.mxu0 0
  %2188 = vmatprep.subr.bf16.mxu0 0
  %2189 = vmatpush1.bf16.msra.mxu0 0
  %2190 = vmatprep.subr.bf16.mxu0 0
  %2191 = vmatpush1.bf16.msra.mxu0 0
  %2192 = vmatprep.subr.bf16.mxu0 0
  %2193 = vmatpush1.bf16.msra.mxu0 0
  %2194 = vmatprep.subr.bf16.mxu0 0
  %2195 = vmatpush1.bf16.msra.mxu0 0
  %2196 = vmatprep.subr.bf16.mxu0 0
  %2197 = vmatpush1.bf16.msra.mxu0 0
  %2198 = vmatprep.subr.bf16.mxu0 0
  %2199 = vmatpush1.bf16.msra.mxu0 0
  %2200 = vmatprep.subr.bf16.mxu0 0
  %2201 = vmatpush1.bf16.msra.mxu0 0
  %2202 = vmatprep.subr.bf16.mxu0 0
  %2203 = vmatpush1.bf16.msra.mxu0 0
  %2204 = vmatprep.subr.bf16.mxu0 0
  %2205 = vmatpush1.bf16.msra.mxu0 0
  %2206 = vmatprep.subr.bf16.mxu0 0
  %2207 = vmatpush1.bf16.msra.mxu0 0
  %2208 = vmatprep.subr.bf16.mxu0 0
  %2209 = vmatpush1.bf16.msra.mxu0 0
  %2210 = vmatprep.mubr.bf16.mxu0 0
  %2211 = vmatmul.mubr.bf16.gmra.mrb[0].mxu0 %v2176
  %v2212 = vpop.f32.mrb[0].mxu0
  %v2213 = vadd.f32 %v2158, %v2212
  %v2214 = vpop.f32.mrb[0].mxu0
  %v2215 = vpop.f32.mrb[0].mxu0
  %v2216 = vadd.f32 %v2158, %v2215
  %v2217 = vpop.f32.mrb[0].mxu0
  %2218 = vdwg.mxu0
  %v2219 = vmax.f32 %v2213, 0.0
  %v2220 = vmax.f32 %v2216, 0.0
  %v2221 = vpack.c.bf16 %v2220, %v2219
  %v2222 = vld [vmem:[%s9] sm:$0xf]
  %v2223 = vld [vmem:[%s9 + $0x4] sm:$0xf]
  %v2224 = vld [vmem:[%s9 + $0x8] sm:$0xf]
  %v2225 = vld [vmem:[%s9 + $0xc] sm:$0xf]
  %v2226 = vld [vmem:[%s10] sm:$0x1]
  %v2228 = vlaneseq
  %v2229 = vshrl.u32 %v2228, 7
  %v2230 = vsub.s32 0, %v2229
  %v2231 = vrot.slane %v2226, %v2230
  %v2237 = vunpack.c.l.b16 %v2222
  %v2238 = vunpack.c.l.b16 %v2223
  %v2239 = vunpack.c.l.b16 %v2224
  %v2240 = vunpack.c.l.b16 %v2225
  %v2241 = vpack.c.b16 %v2238, %v2237
  %v2242 = vpack.c.b16 %v2240, %v2239
  %v2246 = vsel %vm266, %v2221, 0
  %2248 = vmatprep.subr.bf16.mxu0 0
  %2249 = vmatpush1.bf16.msra.mxu0 %v2241
  %2250 = vmatprep.subr.bf16.mxu0 0
  %2251 = vmatpush1.bf16.msra.mxu0 %v2242
  %2252 = vmatprep.subr.bf16.mxu0 0
  %2253 = vmatpush1.bf16.msra.mxu0 0
  %2254 = vmatprep.subr.bf16.mxu0 0
  %2255 = vmatpush1.bf16.msra.mxu0 0
  %2256 = vmatprep.subr.bf16.mxu0 0
  %2257 = vmatpush1.bf16.msra.mxu0 0
  %2258 = vmatprep.subr.bf16.mxu0 0
  %2259 = vmatpush1.bf16.msra.mxu0 0
  %2260 = vmatprep.subr.bf16.mxu0 0
  %2261 = vmatpush1.bf16.msra.mxu0 0
  %2262 = vmatprep.subr.bf16.mxu0 0
  %2263 = vmatpush1.bf16.msra.mxu0 0
  %2264 = vmatprep.subr.bf16.mxu0 0
  %2265 = vmatpush1.bf16.msra.mxu0 0
  %2266 = vmatprep.subr.bf16.mxu0 0
  %2267 = vmatpush1.bf16.msra.mxu0 0
  %2268 = vmatprep.subr.bf16.mxu0 0
  %2269 = vmatpush1.bf16.msra.mxu0 0
  %2270 = vmatprep.subr.bf16.mxu0 0
  %2271 = vmatpush1.bf16.msra.mxu0 0
  %2272 = vmatprep.subr.bf16.mxu0 0
  %2273 = vmatpush1.bf16.msra.mxu0 0
  %2274 = vmatprep.subr.bf16.mxu0 0
  %2275 = vmatpush1.bf16.msra.mxu0 0
  %2276 = vmatprep.subr.bf16.mxu0 0
  %2277 = vmatpush1.bf16.msra.mxu0 0
  %2278 = vmatprep.subr.bf16.mxu0 0
  %2279 = vmatpush1.bf16.msra.mxu0 0
  %2280 = vmatprep.mubr.bf16.mxu0 0
  %2281 = vmatmul.mubr.bf16.gmra.mrb[0].mxu0 %v2246
  %v2282 = vpop.f32.mrb[0].mxu0
  %v2283 = vadd.f32 %v2231, %v2282
  %v2284 = vpop.f32.mrb[0].mxu0
  %v2285 = vpop.f32.mrb[0].mxu0
  %v2286 = vadd.f32 %v2231, %v2285
  %v2287 = vpop.f32.mrb[0].mxu0
  %2288 = vdwg.mxu0
  %vm2289 = vcmask 64512
  %2290 = vst.msk [vmem:[%s11] sm:$0xff] %vm2289, %v2283
  %2291 = vst.msk [vmem:[%s11 + $0x8] sm:$0xff] %vm2289, %v2286
  // Predicated region
  $region46: #{lstm_model_forward.1} parent=0 // pred_check
    _
  $region47: #{lstm_model_forward.1} parent=0 // pred_check_branch
    %2293 = sbr.rel (0) target = $region49
  $region48: #{lstm_model_forward.1} parent=0 // pred_region
    _
  $region49: #{lstm_model_forward.1} parent=0 // pred_fallthru
    _
  // Predicated region
  $region50: #{lstm_model_forward.1} parent=0 // pred_check
    _
  $region51: #{lstm_model_forward.1} parent=0 // pred_check_branch
    %2295 = sbr.rel (0) target = $region53
  $region52: #{lstm_model_forward.1} parent=0 // pred_region
    _
  $region53: #{lstm_model_forward.1} parent=0 // pred_fallthru
    _

</llo_original>
